<compile_context>
chip_gen: v7x
topology: tpu7x:2x2x1
jax: 0.10.0
libtpu: 0.0.40
codegen_flags: <defaults>
</compile_context>

<pallas_src>
import math
from functools import partial

import jax
import jax.numpy as jnp
from jax import lax
from jax.experimental import pallas as pl
from jax.experimental.pallas import tpu as pltpu

LN_EPS = 1e-5                    # torch.nn.LayerNorm default eps
NEG_INF = -1e30                  # large finite negative: exp() flushes to 0.0


# ----------------------------------------------------------------------------
# per-generation configuration
# ----------------------------------------------------------------------------
def _hw_config():
    vmem_cap = 64 * 1024 * 1024
    try:
        info = pltpu.get_tpu_info()
        vmem_cap = int(getattr(info, "vmem_capacity_bytes", vmem_cap))
    except Exception:
        pass
    if vmem_cap >= 100 * 1024 * 1024:        # v5e / v6e: 128 MiB VMEM
        return dict(vmem_limit=96 * 1024 * 1024,
                    row_tiles=(1024, 512, 256, 128),
                    seq_tiles=(512, 256, 128),
                    ffn_tiles=(2048, 1024, 512, 256),
                    vocab_tiles=(2048, 1024, 512, 256, 128))
    return dict(vmem_limit=44 * 1024 * 1024,  # v7x: 64 MiB physical VMEM
                row_tiles=(512, 256, 128),
                seq_tiles=(256, 128),
                ffn_tiles=(1024, 512, 256),
                vocab_tiles=(1024, 512, 256, 128))


_HW = _hw_config()


# ----------------------------------------------------------------------------
# small helpers
# ----------------------------------------------------------------------------
def _layernorm(x, w, b):
    x = x.astype(jnp.float32)
    mu = jnp.mean(x, axis=-1, keepdims=True)
    var = jnp.mean((x - mu) ** 2, axis=-1, keepdims=True)
    return (x - mu) * lax.rsqrt(var + LN_EPS) * w + b


def _pick_tile(n, candidates):
    # TODO(synk): replace the full-extent fallback with cdiv grids + masked
    # edge tiles for shapes that are not multiples of 128.
    for c in candidates:
        if n % c == 0:
            return c
    return n


def _cparams(*dims):
    return pltpu.CompilerParams(dimension_semantics=dims,
                                vmem_limit_bytes=_HW['vmem_limit'])


def _full_spec(shape):
    zeros = (0,) * len(shape)
    return pl.BlockSpec(shape, lambda *_: zeros)   # resident, DMA'd once


# ----------------------------------------------------------------------------
# Kernel 1: fused LayerNorm + QKV projection -> head-major (B, H, S, hd)
# ----------------------------------------------------------------------------
def qkv_kernel(scale, D, H, hd, x_ref, ln1w_ref, ln1b_ref, wqkv_ref, bqkv_ref,
               q_ref, k_ref, v_ref):
    h = _layernorm(x_ref[...], ln1w_ref[...], ln1b_ref[...]).astype(jnp.bfloat16)
    qkv = jnp.dot(h, wqkv_ref[...],
                  preferred_element_type=jnp.float32) + bqkv_ref[...]
    q_all = qkv[:, 0:D] * scale          # fold 1/sqrt(hd) into q
    k_all = qkv[:, D:2 * D]
    v_all = qkv[:, 2 * D:3 * D]
    # Head-major stores so the flash kernel never transposes per kv step.
    for hh in range(H):
        sl = slice(hh * hd, (hh + 1) * hd)
        q_ref[hh] = q_all[:, sl].astype(q_ref.dtype)
        k_ref[hh] = k_all[:, sl].astype(k_ref.dtype)
        v_ref[hh] = v_all[:, sl].astype(v_ref.dtype)


def run_qkv_proj(x3d, lp, scale, H):
    B, S, D = x3d.shape
    hd = D // H
    tq = _pick_tile(S, _HW['seq_tiles'])
    x_spec = pl.BlockSpec((None, tq, D), lambda b, i: (b, i, 0))
    out_spec = pl.BlockSpec((None, H, tq, hd), lambda b, i: (b, 0, i, 0))
    args = (x3d, lp['ln1w'], lp['ln1b'], lp['wqkv'], lp['bqkv'])
    in_specs = [x_spec] + [_full_spec(a.shape) for a in args[1:]]
    out_shape = tuple(jax.ShapeDtypeStruct((B, H, S, hd), jnp.bfloat16)
                      for _ in range(3))
    return pl.pallas_call(
        partial(qkv_kernel, scale, D, H, hd),
        grid=(B, S // tq),
        in_specs=in_specs,
        out_specs=(out_spec, out_spec, out_spec),
        out_shape=out_shape,
        compiler_params=_cparams("parallel", "parallel"),
    )(*args)


# ----------------------------------------------------------------------------
# Kernel 2: flash attention (+ fused output projection)
#   grid (batch, q_block, kv_block); q/k/v head-major (H, t, hd) blocks.
# ----------------------------------------------------------------------------
def flash_attn_kernel(q_ref, k_ref, v_ref, projw_ref, projb_ref, o_ref,
                      m_sc, l_sc, acc_sc):
    qi = pl.program_id(1)
    ki = pl.program_id(2)
    H, tq, hd = q_ref.shape
    tk = k_ref.shape[1]
    D = projw_ref.shape[2]

    @pl.when(ki == 0)
    def _init():
        m_sc[...] = jnp.full_like(m_sc, NEG_INF)
        l_sc[...] = jnp.zeros_like(l_sc)
        acc_sc[...] = jnp.zeros_like(acc_sc)

    def step(masked):
        # bf16 MXU operands, f32 accumulation; no transposes (head-major refs).
        s = jnp.einsum('hqd,hkd->hqk', q_ref[...], k_ref[...],
                       preferred_element_type=jnp.float32)       # (H, tq, tk)
        if masked:   # causal mask only needed on the diagonal tile
            q_pos = qi * tq + lax.broadcasted_iota(jnp.int32, (tq, tk), 0)
            k_pos = ki * tk + lax.broadcasted_iota(jnp.int32, (tq, tk), 1)
            s = jnp.where((k_pos > q_pos)[None, :, :], NEG_INF, s)
        m_prev = m_sc[...]                                        # (H, tq)
        m_new = jnp.maximum(m_prev, jnp.max(s, axis=-1))
        alpha = jnp.exp(m_prev - m_new)
        p = jnp.exp(s - m_new[..., None])
        l_sc[...] = alpha * l_sc[...] + jnp.sum(p, axis=-1)
        acc_sc[...] = alpha[..., None] * acc_sc[...] + jnp.einsum(
            'hqk,hkd->hqd', p.astype(jnp.bfloat16), v_ref[...],
            preferred_element_type=jnp.float32)
        m_sc[...] = m_new

    @pl.when(ki < qi)                     # below-diagonal: no mask needed
    def _off_diag():
        step(masked=False)

    @pl.when(ki == qi)                    # diagonal tile + finalize
    def _diag():
        step(masked=True)
        inv_l = pl.reciprocal(l_sc[...], approx=True)            # (H, tq)
        ctx = (acc_sc[...] * inv_l[..., None]).astype(jnp.bfloat16)
        # Fused output projection on VMEM-resident data -> lane-dense (tq, D).
        out = jnp.zeros((tq, D), jnp.float32)
        for hh in range(H):
            out = out + jnp.dot(ctx[hh], projw_ref[hh],
                                preferred_element_type=jnp.float32)
        o_ref[...] = (out + projb_ref[...]).astype(o_ref.dtype)


def run_flash_attention(q, k, v, projw, projb):
    # q, k, v: (B, H, S, hd) bf16, q pre-scaled; projw: (H, hd, D) bf16.
    # TODO(synk): attention / out dropouts are identity in eval mode.
    B, H, S, hd = q.shape
    D = H * hd
    tq = _pick_tile(S, _HW['seq_tiles'])
    tk = tq
    q_spec = pl.BlockSpec((None, H, tq, hd), lambda b, i, j: (b, 0, i, 0))
    # Clamp kv block index for fully-masked causal tiles: the block index
    # repeats, so Pallas skips the (wasted) K/V DMA for those grid steps.
    kv_spec = pl.BlockSpec((None, H, tk, hd),
                           lambda b, i, j: (b, 0, jnp.minimum(i, j), 0))
    out_spec = pl.BlockSpec((None, tq, D), lambda b, i, j: (b, i, 0))
    return pl.pallas_call(
        flash_attn_kernel,
        grid=(B, S // tq, S // tk),
        in_specs=[q_spec, kv_spec, kv_spec,
                  _full_spec(projw.shape), _full_spec(projb.shape)],
        out_specs=out_spec,
        out_shape=jax.ShapeDtypeStruct((B, S, D), jnp.bfloat16),
        scratch_shapes=[
            pltpu.VMEM((H, tq), jnp.float32),      # running max  m
            pltpu.VMEM((H, tq), jnp.float32),      # running sum  l
            pltpu.VMEM((H, tq, hd), jnp.float32),  # running numerator
        ],
        compiler_params=_cparams("parallel", "parallel", "arbitrary"),
    )(q, k, v, projw, projb)


# ----------------------------------------------------------------------------
# Kernel 3: residual + LN2 + FFN (hidden dim chunked on an arbitrary grid
#           axis with an f32 accumulator) + residual
# ----------------------------------------------------------------------------
def post_attn_ffn_kernel(attn_ref, x_ref, ln2w_ref, ln2b_ref,
                         fc1w_ref, fc1b_ref, fc2w_ref, fc2b_ref,
                         o_ref, xr_sc, h_sc, acc_sc):
    f = pl.program_id(1)
    nf = pl.num_programs(1)

    @pl.when(f == 0)
    def _init():
        # TODO(synk): attn-out / residual / ff dropouts are identity (eval).
        xr = x_ref[...].astype(jnp.float32) + attn_ref[...].astype(jnp.float32)
        xr_sc[...] = xr
        h_sc[...] = _layernorm(xr, ln2w_ref[...], ln2b_ref[...]).astype(h_sc.dtype)
        acc_sc[...] = jnp.zeros_like(acc_sc)

    hidden = jnp.dot(h_sc[...], fc1w_ref[...],
                     preferred_element_type=jnp.float32) + fc1b_ref[...]
    hidden = jnp.maximum(hidden, 0.0).astype(jnp.bfloat16)        # ReLU
    acc_sc[...] += jnp.dot(hidden, fc2w_ref[...],
                           preferred_element_type=jnp.float32)

    @pl.when(f == nf - 1)
    def _finalize():
        o_ref[...] = (xr_sc[...] + acc_sc[...] + fc2b_ref[...]).astype(o_ref.dtype)


def run_post_attn_ffn(attn2d, x2d, lp):
    R, D = x2d.shape
    F = lp['fc1w'].shape[1]
    tr = _pick_tile(R, _HW['row_tiles'])
    tf = _pick_tile(F, _HW['ffn_tiles'])
    row_spec = pl.BlockSpec((tr, D), lambda i, f: (i, 0))
    in_specs = [row_spec, row_spec,
                _full_spec(lp['ln2w'].shape), _full_spec(lp['ln2b'].shape),
                pl.BlockSpec((D, tf), lambda i, f: (0, f)),
                pl.BlockSpec((1, tf), lambda i, f: (0, f)),
                pl.BlockSpec((tf, D), lambda i, f: (f, 0)),
                _full_spec(lp['fc2b'].shape)]
    return pl.pallas_call(
        post_attn_ffn_kernel,
        grid=(R // tr, F // tf),
        in_specs=in_specs,
        out_specs=row_spec,
        out_shape=jax.ShapeDtypeStruct((R, D), jnp.float32),
        scratch_shapes=[pltpu.VMEM((tr, D), jnp.float32),     # residual xr
                        pltpu.VMEM((tr, D), jnp.bfloat16),    # LN2 output
                        pltpu.VMEM((tr, D), jnp.float32)],    # FFN accumulator
        compiler_params=_cparams("parallel", "arbitrary"),
    )(attn2d, x2d, lp['ln2w'], lp['ln2b'],
      lp['fc1w'], lp['fc1b'], lp['fc2w'], lp['fc2b'])


# ----------------------------------------------------------------------------
# Kernel 4a: final LayerNorm (row-tiled, bf16 out)
# ----------------------------------------------------------------------------
def final_ln_kernel(x_ref, w_ref, b_ref, o_ref):
    o_ref[...] = _layernorm(x_ref[...], w_ref[...], b_ref[...]).astype(o_ref.dtype)


def run_final_ln(x2d, fnw, fnb):
    R, D = x2d.shape
    tr = _pick_tile(R, _HW['row_tiles'])
    row_spec = pl.BlockSpec((tr, D), lambda i: (i, 0))
    return pl.pallas_call(
        final_ln_kernel,
        grid=(R // tr,),
        in_specs=[row_spec, _full_spec(fnw.shape), _full_spec(fnb.shape)],
        out_specs=row_spec,
        out_shape=jax.ShapeDtypeStruct((R, D), jnp.bfloat16),
        compiler_params=_cparams("parallel"),
    )(x2d, fnw, fnb)


# ----------------------------------------------------------------------------
# Kernel 4b: LM head — vocab OUTER so each (D, tv) weight tile is DMA'd once
#            (single weight pass over HBM) while activation blocks stream.
# ----------------------------------------------------------------------------
def head_kernel(h_ref, w_ref, b_ref, o_ref):
    o_ref[...] = (jnp.dot(h_ref[...], w_ref[...],
                          preferred_element_type=jnp.float32)
                  + b_ref[...]).astype(o_ref.dtype)


def run_lm_head(h2d, headw, headb):
    R, D = h2d.shape
    V = headw.shape[1]
    tr = _pick_tile(R, _HW['row_tiles'])
    tv = _pick_tile(V, _HW['vocab_tiles'])
    return pl.pallas_call(
        head_kernel,
        grid=(V // tv, R // tr),
        in_specs=[pl.BlockSpec((tr, D), lambda jv, ir: (ir, 0)),
                  pl.BlockSpec((D, tv), lambda jv, ir: (0, jv)),
                  pl.BlockSpec((1, tv), lambda jv, ir: (0, jv))],
        out_specs=pl.BlockSpec((tr, tv), lambda jv, ir: (ir, jv)),
        out_shape=jax.ShapeDtypeStruct((R, V), jnp.float32),
        compiler_params=_cparams("parallel", "parallel"),
    )(h2d, headw, headb)


# ----------------------------------------------------------------------------
# Parameter setup (deterministic, synthetic; weights stored (in, out),
# big weights pre-cast to bf16 ONCE here, qkv fused, projw head-major)
# ----------------------------------------------------------------------------
def sinusoidal_pe(context_length, dim):
    position = jnp.arange(context_length, dtype=jnp.float32)[:, None]
    div_term = jnp.exp(jnp.arange(0, dim, 2, dtype=jnp.float32)
                       * (-math.log(10000.0) / dim))
    pe = jnp.zeros((context_length, dim), jnp.float32)
    pe = pe.at[:, 0::2].set(jnp.sin(position * div_term))
    pe = pe.at[:, 1::2].set(jnp.cos(position * div_term))
    return pe


def _linear_params(key, fan_in, fan_out):
    kw, kb = jax.random.split(key)
    bound = 1.0 / math.sqrt(fan_in)
    w = jax.random.uniform(kw, (fan_in, fan_out), jnp.float32, -bound, bound)
    b = jax.random.uniform(kb, (1, fan_out), jnp.float32, -bound, bound)
    return w, b


def _ln_params(key, dim):
    kw, kb = jax.random.split(key)
    w = 1.0 + 0.02 * jax.random.normal(kw, (1, dim), jnp.float32)
    b = 0.02 * jax.random.normal(kb, (1, dim), jnp.float32)
    return w, b


def init_gpt_params(key, num_tokens, dim, num_layers, context_length, num_heads):
    hd = dim // num_heads
    bf = jnp.bfloat16
    keys = jax.random.split(key, num_layers + 3)
    tok_emb = jax.random.normal(keys[0], (num_tokens, dim), jnp.float32)
    layers = []
    for li in range(num_layers):
        lkeys = jax.random.split(keys[1 + li], 6)
        ln1w, ln1b = _ln_params(lkeys[0], dim)
        qkvw, qkvb = _linear_params(lkeys[1], dim, 3 * dim)
        projw, projb = _linear_params(lkeys[2], dim, dim)
        ln2w, ln2b = _ln_params(lkeys[3], dim)
        fc1w, fc1b = _linear_params(lkeys[4], dim, 4 * dim)
        fc2w, fc2b = _linear_params(lkeys[5], 4 * dim, dim)
        layers.append(dict(
            ln1w=ln1w, ln1b=ln1b,
            wqkv=qkvw.astype(bf), bqkv=qkvb,                       # fused QKV
            projw=projw.reshape(num_heads, hd, dim).astype(bf),    # head-major
            projb=projb,
            ln2w=ln2w, ln2b=ln2b,
            fc1w=fc1w.astype(bf), fc1b=fc1b,
            fc2w=fc2w.astype(bf), fc2b=fc2b))
    fnw, fnb = _ln_params(keys[num_layers + 1], dim)
    headw, headb = _linear_params(keys[num_layers + 2], dim, num_tokens)
    return dict(tok_emb=tok_emb, pe=sinusoidal_pe(context_length, dim),
                layers=layers, fnw=fnw, fnb=fnb,
                headw=headw.astype(bf), headb=headb)


# ----------------------------------------------------------------------------
# Full forward pass
# ----------------------------------------------------------------------------
def gpt_forward(tokens, params, num_heads):
    B, S = tokens.shape
    D = params['tok_emb'].shape[1]
    H = num_heads
    hd = D // H
    assert H * hd == D
    assert S <= params['pe'].shape[0], "sequence longer than context_length"
    # Embedding gather + sinusoidal positional encoding: plain-JAX glue.
    x = jnp.take(params['tok_emb'], tokens, axis=0) + params['pe'][:S][None]
    # TODO(synk): top-level Dropout(0.1) is identity in eval mode.
    scale = float(hd) ** -0.5
    # TODO(synk): layer weights could be stacked on a grid axis (or prefetched
    # via cross-call semaphore futures) so layer l+1 weights DMA under layer l
    # compute; kept as one pallas_call chain per layer here.
    for lp in params['layers']:
        q, k, v = run_qkv_proj(x, lp, scale, H)                    # (B,H,S,hd)
        attn = run_flash_attention(q, k, v, lp['projw'], lp['projb'])  # (B,S,D)
        x2d = run_post_attn_ffn(attn.reshape(B * S, D), x.reshape(B * S, D), lp)
        x = x2d.reshape(B, S, D)
    h = run_final_ln(x.reshape(B * S, D), params['fnw'], params['fnb'])
    logits = run_lm_head(h, params['headw'], params['headb'])
    return logits.reshape(B, S, -1)


if __name__ == "__main__":
    # Small shapes consistent with the module: Transformer default num_heads=8
    # => head_dim = dim // 8.
    B, S = 2, 8
    num_tokens, dim, num_layers, context_length = 128, 64, 2, 16
    num_heads = 8

    key = jax.random.PRNGKey(0)
    kparams, ktok = jax.random.split(key)
    params = init_gpt_params(kparams, num_tokens, dim, num_layers,
                             context_length, num_heads)
    tokens = jax.random.randint(ktok, (B, S), 0, num_tokens, dtype=jnp.int32)

    fwd = jax.jit(gpt_forward, static_argnums=2)
    logits = jax.block_until_ready(fwd(tokens, params, num_heads))
    assert logits.shape == (B, S, num_tokens), logits.shape
    assert bool(jnp.all(jnp.isfinite(logits)))
    print("KERNEL_OK")
</pallas_src>

<mosaic_0001>
module attributes {stable_mosaic.version = 11 : i64} {
  func.func @qkv_kernel(%arg0: i32, %arg1: i32, %arg2: memref<1x8x64xf32, #tpu.memory_space<vmem>>, %arg3: memref<1x64xf32, #tpu.memory_space<vmem>>, %arg4: memref<1x64xf32, #tpu.memory_space<vmem>>, %arg5: memref<64x192xbf16, #tpu.memory_space<vmem>>, %arg6: memref<1x192xf32, #tpu.memory_space<vmem>>, %arg7: memref<1x8x8x8xbf16, #tpu.memory_space<vmem>>, %arg8: memref<1x8x8x8xbf16, #tpu.memory_space<vmem>>, %arg9: memref<1x8x8x8xbf16, #tpu.memory_space<vmem>>) attributes {dimension_semantics = [#tpu.dimension_semantics<parallel>, #tpu.dimension_semantics<parallel>], iteration_bounds = array<i64: 2, 1>, scalar_prefetch = 0 : i64, scratch_operands = 0 : i64, tpu.core_type = #tpu.core_type<tc>, window_params = [{transform_indices = @transform_0, window_bounds = array<i64: 1, 8, 64>}, {pipeline_mode = #tpu.pipeline_mode<synchronous>, transform_indices = @transform_1, window_bounds = array<i64: 1, 64>}, {pipeline_mode = #tpu.pipeline_mode<synchronous>, transform_indices = @transform_2, window_bounds = array<i64: 1, 64>}, {pipeline_mode = #tpu.pipeline_mode<synchronous>, transform_indices = @transform_3, window_bounds = array<i64: 64, 192>}, {pipeline_mode = #tpu.pipeline_mode<synchronous>, transform_indices = @transform_4, window_bounds = array<i64: 1, 192>}, {transform_indices = @transform_5, window_bounds = array<i64: 1, 8, 8, 8>}, {transform_indices = @transform_6, window_bounds = array<i64: 1, 8, 8, 8>}, {transform_indices = @transform_7, window_bounds = array<i64: 1, 8, 8, 8>}]} {
    %c0 = arith.constant 0 : index
    %c0_0 = arith.constant 0 : index
    %c0_1 = arith.constant 0 : index
    %0 = vector.load %arg2[%c0, %c0_0, %c0_1] : memref<1x8x64xf32, #tpu.memory_space<vmem>>, vector<1x8x64xf32>
    %1 = vector.shape_cast %0 : vector<1x8x64xf32> to vector<8x64xf32>
    %c0_2 = arith.constant 0 : index
    %c0_3 = arith.constant 0 : index
    %2 = vector.load %arg3[%c0_2, %c0_3] : memref<1x64xf32, #tpu.memory_space<vmem>>, vector<1x64xf32>
    %c0_4 = arith.constant 0 : index
    %c0_5 = arith.constant 0 : index
    %3 = vector.load %arg4[%c0_4, %c0_5] : memref<1x64xf32, #tpu.memory_space<vmem>>, vector<1x64xf32>
    %cst = arith.constant dense<0.000000e+00> : vector<8xf32>
    %4 = vector.multi_reduction <add>, %1, %cst [1] : vector<8x64xf32> to vector<8xf32>
    %5 = vector.shape_cast %4 : vector<8xf32> to vector<8x1xf32>
    %cst_6 = arith.constant 6.400000e+01 : f32
    %6 = vector.broadcast %cst_6 : f32 to vector<8x1xf32>
    %7 = arith.divf %5, %6 : vector<8x1xf32>
    %8 = vector.broadcast %7 : vector<8x1xf32> to vector<8x64xf32>
    %9 = arith.subf %1, %8 : vector<8x64xf32>
    %10 = arith.mulf %9, %9 : vector<8x64xf32>
    %cst_7 = arith.constant dense<0.000000e+00> : vector<8xf32>
    %11 = vector.multi_reduction <add>, %10, %cst_7 [1] : vector<8x64xf32> to vector<8xf32>
    %12 = vector.shape_cast %11 : vector<8xf32> to vector<8x1xf32>
    %cst_8 = arith.constant 6.400000e+01 : f32
    %13 = vector.broadcast %cst_8 : f32 to vector<8x1xf32>
    %14 = arith.divf %12, %13 : vector<8x1xf32>
    %15 = vector.broadcast %7 : vector<8x1xf32> to vector<8x64xf32>
    %16 = arith.subf %1, %15 : vector<8x64xf32>
    %cst_9 = arith.constant 9.99999974E-6 : f32
    %17 = vector.broadcast %cst_9 : f32 to vector<8x1xf32>
    %18 = arith.addf %14, %17 : vector<8x1xf32>
    %19 = math.rsqrt %18 : vector<8x1xf32>
    %20 = vector.broadcast %19 : vector<8x1xf32> to vector<8x64xf32>
    %21 = arith.mulf %16, %20 : vector<8x64xf32>
    %22 = vector.broadcast %2 : vector<1x64xf32> to vector<8x64xf32>
    %23 = arith.mulf %21, %22 : vector<8x64xf32>
    %24 = vector.broadcast %3 : vector<1x64xf32> to vector<8x64xf32>
    %25 = arith.addf %23, %24 : vector<8x64xf32>
    %26 = arith.truncf %25 : vector<8x64xf32> to vector<8x64xbf16>
    %c0_10 = arith.constant 0 : index
    %c0_11 = arith.constant 0 : index
    %27 = vector.load %arg5[%c0_10, %c0_11] : memref<64x192xbf16, #tpu.memory_space<vmem>>, vector<64x192xbf16>
    %cst_12 = arith.constant dense<0.000000e+00> : vector<8x192xf32>
    %28 = tpu.matmul %26, %27, %cst_12 {dimension_numbers = #tpu.dot_dimension_numbers<[1], [0], [0], [1], [0, 0, 1, 1], [], []>} : vector<8x64xbf16>, vector<64x192xbf16>, vector<8x192xf32> -> vector<8x192xf32>
    %c0_13 = arith.constant 0 : index
    %c0_14 = arith.constant 0 : index
    %29 = vector.load %arg6[%c0_13, %c0_14] : memref<1x192xf32, #tpu.memory_space<vmem>>, vector<1x192xf32>
    %30 = vector.broadcast %29 : vector<1x192xf32> to vector<8x192xf32>
    %31 = arith.addf %28, %30 : vector<8x192xf32>
    %32 = vector.extract_strided_slice %31 {offsets = [0, 0], sizes = [8, 64], strides = [1, 1]} : vector<8x192xf32> to vector<8x64xf32>
    %cst_15 = arith.constant 0.353553385 : f32
    %33 = vector.broadcast %cst_15 : f32 to vector<8x64xf32>
    %34 = arith.mulf %32, %33 : vector<8x64xf32>
    %35 = vector.extract_strided_slice %31 {offsets = [0, 64], sizes = [8, 64], strides = [1, 1]} : vector<8x192xf32> to vector<8x64xf32>
    %36 = vector.extract_strided_slice %31 {offsets = [0, 128], sizes = [8, 64], strides = [1, 1]} : vector<8x192xf32> to vector<8x64xf32>
    %37 = vector.extract_strided_slice %34 {offsets = [0, 0], sizes = [8, 8], strides = [1, 1]} : vector<8x64xf32> to vector<8x8xf32>
    %38 = arith.truncf %37 : vector<8x8xf32> to vector<8x8xbf16>
    %c0_16 = arith.constant 0 : index
    %c0_17 = arith.constant 0 : index
    %c0_18 = arith.constant 0 : index
    %c0_19 = arith.constant 0 : index
    %39 = vector.load %arg7[%c0_16, %c0_17, %c0_18, %c0_19] : memref<1x8x8x8xbf16, #tpu.memory_space<vmem>>, vector<1x1x8x8xbf16>
    %40 = vector.shape_cast %39 : vector<1x1x8x8xbf16> to vector<8x8xbf16>
    %41 = vector.shape_cast %38 : vector<8x8xbf16> to vector<1x1x8x8xbf16>
    tpu.vector_store %arg7[%c0_16, %c0_17, %c0_18, %c0_19], %41 {strides = array<i32>} : memref<1x8x8x8xbf16, #tpu.memory_space<vmem>>, vector<1x1x8x8xbf16>,
    %42 = vector.extract_strided_slice %35 {offsets = [0, 0], sizes = [8, 8], strides = [1, 1]} : vector<8x64xf32> to vector<8x8xf32>
    %43 = arith.truncf %42 : vector<8x8xf32> to vector<8x8xbf16>
    %c0_20 = arith.constant 0 : index
    %c0_21 = arith.constant 0 : index
    %c0_22 = arith.constant 0 : index
    %c0_23 = arith.constant 0 : index
    %44 = vector.load %arg8[%c0_20, %c0_21, %c0_22, %c0_23] : memref<1x8x8x8xbf16, #tpu.memory_space<vmem>>, vector<1x1x8x8xbf16>
    %45 = vector.shape_cast %44 : vector<1x1x8x8xbf16> to vector<8x8xbf16>
    %46 = vector.shape_cast %43 : vector<8x8xbf16> to vector<1x1x8x8xbf16>
    tpu.vector_store %arg8[%c0_20, %c0_21, %c0_22, %c0_23], %46 {strides = array<i32>} : memref<1x8x8x8xbf16, #tpu.memory_space<vmem>>, vector<1x1x8x8xbf16>,
    %47 = vector.extract_strided_slice %36 {offsets = [0, 0], sizes = [8, 8], strides = [1, 1]} : vector<8x64xf32> to vector<8x8xf32>
    %48 = arith.truncf %47 : vector<8x8xf32> to vector<8x8xbf16>
    %c0_24 = arith.constant 0 : index
    %c0_25 = arith.constant 0 : index
    %c0_26 = arith.constant 0 : index
    %c0_27 = arith.constant 0 : index
    %49 = vector.load %arg9[%c0_24, %c0_25, %c0_26, %c0_27] : memref<1x8x8x8xbf16, #tpu.memory_space<vmem>>, vector<1x1x8x8xbf16>
    %50 = vector.shape_cast %49 : vector<1x1x8x8xbf16> to vector<8x8xbf16>
    %51 = vector.shape_cast %48 : vector<8x8xbf16> to vector<1x1x8x8xbf16>
    tpu.vector_store %arg9[%c0_24, %c0_25, %c0_26, %c0_27], %51 {strides = array<i32>} : memref<1x8x8x8xbf16, #tpu.memory_space<vmem>>, vector<1x1x8x8xbf16>,
    %52 = vector.extract_strided_slice %34 {offsets = [0, 8], sizes = [8, 8], strides = [1, 1]} : vector<8x64xf32> to vector<8x8xf32>
    %53 = arith.truncf %52 : vector<8x8xf32> to vector<8x8xbf16>
    %c0_28 = arith.constant 0 : index
    %c1 = arith.constant 1 : index
    %c0_29 = arith.constant 0 : index
    %c0_30 = arith.constant 0 : index
    %54 = vector.load %arg7[%c0_28, %c1, %c0_29, %c0_30] : memref<1x8x8x8xbf16, #tpu.memory_space<vmem>>, vector<1x1x8x8xbf16>
    %55 = vector.shape_cast %54 : vector<1x1x8x8xbf16> to vector<8x8xbf16>
    %56 = vector.shape_cast %53 : vector<8x8xbf16> to vector<1x1x8x8xbf16>
    tpu.vector_store %arg7[%c0_28, %c1, %c0_29, %c0_30], %56 {strides = array<i32>} : memref<1x8x8x8xbf16, #tpu.memory_space<vmem>>, vector<1x1x8x8xbf16>,
    %57 = vector.extract_strided_slice %35 {offsets = [0, 8], sizes = [8, 8], strides = [1, 1]} : vector<8x64xf32> to vector<8x8xf32>
    %58 = arith.truncf %57 : vector<8x8xf32> to vector<8x8xbf16>
    %c0_31 = arith.constant 0 : index
    %c1_32 = arith.constant 1 : index
    %c0_33 = arith.constant 0 : index
    %c0_34 = arith.constant 0 : index
    %59 = vector.load %arg8[%c0_31, %c1_32, %c0_33, %c0_34] : memref<1x8x8x8xbf16, #tpu.memory_space<vmem>>, vector<1x1x8x8xbf16>
    %60 = vector.shape_cast %59 : vector<1x1x8x8xbf16> to vector<8x8xbf16>
    %61 = vector.shape_cast %58 : vector<8x8xbf16> to vector<1x1x8x8xbf16>
    tpu.vector_store %arg8[%c0_31, %c1_32, %c0_33, %c0_34], %61 {strides = array<i32>} : memref<1x8x8x8xbf16, #tpu.memory_space<vmem>>, vector<1x1x8x8xbf16>,
    %62 = vector.extract_strided_slice %36 {offsets = [0, 8], sizes = [8, 8], strides = [1, 1]} : vector<8x64xf32> to vector<8x8xf32>
    %63 = arith.truncf %62 : vector<8x8xf32> to vector<8x8xbf16>
    %c0_35 = arith.constant 0 : index
    %c1_36 = arith.constant 1 : index
    %c0_37 = arith.constant 0 : index
    %c0_38 = arith.constant 0 : index
    %64 = vector.load %arg9[%c0_35, %c1_36, %c0_37, %c0_38] : memref<1x8x8x8xbf16, #tpu.memory_space<vmem>>, vector<1x1x8x8xbf16>
    %65 = vector.shape_cast %64 : vector<1x1x8x8xbf16> to vector<8x8xbf16>
    %66 = vector.shape_cast %63 : vector<8x8xbf16> to vector<1x1x8x8xbf16>
    tpu.vector_store %arg9[%c0_35, %c1_36, %c0_37, %c0_38], %66 {strides = array<i32>} : memref<1x8x8x8xbf16, #tpu.memory_space<vmem>>, vector<1x1x8x8xbf16>,
    %67 = vector.extract_strided_slice %34 {offsets = [0, 16], sizes = [8, 8], strides = [1, 1]} : vector<8x64xf32> to vector<8x8xf32>
    %68 = arith.truncf %67 : vector<8x8xf32> to vector<8x8xbf16>
    %c0_39 = arith.constant 0 : index
    %c2 = arith.constant 2 : index
    %c0_40 = arith.constant 0 : index
    %c0_41 = arith.constant 0 : index
    %69 = vector.load %arg7[%c0_39, %c2, %c0_40, %c0_41] : memref<1x8x8x8xbf16, #tpu.memory_space<vmem>>, vector<1x1x8x8xbf16>
    %70 = vector.shape_cast %69 : vector<1x1x8x8xbf16> to vector<8x8xbf16>
    %71 = vector.shape_cast %68 : vector<8x8xbf16> to vector<1x1x8x8xbf16>
    tpu.vector_store %arg7[%c0_39, %c2, %c0_40, %c0_41], %71 {strides = array<i32>} : memref<1x8x8x8xbf16, #tpu.memory_space<vmem>>, vector<1x1x8x8xbf16>,
    %72 = vector.extract_strided_slice %35 {offsets = [0, 16], sizes = [8, 8], strides = [1, 1]} : vector<8x64xf32> to vector<8x8xf32>
    %73 = arith.truncf %72 : vector<8x8xf32> to vector<8x8xbf16>
    %c0_42 = arith.constant 0 : index
    %c2_43 = arith.constant 2 : index
    %c0_44 = arith.constant 0 : index
    %c0_45 = arith.constant 0 : index
    %74 = vector.load %arg8[%c0_42, %c2_43, %c0_44, %c0_45] : memref<1x8x8x8xbf16, #tpu.memory_space<vmem>>, vector<1x1x8x8xbf16>
    %75 = vector.shape_cast %74 : vector<1x1x8x8xbf16> to vector<8x8xbf16>
    %76 = vector.shape_cast %73 : vector<8x8xbf16> to vector<1x1x8x8xbf16>
    tpu.vector_store %arg8[%c0_42, %c2_43, %c0_44, %c0_45], %76 {strides = array<i32>} : memref<1x8x8x8xbf16, #tpu.memory_space<vmem>>, vector<1x1x8x8xbf16>,
    %77 = vector.extract_strided_slice %36 {offsets = [0, 16], sizes = [8, 8], strides = [1, 1]} : vector<8x64xf32> to vector<8x8xf32>
    %78 = arith.truncf %77 : vector<8x8xf32> to vector<8x8xbf16>
    %c0_46 = arith.constant 0 : index
    %c2_47 = arith.constant 2 : index
    %c0_48 = arith.constant 0 : index
    %c0_49 = arith.constant 0 : index
    %79 = vector.load %arg9[%c0_46, %c2_47, %c0_48, %c0_49] : memref<1x8x8x8xbf16, #tpu.memory_space<vmem>>, vector<1x1x8x8xbf16>
    %80 = vector.shape_cast %79 : vector<1x1x8x8xbf16> to vector<8x8xbf16>
    %81 = vector.shape_cast %78 : vector<8x8xbf16> to vector<1x1x8x8xbf16>
    tpu.vector_store %arg9[%c0_46, %c2_47, %c0_48, %c0_49], %81 {strides = array<i32>} : memref<1x8x8x8xbf16, #tpu.memory_space<vmem>>, vector<1x1x8x8xbf16>,
    %82 = vector.extract_strided_slice %34 {offsets = [0, 24], sizes = [8, 8], strides = [1, 1]} : vector<8x64xf32> to vector<8x8xf32>
    %83 = arith.truncf %82 : vector<8x8xf32> to vector<8x8xbf16>
    %c0_50 = arith.constant 0 : index
    %c3 = arith.constant 3 : index
    %c0_51 = arith.constant 0 : index
    %c0_52 = arith.constant 0 : index
    %84 = vector.load %arg7[%c0_50, %c3, %c0_51, %c0_52] : memref<1x8x8x8xbf16, #tpu.memory_space<vmem>>, vector<1x1x8x8xbf16>
    %85 = vector.shape_cast %84 : vector<1x1x8x8xbf16> to vector<8x8xbf16>
    %86 = vector.shape_cast %83 : vector<8x8xbf16> to vector<1x1x8x8xbf16>
    tpu.vector_store %arg7[%c0_50, %c3, %c0_51, %c0_52], %86 {strides = array<i32>} : memref<1x8x8x8xbf16, #tpu.memory_space<vmem>>, vector<1x1x8x8xbf16>,
    %87 = vector.extract_strided_slice %35 {offsets = [0, 24], sizes = [8, 8], strides = [1, 1]} : vector<8x64xf32> to vector<8x8xf32>
    %88 = arith.truncf %87 : vector<8x8xf32> to vector<8x8xbf16>
    %c0_53 = arith.constant 0 : index
    %c3_54 = arith.constant 3 : index
    %c0_55 = arith.constant 0 : index
    %c0_56 = arith.constant 0 : index
    %89 = vector.load %arg8[%c0_53, %c3_54, %c0_55, %c0_56] : memref<1x8x8x8xbf16, #tpu.memory_space<vmem>>, vector<1x1x8x8xbf16>
    %90 = vector.shape_cast %89 : vector<1x1x8x8xbf16> to vector<8x8xbf16>
    %91 = vector.shape_cast %88 : vector<8x8xbf16> to vector<1x1x8x8xbf16>
    tpu.vector_store %arg8[%c0_53, %c3_54, %c0_55, %c0_56], %91 {strides = array<i32>} : memref<1x8x8x8xbf16, #tpu.memory_space<vmem>>, vector<1x1x8x8xbf16>,
    %92 = vector.extract_strided_slice %36 {offsets = [0, 24], sizes = [8, 8], strides = [1, 1]} : vector<8x64xf32> to vector<8x8xf32>
    %93 = arith.truncf %92 : vector<8x8xf32> to vector<8x8xbf16>
    %c0_57 = arith.constant 0 : index
    %c3_58 = arith.constant 3 : index
    %c0_59 = arith.constant 0 : index
    %c0_60 = arith.constant 0 : index
    %94 = vector.load %arg9[%c0_57, %c3_58, %c0_59, %c0_60] : memref<1x8x8x8xbf16, #tpu.memory_space<vmem>>, vector<1x1x8x8xbf16>
    %95 = vector.shape_cast %94 : vector<1x1x8x8xbf16> to vector<8x8xbf16>
    %96 = vector.shape_cast %93 : vector<8x8xbf16> to vector<1x1x8x8xbf16>
    tpu.vector_store %arg9[%c0_57, %c3_58, %c0_59, %c0_60], %96 {strides = array<i32>} : memref<1x8x8x8xbf16, #tpu.memory_space<vmem>>, vector<1x1x8x8xbf16>,
    %97 = vector.extract_strided_slice %34 {offsets = [0, 32], sizes = [8, 8], strides = [1, 1]} : vector<8x64xf32> to vector<8x8xf32>
    %98 = arith.truncf %97 : vector<8x8xf32> to vector<8x8xbf16>
    %c0_61 = arith.constant 0 : index
    %c4 = arith.constant 4 : index
    %c0_62 = arith.constant 0 : index
    %c0_63 = arith.constant 0 : index
    %99 = vector.load %arg7[%c0_61, %c4, %c0_62, %c0_63] : memref<1x8x8x8xbf16, #tpu.memory_space<vmem>>, vector<1x1x8x8xbf16>
    %100 = vector.shape_cast %99 : vector<1x1x8x8xbf16> to vector<8x8xbf16>
    %101 = vector.shape_cast %98 : vector<8x8xbf16> to vector<1x1x8x8xbf16>
    tpu.vector_store %arg7[%c0_61, %c4, %c0_62, %c0_63], %101 {strides = array<i32>} : memref<1x8x8x8xbf16, #tpu.memory_space<vmem>>, vector<1x1x8x8xbf16>,
    %102 = vector.extract_strided_slice %35 {offsets = [0, 32], sizes = [8, 8], strides = [1, 1]} : vector<8x64xf32> to vector<8x8xf32>
    %103 = arith.truncf %102 : vector<8x8xf32> to vector<8x8xbf16>
    %c0_64 = arith.constant 0 : index
    %c4_65 = arith.constant 4 : index
    %c0_66 = arith.constant 0 : index
    %c0_67 = arith.constant 0 : index
    %104 = vector.load %arg8[%c0_64, %c4_65, %c0_66, %c0_67] : memref<1x8x8x8xbf16, #tpu.memory_space<vmem>>, vector<1x1x8x8xbf16>
    %105 = vector.shape_cast %104 : vector<1x1x8x8xbf16> to vector<8x8xbf16>
    %106 = vector.shape_cast %103 : vector<8x8xbf16> to vector<1x1x8x8xbf16>
    tpu.vector_store %arg8[%c0_64, %c4_65, %c0_66, %c0_67], %106 {strides = array<i32>} : memref<1x8x8x8xbf16, #tpu.memory_space<vmem>>, vector<1x1x8x8xbf16>,
    %107 = vector.extract_strided_slice %36 {offsets = [0, 32], sizes = [8, 8], strides = [1, 1]} : vector<8x64xf32> to vector<8x8xf32>
    %108 = arith.truncf %107 : vector<8x8xf32> to vector<8x8xbf16>
    %c0_68 = arith.constant 0 : index
    %c4_69 = arith.constant 4 : index
    %c0_70 = arith.constant 0 : index
    %c0_71 = arith.constant 0 : index
    %109 = vector.load %arg9[%c0_68, %c4_69, %c0_70, %c0_71] : memref<1x8x8x8xbf16, #tpu.memory_space<vmem>>, vector<1x1x8x8xbf16>
    %110 = vector.shape_cast %109 : vector<1x1x8x8xbf16> to vector<8x8xbf16>
    %111 = vector.shape_cast %108 : vector<8x8xbf16> to vector<1x1x8x8xbf16>
    tpu.vector_store %arg9[%c0_68, %c4_69, %c0_70, %c0_71], %111 {strides = array<i32>} : memref<1x8x8x8xbf16, #tpu.memory_space<vmem>>, vector<1x1x8x8xbf16>,
    %112 = vector.extract_strided_slice %34 {offsets = [0, 40], sizes = [8, 8], strides = [1, 1]} : vector<8x64xf32> to vector<8x8xf32>
    %113 = arith.truncf %112 : vector<8x8xf32> to vector<8x8xbf16>
    %c0_72 = arith.constant 0 : index
    %c5 = arith.constant 5 : index
    %c0_73 = arith.constant 0 : index
    %c0_74 = arith.constant 0 : index
    %114 = vector.load %arg7[%c0_72, %c5, %c0_73, %c0_74] : memref<1x8x8x8xbf16, #tpu.memory_space<vmem>>, vector<1x1x8x8xbf16>
    %115 = vector.shape_cast %114 : vector<1x1x8x8xbf16> to vector<8x8xbf16>
    %116 = vector.shape_cast %113 : vector<8x8xbf16> to vector<1x1x8x8xbf16>
    tpu.vector_store %arg7[%c0_72, %c5, %c0_73, %c0_74], %116 {strides = array<i32>} : memref<1x8x8x8xbf16, #tpu.memory_space<vmem>>, vector<1x1x8x8xbf16>,
    %117 = vector.extract_strided_slice %35 {offsets = [0, 40], sizes = [8, 8], strides = [1, 1]} : vector<8x64xf32> to vector<8x8xf32>
    %118 = arith.truncf %117 : vector<8x8xf32> to vector<8x8xbf16>
    %c0_75 = arith.constant 0 : index
    %c5_76 = arith.constant 5 : index
    %c0_77 = arith.constant 0 : index
    %c0_78 = arith.constant 0 : index
    %119 = vector.load %arg8[%c0_75, %c5_76, %c0_77, %c0_78] : memref<1x8x8x8xbf16, #tpu.memory_space<vmem>>, vector<1x1x8x8xbf16>
    %120 = vector.shape_cast %119 : vector<1x1x8x8xbf16> to vector<8x8xbf16>
    %121 = vector.shape_cast %118 : vector<8x8xbf16> to vector<1x1x8x8xbf16>
    tpu.vector_store %arg8[%c0_75, %c5_76, %c0_77, %c0_78], %121 {strides = array<i32>} : memref<1x8x8x8xbf16, #tpu.memory_space<vmem>>, vector<1x1x8x8xbf16>,
    %122 = vector.extract_strided_slice %36 {offsets = [0, 40], sizes = [8, 8], strides = [1, 1]} : vector<8x64xf32> to vector<8x8xf32>
    %123 = arith.truncf %122 : vector<8x8xf32> to vector<8x8xbf16>
    %c0_79 = arith.constant 0 : index
    %c5_80 = arith.constant 5 : index
    %c0_81 = arith.constant 0 : index
    %c0_82 = arith.constant 0 : index
    %124 = vector.load %arg9[%c0_79, %c5_80, %c0_81, %c0_82] : memref<1x8x8x8xbf16, #tpu.memory_space<vmem>>, vector<1x1x8x8xbf16>
    %125 = vector.shape_cast %124 : vector<1x1x8x8xbf16> to vector<8x8xbf16>
    %126 = vector.shape_cast %123 : vector<8x8xbf16> to vector<1x1x8x8xbf16>
    tpu.vector_store %arg9[%c0_79, %c5_80, %c0_81, %c0_82], %126 {strides = array<i32>} : memref<1x8x8x8xbf16, #tpu.memory_space<vmem>>, vector<1x1x8x8xbf16>,
    %127 = vector.extract_strided_slice %34 {offsets = [0, 48], sizes = [8, 8], strides = [1, 1]} : vector<8x64xf32> to vector<8x8xf32>
    %128 = arith.truncf %127 : vector<8x8xf32> to vector<8x8xbf16>
    %c0_83 = arith.constant 0 : index
    %c6 = arith.constant 6 : index
    %c0_84 = arith.constant 0 : index
    %c0_85 = arith.constant 0 : index
    %129 = vector.load %arg7[%c0_83, %c6, %c0_84, %c0_85] : memref<1x8x8x8xbf16, #tpu.memory_space<vmem>>, vector<1x1x8x8xbf16>
    %130 = vector.shape_cast %129 : vector<1x1x8x8xbf16> to vector<8x8xbf16>
    %131 = vector.shape_cast %128 : vector<8x8xbf16> to vector<1x1x8x8xbf16>
    tpu.vector_store %arg7[%c0_83, %c6, %c0_84, %c0_85], %131 {strides = array<i32>} : memref<1x8x8x8xbf16, #tpu.memory_space<vmem>>, vector<1x1x8x8xbf16>,
    %132 = vector.extract_strided_slice %35 {offsets = [0, 48], sizes = [8, 8], strides = [1, 1]} : vector<8x64xf32> to vector<8x8xf32>
    %133 = arith.truncf %132 : vector<8x8xf32> to vector<8x8xbf16>
    %c0_86 = arith.constant 0 : index
    %c6_87 = arith.constant 6 : index
    %c0_88 = arith.constant 0 : index
    %c0_89 = arith.constant 0 : index
    %134 = vector.load %arg8[%c0_86, %c6_87, %c0_88, %c0_89] : memref<1x8x8x8xbf16, #tpu.memory_space<vmem>>, vector<1x1x8x8xbf16>
    %135 = vector.shape_cast %134 : vector<1x1x8x8xbf16> to vector<8x8xbf16>
    %136 = vector.shape_cast %133 : vector<8x8xbf16> to vector<1x1x8x8xbf16>
    tpu.vector_store %arg8[%c0_86, %c6_87, %c0_88, %c0_89], %136 {strides = array<i32>} : memref<1x8x8x8xbf16, #tpu.memory_space<vmem>>, vector<1x1x8x8xbf16>,
    %137 = vector.extract_strided_slice %36 {offsets = [0, 48], sizes = [8, 8], strides = [1, 1]} : vector<8x64xf32> to vector<8x8xf32>
    %138 = arith.truncf %137 : vector<8x8xf32> to vector<8x8xbf16>
    %c0_90 = arith.constant 0 : index
    %c6_91 = arith.constant 6 : index
    %c0_92 = arith.constant 0 : index
    %c0_93 = arith.constant 0 : index
    %139 = vector.load %arg9[%c0_90, %c6_91, %c0_92, %c0_93] : memref<1x8x8x8xbf16, #tpu.memory_space<vmem>>, vector<1x1x8x8xbf16>
    %140 = vector.shape_cast %139 : vector<1x1x8x8xbf16> to vector<8x8xbf16>
    %141 = vector.shape_cast %138 : vector<8x8xbf16> to vector<1x1x8x8xbf16>
    tpu.vector_store %arg9[%c0_90, %c6_91, %c0_92, %c0_93], %141 {strides = array<i32>} : memref<1x8x8x8xbf16, #tpu.memory_space<vmem>>, vector<1x1x8x8xbf16>,
    %142 = vector.extract_strided_slice %34 {offsets = [0, 56], sizes = [8, 8], strides = [1, 1]} : vector<8x64xf32> to vector<8x8xf32>
    %143 = arith.truncf %142 : vector<8x8xf32> to vector<8x8xbf16>
    %c0_94 = arith.constant 0 : index
    %c7 = arith.constant 7 : index
    %c0_95 = arith.constant 0 : index
    %c0_96 = arith.constant 0 : index
    %144 = vector.load %arg7[%c0_94, %c7, %c0_95, %c0_96] : memref<1x8x8x8xbf16, #tpu.memory_space<vmem>>, vector<1x1x8x8xbf16>
    %145 = vector.shape_cast %144 : vector<1x1x8x8xbf16> to vector<8x8xbf16>
    %146 = vector.shape_cast %143 : vector<8x8xbf16> to vector<1x1x8x8xbf16>
    tpu.vector_store %arg7[%c0_94, %c7, %c0_95, %c0_96], %146 {strides = array<i32>} : memref<1x8x8x8xbf16, #tpu.memory_space<vmem>>, vector<1x1x8x8xbf16>,
    %147 = vector.extract_strided_slice %35 {offsets = [0, 56], sizes = [8, 8], strides = [1, 1]} : vector<8x64xf32> to vector<8x8xf32>
    %148 = arith.truncf %147 : vector<8x8xf32> to vector<8x8xbf16>
    %c0_97 = arith.constant 0 : index
    %c7_98 = arith.constant 7 : index
    %c0_99 = arith.constant 0 : index
    %c0_100 = arith.constant 0 : index
    %149 = vector.load %arg8[%c0_97, %c7_98, %c0_99, %c0_100] : memref<1x8x8x8xbf16, #tpu.memory_space<vmem>>, vector<1x1x8x8xbf16>
    %150 = vector.shape_cast %149 : vector<1x1x8x8xbf16> to vector<8x8xbf16>
    %151 = vector.shape_cast %148 : vector<8x8xbf16> to vector<1x1x8x8xbf16>
    tpu.vector_store %arg8[%c0_97, %c7_98, %c0_99, %c0_100], %151 {strides = array<i32>} : memref<1x8x8x8xbf16, #tpu.memory_space<vmem>>, vector<1x1x8x8xbf16>,
    %152 = vector.extract_strided_slice %36 {offsets = [0, 56], sizes = [8, 8], strides = [1, 1]} : vector<8x64xf32> to vector<8x8xf32>
    %153 = arith.truncf %152 : vector<8x8xf32> to vector<8x8xbf16>
    %c0_101 = arith.constant 0 : index
    %c7_102 = arith.constant 7 : index
    %c0_103 = arith.constant 0 : index
    %c0_104 = arith.constant 0 : index
    %154 = vector.load %arg9[%c0_101, %c7_102, %c0_103, %c0_104] : memref<1x8x8x8xbf16, #tpu.memory_space<vmem>>, vector<1x1x8x8xbf16>
    %155 = vector.shape_cast %154 : vector<1x1x8x8xbf16> to vector<8x8xbf16>
    %156 = vector.shape_cast %153 : vector<8x8xbf16> to vector<1x1x8x8xbf16>
    tpu.vector_store %arg9[%c0_101, %c7_102, %c0_103, %c0_104], %156 {strides = array<i32>} : memref<1x8x8x8xbf16, #tpu.memory_space<vmem>>, vector<1x1x8x8xbf16>,
    return
  }
  func.func @transform_0(%arg0: i32, %arg1: i32) -> (i32, i32, i32) {
    %c0_i32 = arith.constant 0 : i32
    %c0_i32_0 = arith.constant 0 : i32
    return %arg0, %arg1, %c0_i32 : i32, i32, i32
  }
  func.func @transform_1(%arg0: i32, %arg1: i32) -> (i32, i32) {
    %c0_i32 = arith.constant 0 : i32
    %c0_i32_0 = arith.constant 0 : i32
    %c0_i32_1 = arith.constant 0 : i32
    return %c0_i32, %c0_i32_0 : i32, i32
  }
  func.func @transform_2(%arg0: i32, %arg1: i32) -> (i32, i32) {
    %c0_i32 = arith.constant 0 : i32
    %c0_i32_0 = arith.constant 0 : i32
    %c0_i32_1 = arith.constant 0 : i32
    return %c0_i32, %c0_i32_0 : i32, i32
  }
  func.func @transform_3(%arg0: i32, %arg1: i32) -> (i32, i32) {
    %c0_i32 = arith.constant 0 : i32
    %c0_i32_0 = arith.constant 0 : i32
    %c0_i32_1 = arith.constant 0 : i32
    return %c0_i32, %c0_i32_0 : i32, i32
  }
  func.func @transform_4(%arg0: i32, %arg1: i32) -> (i32, i32) {
    %c0_i32 = arith.constant 0 : i32
    %c0_i32_0 = arith.constant 0 : i32
    %c0_i32_1 = arith.constant 0 : i32
    return %c0_i32, %c0_i32_0 : i32, i32
  }
  func.func @transform_5(%arg0: i32, %arg1: i32) -> (i32, i32, i32, i32) {
    %c0_i32 = arith.constant 0 : i32
    %c0_i32_0 = arith.constant 0 : i32
    %c0_i32_1 = arith.constant 0 : i32
    return %arg0, %c0_i32, %arg1, %c0_i32_0 : i32, i32, i32, i32
  }
  func.func @transform_6(%arg0: i32, %arg1: i32) -> (i32, i32, i32, i32) {
    %c0_i32 = arith.constant 0 : i32
    %c0_i32_0 = arith.constant 0 : i32
    %c0_i32_1 = arith.constant 0 : i32
    return %arg0, %c0_i32, %arg1, %c0_i32_0 : i32, i32, i32, i32
  }
  func.func @transform_7(%arg0: i32, %arg1: i32) -> (i32, i32, i32, i32) {
    %c0_i32 = arith.constant 0 : i32
    %c0_i32_0 = arith.constant 0 : i32
    %c0_i32_1 = arith.constant 0 : i32
    return %arg0, %c0_i32, %arg1, %c0_i32_0 : i32, i32, i32, i32
  }
}

module attributes {stable_mosaic.version = 11 : i64} {
  func.func @flash_attn_kernel(%arg0: i32, %arg1: i32, %arg2: i32, %arg3: memref<1x8x8x8xbf16, #tpu.memory_space<vmem>>, %arg4: memref<1x8x8x8xbf16, #tpu.memory_space<vmem>>, %arg5: memref<1x8x8x8xbf16, #tpu.memory_space<vmem>>, %arg6: memref<8x8x64xbf16, #tpu.memory_space<vmem>>, %arg7: memref<1x64xf32, #tpu.memory_space<vmem>>, %arg8: memref<1x8x64xbf16, #tpu.memory_space<vmem>>, %arg9: memref<8x8xf32, #tpu.memory_space<vmem>>, %arg10: memref<8x8xf32, #tpu.memory_space<vmem>>, %arg11: memref<8x8x8xf32, #tpu.memory_space<vmem>>) attributes {dimension_semantics = [#tpu.dimension_semantics<parallel>, #tpu.dimension_semantics<parallel>, #tpu.dimension_semantics<arbitrary>], iteration_bounds = array<i64: 2, 1, 1>, scalar_prefetch = 0 : i64, scratch_operands = 3 : i64, tpu.core_type = #tpu.core_type<tc>, window_params = [{transform_indices = @transform_0, window_bounds = array<i64: 1, 8, 8, 8>}, {transform_indices = @transform_1, window_bounds = array<i64: 1, 8, 8, 8>}, {transform_indices = @transform_2, window_bounds = array<i64: 1, 8, 8, 8>}, {pipeline_mode = #tpu.pipeline_mode<synchronous>, transform_indices = @transform_3, window_bounds = array<i64: 8, 8, 64>}, {pipeline_mode = #tpu.pipeline_mode<synchronous>, transform_indices = @transform_4, window_bounds = array<i64: 1, 64>}, {transform_indices = @transform_5, window_bounds = array<i64: 1, 8, 64>}]} {
    %c0_i32 = arith.constant 0 : i32
    %0 = arith.cmpi eq, %arg2, %c0_i32 : i32
    %1 = arith.extui %0 : i1 to i32
    %c0_i32_0 = arith.constant 0 : i32
    %2 = arith.cmpi ne, %1, %c0_i32_0 : i32
    scf.if %2 {
      %cst = arith.constant -1.000000e+30 : f32
      %9 = vector.broadcast %cst : f32 to vector<8x8xf32>
      %c0 = arith.constant 0 : index
      %c0_3 = arith.constant 0 : index
      %10 = vector.load %arg9[%c0, %c0_3] : memref<8x8xf32, #tpu.memory_space<vmem>>, vector<8x8xf32>
      tpu.vector_store %arg9[%c0, %c0_3], %9 {strides = array<i32>} : memref<8x8xf32, #tpu.memory_space<vmem>>, vector<8x8xf32>,
      %cst_4 = arith.constant 0.000000e+00 : f32
      %11 = vector.broadcast %cst_4 : f32 to vector<8x8xf32>
      %c0_5 = arith.constant 0 : index
      %c0_6 = arith.constant 0 : index
      %12 = vector.load %arg10[%c0_5, %c0_6] : memref<8x8xf32, #tpu.memory_space<vmem>>, vector<8x8xf32>
      tpu.vector_store %arg10[%c0_5, %c0_6], %11 {strides = array<i32>} : memref<8x8xf32, #tpu.memory_space<vmem>>, vector<8x8xf32>,
      %cst_7 = arith.constant 0.000000e+00 : f32
      %13 = vector.broadcast %cst_7 : f32 to vector<8x8x8xf32>
      %c0_8 = arith.constant 0 : index
      %c0_9 = arith.constant 0 : index
      %c0_10 = arith.constant 0 : index
      %14 = vector.load %arg11[%c0_8, %c0_9, %c0_10] : memref<8x8x8xf32, #tpu.memory_space<vmem>>, vector<8x8x8xf32>
      tpu.vector_store %arg11[%c0_8, %c0_9, %c0_10], %13 {strides = array<i32>} : memref<8x8x8xf32, #tpu.memory_space<vmem>>, vector<8x8x8xf32>,
    } else {
    }
    %3 = arith.cmpi slt, %arg2, %arg1 : i32
    %4 = arith.extui %3 : i1 to i32
    %c0_i32_1 = arith.constant 0 : i32
    %5 = arith.cmpi ne, %4, %c0_i32_1 : i32
    scf.if %5 {
      %c0 = arith.constant 0 : index
      %c0_3 = arith.constant 0 : index
      %c0_4 = arith.constant 0 : index
      %c0_5 = arith.constant 0 : index
      %9 = vector.load %arg3[%c0, %c0_3, %c0_4, %c0_5] : memref<1x8x8x8xbf16, #tpu.memory_space<vmem>>, vector<1x8x8x8xbf16>
      %10 = vector.shape_cast %9 : vector<1x8x8x8xbf16> to vector<8x8x8xbf16>
      %c0_6 = arith.constant 0 : index
      %c0_7 = arith.constant 0 : index
      %c0_8 = arith.constant 0 : index
      %c0_9 = arith.constant 0 : index
      %11 = vector.load %arg4[%c0_6, %c0_7, %c0_8, %c0_9] : memref<1x8x8x8xbf16, #tpu.memory_space<vmem>>, vector<1x8x8x8xbf16>
      %12 = vector.shape_cast %11 : vector<1x8x8x8xbf16> to vector<8x8x8xbf16>
      "tpu.trace_start"() <{level = 10 : i32, message = "hqd,hkd->hqk"}> : () -> ()
      %cst = arith.constant dense<0.000000e+00> : vector<8x8x8xf32>
      %13 = tpu.matmul %10, %12, %cst {dimension_numbers = #tpu.dot_dimension_numbers<[2], [2], [1], [1], [0, 0, 0, 1, 1, 1], [0], [0]>} : vector<8x8x8xbf16>, vector<8x8x8xbf16>, vector<8x8x8xf32> -> vector<8x8x8xf32>
      "tpu.trace_stop"() : () -> ()
      %c0_10 = arith.constant 0 : index
      %c0_11 = arith.constant 0 : index
      %14 = vector.load %arg9[%c0_10, %c0_11] : memref<8x8xf32, #tpu.memory_space<vmem>>, vector<8x8xf32>
      %cst_12 = arith.constant dense<0xFF800000> : vector<8x8xf32>
      %15 = vector.multi_reduction <maximumf>, %13, %cst_12 [2] : vector<8x8x8xf32> to vector<8x8xf32>
      %16 = arith.maximumf %14, %15 : vector<8x8xf32>
      %17 = arith.subf %14, %16 : vector<8x8xf32>
      %18 = math.exp %17 : vector<8x8xf32>
      %19 = vector.shape_cast %16 : vector<8x8xf32> to vector<8x8x1xf32>
      %20 = vector.broadcast %19 : vector<8x8x1xf32> to vector<8x8x8xf32>
      %21 = arith.subf %13, %20 : vector<8x8x8xf32>
      %22 = math.exp %21 : vector<8x8x8xf32>
      %c0_13 = arith.constant 0 : index
      %c0_14 = arith.constant 0 : index
      %23 = vector.load %arg10[%c0_13, %c0_14] : memref<8x8xf32, #tpu.memory_space<vmem>>, vector<8x8xf32>
      %24 = arith.mulf %18, %23 : vector<8x8xf32>
      %cst_15 = arith.constant dense<0.000000e+00> : vector<8x8xf32>
      %25 = vector.multi_reduction <add>, %22, %cst_15 [2] : vector<8x8x8xf32> to vector<8x8xf32>
      %26 = arith.addf %24, %25 : vector<8x8xf32>
      %c0_16 = arith.constant 0 : index
      %c0_17 = arith.constant 0 : index
      %27 = vector.load %arg10[%c0_16, %c0_17] : memref<8x8xf32, #tpu.memory_space<vmem>>, vector<8x8xf32>
      tpu.vector_store %arg10[%c0_16, %c0_17], %26 {strides = array<i32>} : memref<8x8xf32, #tpu.memory_space<vmem>>, vector<8x8xf32>,
      %28 = vector.shape_cast %18 : vector<8x8xf32> to vector<8x8x1xf32>
      %c0_18 = arith.constant 0 : index
      %c0_19 = arith.constant 0 : index
      %c0_20 = arith.constant 0 : index
      %29 = vector.load %arg11[%c0_18, %c0_19, %c0_20] : memref<8x8x8xf32, #tpu.memory_space<vmem>>, vector<8x8x8xf32>
      %30 = vector.broadcast %28 : vector<8x8x1xf32> to vector<8x8x8xf32>
      %31 = arith.mulf %30, %29 : vector<8x8x8xf32>
      %32 = arith.truncf %22 : vector<8x8x8xf32> to vector<8x8x8xbf16>
      %c0_21 = arith.constant 0 : index
      %c0_22 = arith.constant 0 : index
      %c0_23 = arith.constant 0 : index
      %c0_24 = arith.constant 0 : index
      %33 = vector.load %arg5[%c0_21, %c0_22, %c0_23, %c0_24] : memref<1x8x8x8xbf16, #tpu.memory_space<vmem>>, vector<1x8x8x8xbf16>
      %34 = vector.shape_cast %33 : vector<1x8x8x8xbf16> to vector<8x8x8xbf16>
      "tpu.trace_start"() <{level = 10 : i32, message = "hqk,hkd->hqd"}> : () -> ()
      %cst_25 = arith.constant dense<0.000000e+00> : vector<8x8x8xf32>
      %35 = tpu.matmul %32, %34, %cst_25 {dimension_numbers = #tpu.dot_dimension_numbers<[2], [1], [1], [2], [0, 0, 0, 1, 1, 2], [0], [0]>} : vector<8x8x8xbf16>, vector<8x8x8xbf16>, vector<8x8x8xf32> -> vector<8x8x8xf32>
      "tpu.trace_stop"() : () -> ()
      %36 = arith.addf %31, %35 : vector<8x8x8xf32>
      %c0_26 = arith.constant 0 : index
      %c0_27 = arith.constant 0 : index
      %c0_28 = arith.constant 0 : index
      %37 = vector.load %arg11[%c0_26, %c0_27, %c0_28] : memref<8x8x8xf32, #tpu.memory_space<vmem>>, vector<8x8x8xf32>
      tpu.vector_store %arg11[%c0_26, %c0_27, %c0_28], %36 {strides = array<i32>} : memref<8x8x8xf32, #tpu.memory_space<vmem>>, vector<8x8x8xf32>,
      %c0_29 = arith.constant 0 : index
      %c0_30 = arith.constant 0 : index
      %38 = vector.load %arg9[%c0_29, %c0_30] : memref<8x8xf32, #tpu.memory_space<vmem>>, vector<8x8xf32>
      tpu.vector_store %arg9[%c0_29, %c0_30], %16 {strides = array<i32>} : memref<8x8xf32, #tpu.memory_space<vmem>>, vector<8x8xf32>,
    } else {
    }
    %6 = arith.cmpi eq, %arg2, %arg1 : i32
    %7 = arith.extui %6 : i1 to i32
    %c0_i32_2 = arith.constant 0 : i32
    %8 = arith.cmpi ne, %7, %c0_i32_2 : i32
    scf.if %8 {
      %c0 = arith.constant 0 : index
      %c0_3 = arith.constant 0 : index
      %c0_4 = arith.constant 0 : index
      %c0_5 = arith.constant 0 : index
      %9 = vector.load %arg3[%c0, %c0_3, %c0_4, %c0_5] : memref<1x8x8x8xbf16, #tpu.memory_space<vmem>>, vector<1x8x8x8xbf16>
      %10 = vector.shape_cast %9 : vector<1x8x8x8xbf16> to vector<8x8x8xbf16>
      %c0_6 = arith.constant 0 : index
      %c0_7 = arith.constant 0 : index
      %c0_8 = arith.constant 0 : index
      %c0_9 = arith.constant 0 : index
      %11 = vector.load %arg4[%c0_6, %c0_7, %c0_8, %c0_9] : memref<1x8x8x8xbf16, #tpu.memory_space<vmem>>, vector<1x8x8x8xbf16>
      %12 = vector.shape_cast %11 : vector<1x8x8x8xbf16> to vector<8x8x8xbf16>
      "tpu.trace_start"() <{level = 10 : i32, message = "hqd,hkd->hqk"}> : () -> ()
      %cst = arith.constant dense<0.000000e+00> : vector<8x8x8xf32>
      %13 = tpu.matmul %10, %12, %cst {dimension_numbers = #tpu.dot_dimension_numbers<[2], [2], [1], [1], [0, 0, 0, 1, 1, 1], [0], [0]>} : vector<8x8x8xbf16>, vector<8x8x8xbf16>, vector<8x8x8xf32> -> vector<8x8x8xf32>
      "tpu.trace_stop"() : () -> ()
      %c8_i32 = arith.constant 8 : i32
      %14 = arith.muli %arg1, %c8_i32 : i32
      %15 = tpu.iota {dimensions = array<i32: 0>} : vector<8x8xi32>
      %16 = vector.broadcast %14 : i32 to vector<8x8xi32>
      %17 = arith.addi %16, %15 : vector<8x8xi32>
      %c8_i32_10 = arith.constant 8 : i32
      %18 = arith.muli %arg2, %c8_i32_10 : i32
      %19 = tpu.iota {dimensions = array<i32: 1>} : vector<8x8xi32>
      %20 = vector.broadcast %18 : i32 to vector<8x8xi32>
      %21 = arith.addi %20, %19 : vector<8x8xi32>
      %22 = arith.cmpi sgt, %21, %17 : vector<8x8xi32>
      %23 = vector.shape_cast %22 : vector<8x8xi1> to vector<1x8x8xi1>
      %cst_11 = arith.constant -1.000000e+30 : f32
      %24 = vector.shape_cast %23 : vector<1x8x8xi1> to vector<1x8x8xi1>
      %25 = vector.broadcast %24 : vector<1x8x8xi1> to vector<8x8x8xi1>
      %26 = vector.broadcast %cst_11 : f32 to vector<8x8x8xf32>
      %27 = arith.select %25, %26, %13 : vector<8x8x8xi1>, vector<8x8x8xf32>
      %c0_12 = arith.constant 0 : index
      %c0_13 = arith.constant 0 : index
      %28 = vector.load %arg9[%c0_12, %c0_13] : memref<8x8xf32, #tpu.memory_space<vmem>>, vector<8x8xf32>
      %cst_14 = arith.constant dense<0xFF800000> : vector<8x8xf32>
      %29 = vector.multi_reduction <maximumf>, %27, %cst_14 [2] : vector<8x8x8xf32> to vector<8x8xf32>
      %30 = arith.maximumf %28, %29 : vector<8x8xf32>
      %31 = arith.subf %28, %30 : vector<8x8xf32>
      %32 = math.exp %31 : vector<8x8xf32>
      %33 = vector.shape_cast %30 : vector<8x8xf32> to vector<8x8x1xf32>
      %34 = vector.broadcast %33 : vector<8x8x1xf32> to vector<8x8x8xf32>
      %35 = arith.subf %27, %34 : vector<8x8x8xf32>
      %36 = math.exp %35 : vector<8x8x8xf32>
      %c0_15 = arith.constant 0 : index
      %c0_16 = arith.constant 0 : index
      %37 = vector.load %arg10[%c0_15, %c0_16] : memref<8x8xf32, #tpu.memory_space<vmem>>, vector<8x8xf32>
      %38 = arith.mulf %32, %37 : vector<8x8xf32>
      %cst_17 = arith.constant dense<0.000000e+00> : vector<8x8xf32>
      %39 = vector.multi_reduction <add>, %36, %cst_17 [2] : vector<8x8x8xf32> to vector<8x8xf32>
      %40 = arith.addf %38, %39 : vector<8x8xf32>
      %c0_18 = arith.constant 0 : index
      %c0_19 = arith.constant 0 : index
      %41 = vector.load %arg10[%c0_18, %c0_19] : memref<8x8xf32, #tpu.memory_space<vmem>>, vector<8x8xf32>
      tpu.vector_store %arg10[%c0_18, %c0_19], %40 {strides = array<i32>} : memref<8x8xf32, #tpu.memory_space<vmem>>, vector<8x8xf32>,
      %42 = vector.shape_cast %32 : vector<8x8xf32> to vector<8x8x1xf32>
      %c0_20 = arith.constant 0 : index
      %c0_21 = arith.constant 0 : index
      %c0_22 = arith.constant 0 : index
      %43 = vector.load %arg11[%c0_20, %c0_21, %c0_22] : memref<8x8x8xf32, #tpu.memory_space<vmem>>, vector<8x8x8xf32>
      %44 = vector.broadcast %42 : vector<8x8x1xf32> to vector<8x8x8xf32>
      %45 = arith.mulf %44, %43 : vector<8x8x8xf32>
      %46 = arith.truncf %36 : vector<8x8x8xf32> to vector<8x8x8xbf16>
      %c0_23 = arith.constant 0 : index
      %c0_24 = arith.constant 0 : index
      %c0_25 = arith.constant 0 : index
      %c0_26 = arith.constant 0 : index
      %47 = vector.load %arg5[%c0_23, %c0_24, %c0_25, %c0_26] : memref<1x8x8x8xbf16, #tpu.memory_space<vmem>>, vector<1x8x8x8xbf16>
      %48 = vector.shape_cast %47 : vector<1x8x8x8xbf16> to vector<8x8x8xbf16>
      "tpu.trace_start"() <{level = 10 : i32, message = "hqk,hkd->hqd"}> : () -> ()
      %cst_27 = arith.constant dense<0.000000e+00> : vector<8x8x8xf32>
      %49 = tpu.matmul %46, %48, %cst_27 {dimension_numbers = #tpu.dot_dimension_numbers<[2], [1], [1], [2], [0, 0, 0, 1, 1, 2], [0], [0]>} : vector<8x8x8xbf16>, vector<8x8x8xbf16>, vector<8x8x8xf32> -> vector<8x8x8xf32>
      "tpu.trace_stop"() : () -> ()
      %50 = arith.addf %45, %49 : vector<8x8x8xf32>
      %c0_28 = arith.constant 0 : index
      %c0_29 = arith.constant 0 : index
      %c0_30 = arith.constant 0 : index
      %51 = vector.load %arg11[%c0_28, %c0_29, %c0_30] : memref<8x8x8xf32, #tpu.memory_space<vmem>>, vector<8x8x8xf32>
      tpu.vector_store %arg11[%c0_28, %c0_29, %c0_30], %50 {strides = array<i32>} : memref<8x8x8xf32, #tpu.memory_space<vmem>>, vector<8x8x8xf32>,
      %c0_31 = arith.constant 0 : index
      %c0_32 = arith.constant 0 : index
      %52 = vector.load %arg9[%c0_31, %c0_32] : memref<8x8xf32, #tpu.memory_space<vmem>>, vector<8x8xf32>
      tpu.vector_store %arg9[%c0_31, %c0_32], %30 {strides = array<i32>} : memref<8x8xf32, #tpu.memory_space<vmem>>, vector<8x8xf32>,
      %c0_33 = arith.constant 0 : index
      %c0_34 = arith.constant 0 : index
      %53 = vector.load %arg10[%c0_33, %c0_34] : memref<8x8xf32, #tpu.memory_space<vmem>>, vector<8x8xf32>
      %54 = tpu.reciprocal %53 {approx = true} : vector<8x8xf32> -> vector<8x8xf32>
      %c0_35 = arith.constant 0 : index
      %c0_36 = arith.constant 0 : index
      %c0_37 = arith.constant 0 : index
      %55 = vector.load %arg11[%c0_35, %c0_36, %c0_37] : memref<8x8x8xf32, #tpu.memory_space<vmem>>, vector<8x8x8xf32>
      %56 = vector.shape_cast %54 : vector<8x8xf32> to vector<8x8x1xf32>
      %57 = vector.broadcast %56 : vector<8x8x1xf32> to vector<8x8x8xf32>
      %58 = arith.mulf %55, %57 : vector<8x8x8xf32>
      %59 = arith.truncf %58 : vector<8x8x8xf32> to vector<8x8x8xbf16>
      %cst_38 = arith.constant 0.000000e+00 : f32
      %60 = vector.broadcast %cst_38 : f32 to vector<8x64xf32>
      %61 = vector.extract_strided_slice %59 {offsets = [0, 0, 0], sizes = [1, 8, 8], strides = [1, 1, 1]} : vector<8x8x8xbf16> to vector<1x8x8xbf16>
      %62 = vector.shape_cast %61 : vector<1x8x8xbf16> to vector<8x8xbf16>
      %c0_39 = arith.constant 0 : index
      %c0_40 = arith.constant 0 : index
      %c0_41 = arith.constant 0 : index
      %63 = vector.load %arg6[%c0_39, %c0_40, %c0_41] : memref<8x8x64xbf16, #tpu.memory_space<vmem>>, vector<1x8x64xbf16>
      %64 = vector.shape_cast %63 : vector<1x8x64xbf16> to vector<8x64xbf16>
      %cst_42 = arith.constant dense<0.000000e+00> : vector<8x64xf32>
      %65 = tpu.matmul %62, %64, %cst_42 {dimension_numbers = #tpu.dot_dimension_numbers<[1], [0], [0], [1], [0, 0, 1, 1], [], []>} : vector<8x8xbf16>, vector<8x64xbf16>, vector<8x64xf32> -> vector<8x64xf32>
      %66 = arith.addf %60, %65 : vector<8x64xf32>
      %67 = vector.extract_strided_slice %59 {offsets = [1, 0, 0], sizes = [1, 8, 8], strides = [1, 1, 1]} : vector<8x8x8xbf16> to vector<1x8x8xbf16>
      %68 = vector.shape_cast %67 : vector<1x8x8xbf16> to vector<8x8xbf16>
      %c1 = arith.constant 1 : index
      %c0_43 = arith.constant 0 : index
      %c0_44 = arith.constant 0 : index
      %69 = vector.load %arg6[%c1, %c0_43, %c0_44] : memref<8x8x64xbf16, #tpu.memory_space<vmem>>, vector<1x8x64xbf16>
      %70 = vector.shape_cast %69 : vector<1x8x64xbf16> to vector<8x64xbf16>
      %cst_45 = arith.constant dense<0.000000e+00> : vector<8x64xf32>
      %71 = tpu.matmul %68, %70, %cst_45 {dimension_numbers = #tpu.dot_dimension_numbers<[1], [0], [0], [1], [0, 0, 1, 1], [], []>} : vector<8x8xbf16>, vector<8x64xbf16>, vector<8x64xf32> -> vector<8x64xf32>
      %72 = arith.addf %66, %71 : vector<8x64xf32>
      %73 = vector.extract_strided_slice %59 {offsets = [2, 0, 0], sizes = [1, 8, 8], strides = [1, 1, 1]} : vector<8x8x8xbf16> to vector<1x8x8xbf16>
      %74 = vector.shape_cast %73 : vector<1x8x8xbf16> to vector<8x8xbf16>
      %c2 = arith.constant 2 : index
      %c0_46 = arith.constant 0 : index
      %c0_47 = arith.constant 0 : index
      %75 = vector.load %arg6[%c2, %c0_46, %c0_47] : memref<8x8x64xbf16, #tpu.memory_space<vmem>>, vector<1x8x64xbf16>
      %76 = vector.shape_cast %75 : vector<1x8x64xbf16> to vector<8x64xbf16>
      %cst_48 = arith.constant dense<0.000000e+00> : vector<8x64xf32>
      %77 = tpu.matmul %74, %76, %cst_48 {dimension_numbers = #tpu.dot_dimension_numbers<[1], [0], [0], [1], [0, 0, 1, 1], [], []>} : vector<8x8xbf16>, vector<8x64xbf16>, vector<8x64xf32> -> vector<8x64xf32>
      %78 = arith.addf %72, %77 : vector<8x64xf32>
      %79 = vector.extract_strided_slice %59 {offsets = [3, 0, 0], sizes = [1, 8, 8], strides = [1, 1, 1]} : vector<8x8x8xbf16> to vector<1x8x8xbf16>
      %80 = vector.shape_cast %79 : vector<1x8x8xbf16> to vector<8x8xbf16>
      %c3 = arith.constant 3 : index
      %c0_49 = arith.constant 0 : index
      %c0_50 = arith.constant 0 : index
      %81 = vector.load %arg6[%c3, %c0_49, %c0_50] : memref<8x8x64xbf16, #tpu.memory_space<vmem>>, vector<1x8x64xbf16>
      %82 = vector.shape_cast %81 : vector<1x8x64xbf16> to vector<8x64xbf16>
      %cst_51 = arith.constant dense<0.000000e+00> : vector<8x64xf32>
      %83 = tpu.matmul %80, %82, %cst_51 {dimension_numbers = #tpu.dot_dimension_numbers<[1], [0], [0], [1], [0, 0, 1, 1], [], []>} : vector<8x8xbf16>, vector<8x64xbf16>, vector<8x64xf32> -> vector<8x64xf32>
      %84 = arith.addf %78, %83 : vector<8x64xf32>
      %85 = vector.extract_strided_slice %59 {offsets = [4, 0, 0], sizes = [1, 8, 8], strides = [1, 1, 1]} : vector<8x8x8xbf16> to vector<1x8x8xbf16>
      %86 = vector.shape_cast %85 : vector<1x8x8xbf16> to vector<8x8xbf16>
      %c4 = arith.constant 4 : index
      %c0_52 = arith.constant 0 : index
      %c0_53 = arith.constant 0 : index
      %87 = vector.load %arg6[%c4, %c0_52, %c0_53] : memref<8x8x64xbf16, #tpu.memory_space<vmem>>, vector<1x8x64xbf16>
      %88 = vector.shape_cast %87 : vector<1x8x64xbf16> to vector<8x64xbf16>
      %cst_54 = arith.constant dense<0.000000e+00> : vector<8x64xf32>
      %89 = tpu.matmul %86, %88, %cst_54 {dimension_numbers = #tpu.dot_dimension_numbers<[1], [0], [0], [1], [0, 0, 1, 1], [], []>} : vector<8x8xbf16>, vector<8x64xbf16>, vector<8x64xf32> -> vector<8x64xf32>
      %90 = arith.addf %84, %89 : vector<8x64xf32>
      %91 = vector.extract_strided_slice %59 {offsets = [5, 0, 0], sizes = [1, 8, 8], strides = [1, 1, 1]} : vector<8x8x8xbf16> to vector<1x8x8xbf16>
      %92 = vector.shape_cast %91 : vector<1x8x8xbf16> to vector<8x8xbf16>
      %c5 = arith.constant 5 : index
      %c0_55 = arith.constant 0 : index
      %c0_56 = arith.constant 0 : index
      %93 = vector.load %arg6[%c5, %c0_55, %c0_56] : memref<8x8x64xbf16, #tpu.memory_space<vmem>>, vector<1x8x64xbf16>
      %94 = vector.shape_cast %93 : vector<1x8x64xbf16> to vector<8x64xbf16>
      %cst_57 = arith.constant dense<0.000000e+00> : vector<8x64xf32>
      %95 = tpu.matmul %92, %94, %cst_57 {dimension_numbers = #tpu.dot_dimension_numbers<[1], [0], [0], [1], [0, 0, 1, 1], [], []>} : vector<8x8xbf16>, vector<8x64xbf16>, vector<8x64xf32> -> vector<8x64xf32>
      %96 = arith.addf %90, %95 : vector<8x64xf32>
      %97 = vector.extract_strided_slice %59 {offsets = [6, 0, 0], sizes = [1, 8, 8], strides = [1, 1, 1]} : vector<8x8x8xbf16> to vector<1x8x8xbf16>
      %98 = vector.shape_cast %97 : vector<1x8x8xbf16> to vector<8x8xbf16>
      %c6 = arith.constant 6 : index
      %c0_58 = arith.constant 0 : index
      %c0_59 = arith.constant 0 : index
      %99 = vector.load %arg6[%c6, %c0_58, %c0_59] : memref<8x8x64xbf16, #tpu.memory_space<vmem>>, vector<1x8x64xbf16>
      %100 = vector.shape_cast %99 : vector<1x8x64xbf16> to vector<8x64xbf16>
      %cst_60 = arith.constant dense<0.000000e+00> : vector<8x64xf32>
      %101 = tpu.matmul %98, %100, %cst_60 {dimension_numbers = #tpu.dot_dimension_numbers<[1], [0], [0], [1], [0, 0, 1, 1], [], []>} : vector<8x8xbf16>, vector<8x64xbf16>, vector<8x64xf32> -> vector<8x64xf32>
      %102 = arith.addf %96, %101 : vector<8x64xf32>
      %103 = vector.extract_strided_slice %59 {offsets = [7, 0, 0], sizes = [1, 8, 8], strides = [1, 1, 1]} : vector<8x8x8xbf16> to vector<1x8x8xbf16>
      %104 = vector.shape_cast %103 : vector<1x8x8xbf16> to vector<8x8xbf16>
      %c7 = arith.constant 7 : index
      %c0_61 = arith.constant 0 : index
      %c0_62 = arith.constant 0 : index
      %105 = vector.load %arg6[%c7, %c0_61, %c0_62] : memref<8x8x64xbf16, #tpu.memory_space<vmem>>, vector<1x8x64xbf16>
      %106 = vector.shape_cast %105 : vector<1x8x64xbf16> to vector<8x64xbf16>
      %cst_63 = arith.constant dense<0.000000e+00> : vector<8x64xf32>
      %107 = tpu.matmul %104, %106, %cst_63 {dimension_numbers = #tpu.dot_dimension_numbers<[1], [0], [0], [1], [0, 0, 1, 1], [], []>} : vector<8x8xbf16>, vector<8x64xbf16>, vector<8x64xf32> -> vector<8x64xf32>
      %108 = arith.addf %102, %107 : vector<8x64xf32>
      %c0_64 = arith.constant 0 : index
      %c0_65 = arith.constant 0 : index
      %109 = vector.load %arg7[%c0_64, %c0_65] : memref<1x64xf32, #tpu.memory_space<vmem>>, vector<1x64xf32>
      %110 = vector.broadcast %109 : vector<1x64xf32> to vector<8x64xf32>
      %111 = arith.addf %108, %110 : vector<8x64xf32>
      %112 = arith.truncf %111 : vector<8x64xf32> to vector<8x64xbf16>
      %c0_66 = arith.constant 0 : index
      %c0_67 = arith.constant 0 : index
      %c0_68 = arith.constant 0 : index
      %113 = vector.load %arg8[%c0_66, %c0_67, %c0_68] : memref<1x8x64xbf16, #tpu.memory_space<vmem>>, vector<1x8x64xbf16>
      %114 = vector.shape_cast %113 : vector<1x8x64xbf16> to vector<8x64xbf16>
      %115 = vector.shape_cast %112 : vector<8x64xbf16> to vector<1x8x64xbf16>
      tpu.vector_store %arg8[%c0_66, %c0_67, %c0_68], %115 {strides = array<i32>} : memref<1x8x64xbf16, #tpu.memory_space<vmem>>, vector<1x8x64xbf16>,
    } else {
    }
    return
  }
  func.func @transform_0(%arg0: i32, %arg1: i32, %arg2: i32) -> (i32, i32, i32, i32) {
    %c0_i32 = arith.constant 0 : i32
    %c0_i32_0 = arith.constant 0 : i32
    %c0_i32_1 = arith.constant 0 : i32
    return %arg0, %c0_i32, %arg1, %c0_i32_0 : i32, i32, i32, i32
  }
  func.func @transform_1(%arg0: i32, %arg1: i32, %arg2: i32) -> (i32, i32, i32, i32) {
    %0 = arith.minsi %arg1, %arg2 : i32
    %c0_i32 = arith.constant 0 : i32
    %c0_i32_0 = arith.constant 0 : i32
    %c0_i32_1 = arith.constant 0 : i32
    return %arg0, %c0_i32, %0, %c0_i32_0 : i32, i32, i32, i32
  }
  func.func @transform_2(%arg0: i32, %arg1: i32, %arg2: i32) -> (i32, i32, i32, i32) {
    %0 = arith.minsi %arg1, %arg2 : i32
    %c0_i32 = arith.constant 0 : i32
    %c0_i32_0 = arith.constant 0 : i32
    %c0_i32_1 = arith.constant 0 : i32
    return %arg0, %c0_i32, %0, %c0_i32_0 : i32, i32, i32, i32
  }
  func.func @transform_3(%arg0: i32, %arg1: i32, %arg2: i32) -> (i32, i32, i32) {
    %c0_i32 = arith.constant 0 : i32
    %c0_i32_0 = arith.constant 0 : i32
    %c0_i32_1 = arith.constant 0 : i32
    %c0_i32_2 = arith.constant 0 : i32
    return %c0_i32, %c0_i32_0, %c0_i32_1 : i32, i32, i32
  }
  func.func @transform_4(%arg0: i32, %arg1: i32, %arg2: i32) -> (i32, i32) {
    %c0_i32 = arith.constant 0 : i32
    %c0_i32_0 = arith.constant 0 : i32
    %c0_i32_1 = arith.constant 0 : i32
    return %c0_i32, %c0_i32_0 : i32, i32
  }
  func.func @transform_5(%arg0: i32, %arg1: i32, %arg2: i32) -> (i32, i32, i32) {
    %c0_i32 = arith.constant 0 : i32
    %c0_i32_0 = arith.constant 0 : i32
    return %arg0, %arg1, %c0_i32 : i32, i32, i32
  }
}

module attributes {stable_mosaic.version = 11 : i64} {
  func.func @post_attn_ffn_kernel(%arg0: i32, %arg1: i32, %arg2: memref<16x64xbf16, #tpu.memory_space<vmem>>, %arg3: memref<16x64xf32, #tpu.memory_space<vmem>>, %arg4: memref<1x64xf32, #tpu.memory_space<vmem>>, %arg5: memref<1x64xf32, #tpu.memory_space<vmem>>, %arg6: memref<64x256xbf16, #tpu.memory_space<vmem>>, %arg7: memref<1x256xf32, #tpu.memory_space<vmem>>, %arg8: memref<256x64xbf16, #tpu.memory_space<vmem>>, %arg9: memref<1x64xf32, #tpu.memory_space<vmem>>, %arg10: memref<16x64xf32, #tpu.memory_space<vmem>>, %arg11: memref<16x64xf32, #tpu.memory_space<vmem>>, %arg12: memref<16x64xbf16, #tpu.memory_space<vmem>>, %arg13: memref<16x64xf32, #tpu.memory_space<vmem>>) attributes {dimension_semantics = [#tpu.dimension_semantics<parallel>, #tpu.dimension_semantics<arbitrary>], iteration_bounds = array<i64: 1, 1>, scalar_prefetch = 0 : i64, scratch_operands = 3 : i64, tpu.core_type = #tpu.core_type<tc>, window_params = [{transform_indices = @transform_0, window_bounds = array<i64: 16, 64>}, {transform_indices = @transform_1, window_bounds = array<i64: 16, 64>}, {pipeline_mode = #tpu.pipeline_mode<synchronous>, transform_indices = @transform_2, window_bounds = array<i64: 1, 64>}, {pipeline_mode = #tpu.pipeline_mode<synchronous>, transform_indices = @transform_3, window_bounds = array<i64: 1, 64>}, {transform_indices = @transform_4, window_bounds = array<i64: 64, 256>}, {transform_indices = @transform_5, window_bounds = array<i64: 1, 256>}, {transform_indices = @transform_6, window_bounds = array<i64: 256, 64>}, {pipeline_mode = #tpu.pipeline_mode<synchronous>, transform_indices = @transform_7, window_bounds = array<i64: 1, 64>}, {transform_indices = @transform_8, window_bounds = array<i64: 16, 64>}]} {
    %c0_i32 = arith.constant 0 : i32
    %0 = arith.cmpi eq, %arg1, %c0_i32 : i32
    %1 = arith.extui %0 : i1 to i32
    %c0_i32_0 = arith.constant 0 : i32
    %2 = arith.cmpi ne, %1, %c0_i32_0 : i32
    scf.if %2 {
      %c0_16 = arith.constant 0 : index
      %c0_17 = arith.constant 0 : index
      %20 = vector.load %arg3[%c0_16, %c0_17] : memref<16x64xf32, #tpu.memory_space<vmem>>, vector<16x64xf32>
      %c0_18 = arith.constant 0 : index
      %c0_19 = arith.constant 0 : index
      %21 = vector.load %arg2[%c0_18, %c0_19] : memref<16x64xbf16, #tpu.memory_space<vmem>>, vector<16x64xbf16>
      %22 = arith.extf %21 : vector<16x64xbf16> to vector<16x64xf32>
      %23 = arith.addf %20, %22 : vector<16x64xf32>
      %c0_20 = arith.constant 0 : index
      %c0_21 = arith.constant 0 : index
      %24 = vector.load %arg11[%c0_20, %c0_21] : memref<16x64xf32, #tpu.memory_space<vmem>>, vector<16x64xf32>
      tpu.vector_store %arg11[%c0_20, %c0_21], %23 {strides = array<i32>} : memref<16x64xf32, #tpu.memory_space<vmem>>, vector<16x64xf32>,
      %c0_22 = arith.constant 0 : index
      %c0_23 = arith.constant 0 : index
      %25 = vector.load %arg4[%c0_22, %c0_23] : memref<1x64xf32, #tpu.memory_space<vmem>>, vector<1x64xf32>
      %c0_24 = arith.constant 0 : index
      %c0_25 = arith.constant 0 : index
      %26 = vector.load %arg5[%c0_24, %c0_25] : memref<1x64xf32, #tpu.memory_space<vmem>>, vector<1x64xf32>
      %cst_26 = arith.constant dense<0.000000e+00> : vector<16xf32>
      %27 = vector.multi_reduction <add>, %23, %cst_26 [1] : vector<16x64xf32> to vector<16xf32>
      %28 = vector.shape_cast %27 : vector<16xf32> to vector<16x1xf32>
      %cst_27 = arith.constant 6.400000e+01 : f32
      %29 = vector.broadcast %cst_27 : f32 to vector<16x1xf32>
      %30 = arith.divf %28, %29 : vector<16x1xf32>
      %31 = vector.broadcast %30 : vector<16x1xf32> to vector<16x64xf32>
      %32 = arith.subf %23, %31 : vector<16x64xf32>
      %33 = arith.mulf %32, %32 : vector<16x64xf32>
      %cst_28 = arith.constant dense<0.000000e+00> : vector<16xf32>
      %34 = vector.multi_reduction <add>, %33, %cst_28 [1] : vector<16x64xf32> to vector<16xf32>
      %35 = vector.shape_cast %34 : vector<16xf32> to vector<16x1xf32>
      %cst_29 = arith.constant 6.400000e+01 : f32
      %36 = vector.broadcast %cst_29 : f32 to vector<16x1xf32>
      %37 = arith.divf %35, %36 : vector<16x1xf32>
      %38 = vector.broadcast %30 : vector<16x1xf32> to vector<16x64xf32>
      %39 = arith.subf %23, %38 : vector<16x64xf32>
      %cst_30 = arith.constant 9.99999974E-6 : f32
      %40 = vector.broadcast %cst_30 : f32 to vector<16x1xf32>
      %41 = arith.addf %37, %40 : vector<16x1xf32>
      %42 = math.rsqrt %41 : vector<16x1xf32>
      %43 = vector.broadcast %42 : vector<16x1xf32> to vector<16x64xf32>
      %44 = arith.mulf %39, %43 : vector<16x64xf32>
      %45 = vector.broadcast %25 : vector<1x64xf32> to vector<16x64xf32>
      %46 = arith.mulf %44, %45 : vector<16x64xf32>
      %47 = vector.broadcast %26 : vector<1x64xf32> to vector<16x64xf32>
      %48 = arith.addf %46, %47 : vector<16x64xf32>
      %49 = arith.truncf %48 : vector<16x64xf32> to vector<16x64xbf16>
      %c0_31 = arith.constant 0 : index
      %c0_32 = arith.constant 0 : index
      %50 = vector.load %arg12[%c0_31, %c0_32] : memref<16x64xbf16, #tpu.memory_space<vmem>>, vector<16x64xbf16>
      tpu.vector_store %arg12[%c0_31, %c0_32], %49 {strides = array<i32>} : memref<16x64xbf16, #tpu.memory_space<vmem>>, vector<16x64xbf16>,
      %cst_33 = arith.constant 0.000000e+00 : f32
      %51 = vector.broadcast %cst_33 : f32 to vector<16x64xf32>
      %c0_34 = arith.constant 0 : index
      %c0_35 = arith.constant 0 : index
      %52 = vector.load %arg13[%c0_34, %c0_35] : memref<16x64xf32, #tpu.memory_space<vmem>>, vector<16x64xf32>
      tpu.vector_store %arg13[%c0_34, %c0_35], %51 {strides = array<i32>} : memref<16x64xf32, #tpu.memory_space<vmem>>, vector<16x64xf32>,
    } else {
    }
    %c0 = arith.constant 0 : index
    %c0_1 = arith.constant 0 : index
    %3 = vector.load %arg12[%c0, %c0_1] : memref<16x64xbf16, #tpu.memory_space<vmem>>, vector<16x64xbf16>
    %c0_2 = arith.constant 0 : index
    %c0_3 = arith.constant 0 : index
    %4 = vector.load %arg6[%c0_2, %c0_3] : memref<64x256xbf16, #tpu.memory_space<vmem>>, vector<64x256xbf16>
    %cst = arith.constant dense<0.000000e+00> : vector<16x256xf32>
    %5 = tpu.matmul %3, %4, %cst {dimension_numbers = #tpu.dot_dimension_numbers<[1], [0], [0], [1], [0, 0, 1, 1], [], []>} : vector<16x64xbf16>, vector<64x256xbf16>, vector<16x256xf32> -> vector<16x256xf32>
    %c0_4 = arith.constant 0 : index
    %c0_5 = arith.constant 0 : index
    %6 = vector.load %arg7[%c0_4, %c0_5] : memref<1x256xf32, #tpu.memory_space<vmem>>, vector<1x256xf32>
    %7 = vector.broadcast %6 : vector<1x256xf32> to vector<16x256xf32>
    %8 = arith.addf %5, %7 : vector<16x256xf32>
    %cst_6 = arith.constant 0.000000e+00 : f32
    %9 = vector.broadcast %cst_6 : f32 to vector<16x256xf32>
    %10 = arith.maximumf %8, %9 : vector<16x256xf32>
    %11 = arith.truncf %10 : vector<16x256xf32> to vector<16x256xbf16>
    %c0_7 = arith.constant 0 : index
    %c0_8 = arith.constant 0 : index
    %12 = vector.load %arg13[%c0_7, %c0_8] : memref<16x64xf32, #tpu.memory_space<vmem>>, vector<16x64xf32>
    %c0_9 = arith.constant 0 : index
    %c0_10 = arith.constant 0 : index
    %13 = vector.load %arg8[%c0_9, %c0_10] : memref<256x64xbf16, #tpu.memory_space<vmem>>, vector<256x64xbf16>
    %cst_11 = arith.constant dense<0.000000e+00> : vector<16x64xf32>
    %14 = tpu.matmul %11, %13, %cst_11 {dimension_numbers = #tpu.dot_dimension_numbers<[1], [0], [0], [1], [0, 0, 1, 1], [], []>} : vector<16x256xbf16>, vector<256x64xbf16>, vector<16x64xf32> -> vector<16x64xf32>
    %15 = arith.addf %12, %14 : vector<16x64xf32>
    %c0_12 = arith.constant 0 : index
    %c0_13 = arith.constant 0 : index
    %16 = vector.load %arg13[%c0_12, %c0_13] : memref<16x64xf32, #tpu.memory_space<vmem>>, vector<16x64xf32>
    tpu.vector_store %arg13[%c0_12, %c0_13], %15 {strides = array<i32>} : memref<16x64xf32, #tpu.memory_space<vmem>>, vector<16x64xf32>,
    %c0_i32_14 = arith.constant 0 : i32
    %17 = arith.cmpi eq, %arg1, %c0_i32_14 : i32
    %18 = arith.extui %17 : i1 to i32
    %c0_i32_15 = arith.constant 0 : i32
    %19 = arith.cmpi ne, %18, %c0_i32_15 : i32
    scf.if %19 {
      %c0_16 = arith.constant 0 : index
      %c0_17 = arith.constant 0 : index
      %20 = vector.load %arg11[%c0_16, %c0_17] : memref<16x64xf32, #tpu.memory_space<vmem>>, vector<16x64xf32>
      %c0_18 = arith.constant 0 : index
      %c0_19 = arith.constant 0 : index
      %21 = vector.load %arg13[%c0_18, %c0_19] : memref<16x64xf32, #tpu.memory_space<vmem>>, vector<16x64xf32>
      %22 = arith.addf %20, %21 : vector<16x64xf32>
      %c0_20 = arith.constant 0 : index
      %c0_21 = arith.constant 0 : index
      %23 = vector.load %arg9[%c0_20, %c0_21] : memref<1x64xf32, #tpu.memory_space<vmem>>, vector<1x64xf32>
      %24 = vector.broadcast %23 : vector<1x64xf32> to vector<16x64xf32>
      %25 = arith.addf %22, %24 : vector<16x64xf32>
      %c0_22 = arith.constant 0 : index
      %c0_23 = arith.constant 0 : index
      %26 = vector.load %arg10[%c0_22, %c0_23] : memref<16x64xf32, #tpu.memory_space<vmem>>, vector<16x64xf32>
      tpu.vector_store %arg10[%c0_22, %c0_23], %25 {strides = array<i32>} : memref<16x64xf32, #tpu.memory_space<vmem>>, vector<16x64xf32>,
    } else {
    }
    return
  }
  func.func @transform_0(%arg0: i32, %arg1: i32) -> (i32, i32) {
    %c0_i32 = arith.constant 0 : i32
    %c0_i32_0 = arith.constant 0 : i32
    return %arg0, %c0_i32 : i32, i32
  }
  func.func @transform_1(%arg0: i32, %arg1: i32) -> (i32, i32) {
    %c0_i32 = arith.constant 0 : i32
    %c0_i32_0 = arith.constant 0 : i32
    return %arg0, %c0_i32 : i32, i32
  }
  func.func @transform_2(%arg0: i32, %arg1: i32) -> (i32, i32) {
    %c0_i32 = arith.constant 0 : i32
    %c0_i32_0 = arith.constant 0 : i32
    %c0_i32_1 = arith.constant 0 : i32
    return %c0_i32, %c0_i32_0 : i32, i32
  }
  func.func @transform_3(%arg0: i32, %arg1: i32) -> (i32, i32) {
    %c0_i32 = arith.constant 0 : i32
    %c0_i32_0 = arith.constant 0 : i32
    %c0_i32_1 = arith.constant 0 : i32
    return %c0_i32, %c0_i32_0 : i32, i32
  }
  func.func @transform_4(%arg0: i32, %arg1: i32) -> (i32, i32) {
    %c0_i32 = arith.constant 0 : i32
    %c0_i32_0 = arith.constant 0 : i32
    return %c0_i32, %arg1 : i32, i32
  }
  func.func @transform_5(%arg0: i32, %arg1: i32) -> (i32, i32) {
    %c0_i32 = arith.constant 0 : i32
    %c0_i32_0 = arith.constant 0 : i32
    return %c0_i32, %arg1 : i32, i32
  }
  func.func @transform_6(%arg0: i32, %arg1: i32) -> (i32, i32) {
    %c0_i32 = arith.constant 0 : i32
    %c0_i32_0 = arith.constant 0 : i32
    return %arg1, %c0_i32 : i32, i32
  }
  func.func @transform_7(%arg0: i32, %arg1: i32) -> (i32, i32) {
    %c0_i32 = arith.constant 0 : i32
    %c0_i32_0 = arith.constant 0 : i32
    %c0_i32_1 = arith.constant 0 : i32
    return %c0_i32, %c0_i32_0 : i32, i32
  }
  func.func @transform_8(%arg0: i32, %arg1: i32) -> (i32, i32) {
    %c0_i32 = arith.constant 0 : i32
    %c0_i32_0 = arith.constant 0 : i32
    return %arg0, %c0_i32 : i32, i32
  }
}

module attributes {stable_mosaic.version = 11 : i64} {
  func.func @final_ln_kernel(%arg0: i32, %arg1: memref<16x64xf32, #tpu.memory_space<vmem>>, %arg2: memref<1x64xf32, #tpu.memory_space<vmem>>, %arg3: memref<1x64xf32, #tpu.memory_space<vmem>>, %arg4: memref<16x64xbf16, #tpu.memory_space<vmem>>) attributes {dimension_semantics = [#tpu.dimension_semantics<parallel>], iteration_bounds = array<i64: 1>, scalar_prefetch = 0 : i64, scratch_operands = 0 : i64, tpu.core_type = #tpu.core_type<tc>, window_params = [{transform_indices = @transform_0, window_bounds = array<i64: 16, 64>}, {pipeline_mode = #tpu.pipeline_mode<synchronous>, transform_indices = @transform_1, window_bounds = array<i64: 1, 64>}, {pipeline_mode = #tpu.pipeline_mode<synchronous>, transform_indices = @transform_2, window_bounds = array<i64: 1, 64>}, {transform_indices = @transform_3, window_bounds = array<i64: 16, 64>}]} {
    %c0 = arith.constant 0 : index
    %c0_0 = arith.constant 0 : index
    %0 = vector.load %arg1[%c0, %c0_0] : memref<16x64xf32, #tpu.memory_space<vmem>>, vector<16x64xf32>
    %c0_1 = arith.constant 0 : index
    %c0_2 = arith.constant 0 : index
    %1 = vector.load %arg2[%c0_1, %c0_2] : memref<1x64xf32, #tpu.memory_space<vmem>>, vector<1x64xf32>
    %c0_3 = arith.constant 0 : index
    %c0_4 = arith.constant 0 : index
    %2 = vector.load %arg3[%c0_3, %c0_4] : memref<1x64xf32, #tpu.memory_space<vmem>>, vector<1x64xf32>
    %cst = arith.constant dense<0.000000e+00> : vector<16xf32>
    %3 = vector.multi_reduction <add>, %0, %cst [1] : vector<16x64xf32> to vector<16xf32>
    %4 = vector.shape_cast %3 : vector<16xf32> to vector<16x1xf32>
    %cst_5 = arith.constant 6.400000e+01 : f32
    %5 = vector.broadcast %cst_5 : f32 to vector<16x1xf32>
    %6 = arith.divf %4, %5 : vector<16x1xf32>
    %7 = vector.broadcast %6 : vector<16x1xf32> to vector<16x64xf32>
    %8 = arith.subf %0, %7 : vector<16x64xf32>
    %9 = arith.mulf %8, %8 : vector<16x64xf32>
    %cst_6 = arith.constant dense<0.000000e+00> : vector<16xf32>
    %10 = vector.multi_reduction <add>, %9, %cst_6 [1] : vector<16x64xf32> to vector<16xf32>
    %11 = vector.shape_cast %10 : vector<16xf32> to vector<16x1xf32>
    %cst_7 = arith.constant 6.400000e+01 : f32
    %12 = vector.broadcast %cst_7 : f32 to vector<16x1xf32>
    %13 = arith.divf %11, %12 : vector<16x1xf32>
    %14 = vector.broadcast %6 : vector<16x1xf32> to vector<16x64xf32>
    %15 = arith.subf %0, %14 : vector<16x64xf32>
    %cst_8 = arith.constant 9.99999974E-6 : f32
    %16 = vector.broadcast %cst_8 : f32 to vector<16x1xf32>
    %17 = arith.addf %13, %16 : vector<16x1xf32>
    %18 = math.rsqrt %17 : vector<16x1xf32>
    %19 = vector.broadcast %18 : vector<16x1xf32> to vector<16x64xf32>
    %20 = arith.mulf %15, %19 : vector<16x64xf32>
    %21 = vector.broadcast %1 : vector<1x64xf32> to vector<16x64xf32>
    %22 = arith.mulf %20, %21 : vector<16x64xf32>
    %23 = vector.broadcast %2 : vector<1x64xf32> to vector<16x64xf32>
    %24 = arith.addf %22, %23 : vector<16x64xf32>
    %25 = arith.truncf %24 : vector<16x64xf32> to vector<16x64xbf16>
    %c0_9 = arith.constant 0 : index
    %c0_10 = arith.constant 0 : index
    %26 = vector.load %arg4[%c0_9, %c0_10] : memref<16x64xbf16, #tpu.memory_space<vmem>>, vector<16x64xbf16>
    tpu.vector_store %arg4[%c0_9, %c0_10], %25 {strides = array<i32>} : memref<16x64xbf16, #tpu.memory_space<vmem>>, vector<16x64xbf16>,
    return
  }
  func.func @transform_0(%arg0: i32) -> (i32, i32) {
    %c0_i32 = arith.constant 0 : i32
    %c0_i32_0 = arith.constant 0 : i32
    return %arg0, %c0_i32 : i32, i32
  }
  func.func @transform_1(%arg0: i32) -> (i32, i32) {
    %c0_i32 = arith.constant 0 : i32
    %c0_i32_0 = arith.constant 0 : i32
    %c0_i32_1 = arith.constant 0 : i32
    return %c0_i32, %c0_i32_0 : i32, i32
  }
  func.func @transform_2(%arg0: i32) -> (i32, i32) {
    %c0_i32 = arith.constant 0 : i32
    %c0_i32_0 = arith.constant 0 : i32
    %c0_i32_1 = arith.constant 0 : i32
    return %c0_i32, %c0_i32_0 : i32, i32
  }
  func.func @transform_3(%arg0: i32) -> (i32, i32) {
    %c0_i32 = arith.constant 0 : i32
    %c0_i32_0 = arith.constant 0 : i32
    return %arg0, %c0_i32 : i32, i32
  }
}

module attributes {stable_mosaic.version = 11 : i64} {
  func.func @head_kernel(%arg0: i32, %arg1: i32, %arg2: memref<16x64xbf16, #tpu.memory_space<vmem>>, %arg3: memref<64x128xbf16, #tpu.memory_space<vmem>>, %arg4: memref<1x128xf32, #tpu.memory_space<vmem>>, %arg5: memref<16x128xf32, #tpu.memory_space<vmem>>) attributes {dimension_semantics = [#tpu.dimension_semantics<parallel>, #tpu.dimension_semantics<parallel>], iteration_bounds = array<i64: 1, 1>, scalar_prefetch = 0 : i64, scratch_operands = 0 : i64, tpu.core_type = #tpu.core_type<tc>, window_params = [{transform_indices = @transform_0, window_bounds = array<i64: 16, 64>}, {transform_indices = @transform_1, window_bounds = array<i64: 64, 128>}, {transform_indices = @transform_2, window_bounds = array<i64: 1, 128>}, {transform_indices = @transform_3, window_bounds = array<i64: 16, 128>}]} {
    %c0 = arith.constant 0 : index
    %c0_0 = arith.constant 0 : index
    %0 = vector.load %arg2[%c0, %c0_0] : memref<16x64xbf16, #tpu.memory_space<vmem>>, vector<16x64xbf16>
    %c0_1 = arith.constant 0 : index
    %c0_2 = arith.constant 0 : index
    %1 = vector.load %arg3[%c0_1, %c0_2] : memref<64x128xbf16, #tpu.memory_space<vmem>>, vector<64x128xbf16>
    %cst = arith.constant dense<0.000000e+00> : vector<16x128xf32>
    %2 = tpu.matmul %0, %1, %cst {dimension_numbers = #tpu.dot_dimension_numbers<[1], [0], [0], [1], [0, 0, 1, 1], [], []>} : vector<16x64xbf16>, vector<64x128xbf16>, vector<16x128xf32> -> vector<16x128xf32>
    %c0_3 = arith.constant 0 : index
    %c0_4 = arith.constant 0 : index
    %3 = vector.load %arg4[%c0_3, %c0_4] : memref<1x128xf32, #tpu.memory_space<vmem>>, vector<1x128xf32>
    %4 = vector.broadcast %3 : vector<1x128xf32> to vector<16x128xf32>
    %5 = arith.addf %2, %4 : vector<16x128xf32>
    %c0_5 = arith.constant 0 : index
    %c0_6 = arith.constant 0 : index
    %6 = vector.load %arg5[%c0_5, %c0_6] : memref<16x128xf32, #tpu.memory_space<vmem>>, vector<16x128xf32>
    tpu.vector_store %arg5[%c0_5, %c0_6], %5 {strides = array<i32>} : memref<16x128xf32, #tpu.memory_space<vmem>>, vector<16x128xf32>,
    return
  }
  func.func @transform_0(%arg0: i32, %arg1: i32) -> (i32, i32) {
    %c0_i32 = arith.constant 0 : i32
    %c0_i32_0 = arith.constant 0 : i32
    return %arg1, %c0_i32 : i32, i32
  }
  func.func @transform_1(%arg0: i32, %arg1: i32) -> (i32, i32) {
    %c0_i32 = arith.constant 0 : i32
    %c0_i32_0 = arith.constant 0 : i32
    return %c0_i32, %arg0 : i32, i32
  }
  func.func @transform_2(%arg0: i32, %arg1: i32) -> (i32, i32) {
    %c0_i32 = arith.constant 0 : i32
    %c0_i32_0 = arith.constant 0 : i32
    return %c0_i32, %arg0 : i32, i32
  }
  func.func @transform_3(%arg0: i32, %arg1: i32) -> (i32, i32) {
    %c0_i32 = arith.constant 0 : i32
    return %arg1, %arg0 : i32, i32
  }
}

</mosaic_0001>

<llo_original>
// kernel: gpt_forward.14
$region0: #{gpt_forward.14}
  #allocation0 [shape = 'u32[]', space=smem, size = 0x4, offset = 0x4, fixed_abs, tag = 'smem constant byte address 0x4 - core index']
  #allocation1 [shape = 'u32[144,128]{1,0:T(1,128)}', space=vmem, size = 0x12000, scoped, tag = 'internal scratch']
  %s0 = inlined_call_operand.vmem [shape: f32[16,64], index: 0, kind: input, shape index: {}]
  %s1 = inlined_call_operand.vmem [shape: f32[1,64], index: 1, kind: input, shape index: {}]
  %s2 = inlined_call_operand.vmem [shape: f32[1,64], index: 2, kind: input, shape index: {}]
  %s3 = inlined_call_operand.vmem [shape: bf16[16,64], index: 3, kind: output, shape index: {}]
  %s4 = sld [smem:[#allocation0]]
  $region22: #{gpt_forward.14} parent=0
    _
  %s6 = ssub.s32 1, %s4
  %s7 = scalar_select 0, %s6, %s4
  // Predicated region
  $region2: #{gpt_forward.14} parent=0 // pred_check
    _
  $region3: #{gpt_forward.14} parent=0 // pred_check_branch
    %9 = sbr.rel (0) target = $region5
  $region4: #{gpt_forward.14} parent=0 // pred_region
    _
  $region5: #{gpt_forward.14} parent=0 // pred_fallthru
    _
  // Predicated region
  $region6: #{gpt_forward.14} parent=0 // pred_check
    _
  $region7: #{gpt_forward.14} parent=0 // pred_check_branch
    %11 = sbr.rel (0) target = $region9
  $region8: #{gpt_forward.14} parent=0 // pred_region
    _
  $region9: #{gpt_forward.14} parent=0 // pred_fallthru
    _
  // Predicated region
  $region10: #{gpt_forward.14} parent=0 // pred_check
    _
  $region11: #{gpt_forward.14} parent=0 // pred_check_branch
    %13 = sbr.rel (0) target = $region13
  $region12: #{gpt_forward.14} parent=0 // pred_region
    _
  $region13: #{gpt_forward.14} parent=0 // pred_fallthru
    _
  %v14 = vld [vmem:[%s0] sm:$0xff]
  %v15 = vld [vmem:[%s0 + $0x8] sm:$0xff]
  %v16 = vld [vmem:[%s1] sm:$0x1]
  %v17 = vld [vmem:[%s2] sm:$0x1]
  %vm18 = vcmask 523264
  %v19 = vsel %vm18, %v14, 0.0
  %20 = vadd.xlane.f32.xlu0 %v19
  %v21 = vpop.xlane.xlu0 %20
  %v22 = vsel %vm18, %v15, 0.0
  %23 = vadd.xlane.f32.xlu0 %v22
  %v24 = vpop.xlane.xlu0 %23
  %v25 = vrcp.pop 64.0
  %v26 = vmul.f32 %v21, %v25
  %v27 = vmul.f32 %v24, %v25
  %v28 = vsub.f32 %v14, %v26
  %v29 = vsub.f32 %v15, %v27
  %v30 = vmul.f32 %v28, %v28
  %v31 = vmul.f32 %v29, %v29
  %v32 = vsel %vm18, %v30, 0.0
  %33 = vadd.xlane.f32.xlu0 %v32
  %v34 = vpop.xlane.xlu0 %33
  %v35 = vsel %vm18, %v31, 0.0
  %36 = vadd.xlane.f32.xlu0 %v35
  %v37 = vpop.xlane.xlu0 %36
  %v38 = vmul.f32 %v34, %v25
  %v39 = vmul.f32 %v37, %v25
  %v40 = vadd.f32 %v38, 1e-05
  %v41 = vadd.f32 %v39, 1e-05
  %v42 = vrsqrt.pop %v40
  %v43 = vrsqrt.pop %v41
  %v44 = vmul.f32 %v28, %v42
  %v45 = vmul.f32 %v29, %v43
  %v47 = vlaneseq
  %v48 = vshrl.u32 %v47, 7
  %v49 = vsub.s32 0, %v48
  %v50 = vrot.slane %v16, %v49
  %v52 = vmul.f32 %v44, %v50
  %v53 = vmul.f32 %v45, %v50
  %v55 = vlaneseq
  %v56 = vshrl.u32 %v55, 7
  %v57 = vsub.s32 0, %v56
  %v58 = vrot.slane %v17, %v57
  %v60 = vadd.f32 %v52, %v58
  %v61 = vadd.f32 %v53, %v58
  %v62 = vpack.c.bf16 %v61, %v60
  %v64 = vunpack.c.l.b16 %v62
  %v65 = vunpack.c.h.b16 %v62
  %v66 = vpack.c.b16 %v64, %v64
  %v67 = vpack.c.b16 %v65, %v65
  %vm70 = vcmask 519168
  %71 = vst.msk [vmem:[%s3] sm:$0xf] %vm70, %v66
  %72 = vst.msk [vmem:[%s3 + $0x4] sm:$0xf] %vm70, %v67
  // Predicated region
  $region14: #{gpt_forward.14} parent=0 // pred_check
    _
  $region15: #{gpt_forward.14} parent=0 // pred_check_branch
    %74 = sbr.rel (0) target = $region17
  $region16: #{gpt_forward.14} parent=0 // pred_region
    _
  $region17: #{gpt_forward.14} parent=0 // pred_fallthru
    _
  // Predicated region
  $region18: #{gpt_forward.14} parent=0 // pred_check
    _
  $region19: #{gpt_forward.14} parent=0 // pred_check_branch
    %76 = sbr.rel (0) target = $region21
  $region20: #{gpt_forward.14} parent=0 // pred_region
    _
  $region21: #{gpt_forward.14} parent=0 // pred_fallthru
    _

// kernel: gpt_forward.8
$region0: #{gpt_forward.8}
  #allocation0 [shape = 'u32[]', space=smem, size = 0x4, offset = 0x4, fixed_abs, tag = 'smem constant byte address 0x4 - core index']
  #allocation1 [shape = 'u32[144,128]{1,0:T(1,128)}', space=vmem, size = 0x12000, scoped, tag = 'internal scratch']
  %s0 = inlined_call_operand.vmem [shape: f32[2,8,64], index: 0, kind: input, shape index: {}]
  %s1 = inlined_call_operand.vmem [shape: f32[1,64], index: 1, kind: input, shape index: {}]
  %s2 = inlined_call_operand.vmem [shape: f32[1,64], index: 2, kind: input, shape index: {}]
  %s3 = inlined_call_operand.vmem [shape: bf16[64,192], index: 3, kind: input, shape index: {}]
  %s4 = inlined_call_operand.vmem [shape: f32[1,192], index: 4, kind: input, shape index: {}]
  %s5 = inlined_call_operand.vmem [shape: bf16[2,8,8,8], index: 5, kind: output, shape index: {0}]
  %s6 = inlined_call_operand.vmem [shape: bf16[2,8,8,8], index: 6, kind: output, shape index: {1}]
  %s7 = inlined_call_operand.vmem [shape: bf16[2,8,8,8], index: 7, kind: output, shape index: {2}]
  %8 = xla_tuple %s5, %s6, %s7
  %s9 = sld [smem:[#allocation0]]
  $region69: #{gpt_forward.8} parent=0
    _
  %s11 = ssub.s32 1, %s9
  %s12 = scalar_select 0, %s11, %s9
  loop: start=0, step=1, limit=4
  $region2: #{gpt_forward.8} parent=0 // loop_pre_header
    _
  $region3: #{gpt_forward.8} parent=0 // loop_header
    %s14 = sphi 0, %s18
    %p15 = scmp.ge.s32.totalorder %s14, 4
    %s21 = sphi 0, %s33
    %s22 = sphi 0, %s29
    %s23 = sphi 0, %s21
    %s24 = sphi 0, %s22
    %s25 = sphi 0, %s23
    %s26 = sphi 0, %s24
    %s38 = sphi 0, %s40
    %s41 = sphi 0, %s38
    %s42 = sphi 0, %s41
    %s58 = sphi 0, %s42
    %s62 = sphi 0, %s62
    %s64 = sphi 0, %s62
    %s65 = sphi 0, %s64
    %s79 = sphi 0, %s65
    %s83 = sphi 0, %s83
    %s85 = sphi 0, %s83
    %s86 = sphi 0, %s85
    %s100 = sphi 0, %s86
    %s104 = sphi 0, %s104
    %s106 = sphi 0, %s104
    %s107 = sphi 0, %s106
    %s121 = sphi 0, %s107
    %s125 = sphi 0, %s125
    %s127 = sphi 0, %s125
    %s128 = sphi 0, %s127
    %s142 = sphi 0, %s128
    %s150 = sphi 0, %s152
    %s153 = sphi 0, %s150
    %s154 = sphi 0, %s153
    %s170 = sphi 0, %s154
    %s178 = sphi 0, %s180
    %s181 = sphi 0, %s178
    %s182 = sphi 0, %s181
    %s198 = sphi 0, %s182
    %s206 = sphi 0, %s208
    %s209 = sphi 0, %s206
    %s210 = sphi 0, %s209
    %s226 = sphi 0, %s210
  $region4: #{gpt_forward.8} parent=0 // loop_header_branch
    %17 = sbr.rel (%p15) target = $region8
  $region5: #{gpt_forward.8} parent=0 // loop_body
    %s19 = ssub.s32 %s14, 1
    %s20 = ssub.s32 %s14, 2
    %s27 = sadd.s32 1, %s22
    %p28 = scmp.ge.s32.totalorder %s27, 1
    %s29 = scalar_select %p28, 0, %s27
    %s30 = sadd.s32 1, %s21
    %s31 = scalar_select %p28, %s30, %s21
    %p32 = scmp.ge.s32.totalorder %s31, 2
    %s33 = scalar_select %p32, 0, %s31
    %s34 = ssub.s32 %s21, %s33
    %s35 = ssub.s32 %s22, %s29
    %s36 = sor.u32 %s34, %s35
    %p37 = scmp.eq.s32.totalorder %s36, 0
    %s39 = sadd.s32 %s38, 1
    %s40 = scalar_select %p37, %s38, %s39
    %p43 = pneg %p37
    %p44 = scmp.eq.s32.totalorder %s14, 1
    %p45 = por %p43, %p44
    %p46 = scmp.ne.s32.totalorder %s38, %s41
    %p47 = scmp.eq.s32.totalorder %s14, 0
    %p48 = por %p46, %p47
    %p49 = scmp.ne.s32.totalorder %s38, %s41
    %p50 = scmp.eq.s32.totalorder %s19, 1
    %p51 = por %p49, %p50
    %p52 = scmp.ne.s32.totalorder %s41, %s42
    %p53 = scmp.eq.s32.totalorder %s19, 0
    %p54 = por %p52, %p53
    %p55 = scmp.ne.s32.totalorder %s41, %s42
    %p56 = scmp.eq.s32.totalorder %s20, 1
    %p57 = por %p55, %p56
    %p59 = scmp.ne.s32.totalorder %s42, %s58
    %p60 = scmp.eq.s32.totalorder %s20, 0
    %p61 = por %p59, %p60
    %s63 = sadd.s32 %s62, 1
    %p66 = scmp.eq.s32.totalorder %s14, 1
    %p67 = scmp.ne.s32.totalorder %s62, %s64
    %p68 = scmp.eq.s32.totalorder %s14, 0
    %p69 = por %p67, %p68
    %p70 = scmp.ne.s32.totalorder %s62, %s64
    %p71 = scmp.eq.s32.totalorder %s19, 1
    %p72 = por %p70, %p71
    %p73 = scmp.ne.s32.totalorder %s64, %s65
    %p74 = scmp.eq.s32.totalorder %s19, 0
    %p75 = por %p73, %p74
    %p76 = scmp.ne.s32.totalorder %s64, %s65
    %p77 = scmp.eq.s32.totalorder %s20, 1
    %p78 = por %p76, %p77
    %p80 = scmp.ne.s32.totalorder %s65, %s79
    %p81 = scmp.eq.s32.totalorder %s20, 0
    %p82 = por %p80, %p81
    %s84 = sadd.s32 %s83, 1
    %p87 = scmp.eq.s32.totalorder %s14, 1
    %p88 = scmp.ne.s32.totalorder %s83, %s85
    %p89 = scmp.eq.s32.totalorder %s14, 0
    %p90 = por %p88, %p89
    %p91 = scmp.ne.s32.totalorder %s83, %s85
    %p92 = scmp.eq.s32.totalorder %s19, 1
    %p93 = por %p91, %p92
    %p94 = scmp.ne.s32.totalorder %s85, %s86
    %p95 = scmp.eq.s32.totalorder %s19, 0
    %p96 = por %p94, %p95
    %p97 = scmp.ne.s32.totalorder %s85, %s86
    %p98 = scmp.eq.s32.totalorder %s20, 1
    %p99 = por %p97, %p98
    %p101 = scmp.ne.s32.totalorder %s86, %s100
    %p102 = scmp.eq.s32.totalorder %s20, 0
    %p103 = por %p101, %p102
    %s105 = sadd.s32 %s104, 1
    %p108 = scmp.eq.s32.totalorder %s14, 1
    %p109 = scmp.ne.s32.totalorder %s104, %s106
    %p110 = scmp.eq.s32.totalorder %s14, 0
    %p111 = por %p109, %p110
    %p112 = scmp.ne.s32.totalorder %s104, %s106
    %p113 = scmp.eq.s32.totalorder %s19, 1
    %p114 = por %p112, %p113
    %p115 = scmp.ne.s32.totalorder %s106, %s107
    %p116 = scmp.eq.s32.totalorder %s19, 0
    %p117 = por %p115, %p116
    %p118 = scmp.ne.s32.totalorder %s106, %s107
    %p119 = scmp.eq.s32.totalorder %s20, 1
    %p120 = por %p118, %p119
    %p122 = scmp.ne.s32.totalorder %s107, %s121
    %p123 = scmp.eq.s32.totalorder %s20, 0
    %p124 = por %p122, %p123
    %s126 = sadd.s32 %s125, 1
    %p129 = scmp.eq.s32.totalorder %s14, 1
    %p130 = scmp.ne.s32.totalorder %s125, %s127
    %p131 = scmp.eq.s32.totalorder %s14, 0
    %p132 = por %p130, %p131
    %p133 = scmp.ne.s32.totalorder %s125, %s127
    %p134 = scmp.eq.s32.totalorder %s19, 1
    %p135 = por %p133, %p134
    %p136 = scmp.ne.s32.totalorder %s127, %s128
    %p137 = scmp.eq.s32.totalorder %s19, 0
    %p138 = por %p136, %p137
    %p139 = scmp.ne.s32.totalorder %s127, %s128
    %p140 = scmp.eq.s32.totalorder %s20, 1
    %p141 = por %p139, %p140
    %p143 = scmp.ne.s32.totalorder %s128, %s142
    %p144 = scmp.eq.s32.totalorder %s20, 0
    %p145 = por %p143, %p144
    %s146 = ssub.s32 %s21, %s33
    %s147 = ssub.s32 %s22, %s29
    %s148 = sor.u32 %s146, %s147
    %p149 = scmp.eq.s32.totalorder %s148, 0
    %s151 = sadd.s32 %s150, 1
    %s152 = scalar_select %p149, %s150, %s151
    %p155 = pneg %p149
    %p156 = scmp.eq.s32.totalorder %s14, 1
    %p157 = por %p155, %p156
    %p158 = scmp.ne.s32.totalorder %s150, %s153
    %p159 = scmp.eq.s32.totalorder %s14, 0
    %p160 = por %p158, %p159
    %p161 = scmp.ne.s32.totalorder %s150, %s153
    %p162 = scmp.eq.s32.totalorder %s19, 1
    %p163 = por %p161, %p162
    %p164 = scmp.ne.s32.totalorder %s153, %s154
    %p165 = scmp.eq.s32.totalorder %s19, 0
    %p166 = por %p164, %p165
    %p167 = scmp.ne.s32.totalorder %s153, %s154
    %p168 = scmp.eq.s32.totalorder %s20, 1
    %p169 = por %p167, %p168
    %p171 = scmp.ne.s32.totalorder %s154, %s170
    %p172 = scmp.eq.s32.totalorder %s20, 0
    %p173 = por %p171, %p172
    %s174 = ssub.s32 %s21, %s33
    %s175 = ssub.s32 %s22, %s29
    %s176 = sor.u32 %s174, %s175
    %p177 = scmp.eq.s32.totalorder %s176, 0
    %s179 = sadd.s32 %s178, 1
    %s180 = scalar_select %p177, %s178, %s179
    %p183 = pneg %p177
    %p184 = scmp.eq.s32.totalorder %s14, 1
    %p185 = por %p183, %p184
    %p186 = scmp.ne.s32.totalorder %s178, %s181
    %p187 = scmp.eq.s32.totalorder %s14, 0
    %p188 = por %p186, %p187
    %p189 = scmp.ne.s32.totalorder %s178, %s181
    %p190 = scmp.eq.s32.totalorder %s19, 1
    %p191 = por %p189, %p190
    %p192 = scmp.ne.s32.totalorder %s181, %s182
    %p193 = scmp.eq.s32.totalorder %s19, 0
    %p194 = por %p192, %p193
    %p195 = scmp.ne.s32.totalorder %s181, %s182
    %p196 = scmp.eq.s32.totalorder %s20, 1
    %p197 = por %p195, %p196
    %p199 = scmp.ne.s32.totalorder %s182, %s198
    %p200 = scmp.eq.s32.totalorder %s20, 0
    %p201 = por %p199, %p200
    %s202 = ssub.s32 %s21, %s33
    %s203 = ssub.s32 %s22, %s29
    %s204 = sor.u32 %s202, %s203
    %p205 = scmp.eq.s32.totalorder %s204, 0
    %s207 = sadd.s32 %s206, 1
    %s208 = scalar_select %p205, %s206, %s207
    %p211 = pneg %p205
    %p212 = scmp.eq.s32.totalorder %s14, 1
    %p213 = por %p211, %p212
    %p214 = scmp.ne.s32.totalorder %s206, %s209
    %p215 = scmp.eq.s32.totalorder %s14, 0
    %p216 = por %p214, %p215
    %p217 = scmp.ne.s32.totalorder %s206, %s209
    %p218 = scmp.eq.s32.totalorder %s19, 1
    %p219 = por %p217, %p218
    %p220 = scmp.ne.s32.totalorder %s209, %s210
    %p221 = scmp.eq.s32.totalorder %s19, 0
    %p222 = por %p220, %p221
    %p223 = scmp.ne.s32.totalorder %s209, %s210
    %p224 = scmp.eq.s32.totalorder %s20, 1
    %p225 = por %p223, %p224
    %p227 = scmp.ne.s32.totalorder %s210, %s226
    %p228 = scmp.eq.s32.totalorder %s20, 0
    %p229 = por %p227, %p228
    %p230 = scmp.le.s32.totalorder 1, %s14
    %p231 = scmp.lt.s32.totalorder %s14, 3
    %p232 = pnand %p230, %p231
    %p233 = pneg %p232
    // Predicated region
    $region9: #{gpt_forward.8} parent=5 // pred_check
      _
    $region10: #{gpt_forward.8} parent=5 // pred_check_branch
      %235 = sbr.rel (%p232) target = $region12
    $region11: #{gpt_forward.8} parent=5 // pred_region
      %s236 = ssub.s32 %s14, 1
      // Predicated region
      $region13: #{gpt_forward.8} parent=11 // pred_check
        %p237 = pneg %p75
      $region14: #{gpt_forward.8} parent=11 // pred_check_branch
        %239 = sbr.rel (%p237) target = $region16
      $region15: #{gpt_forward.8} parent=11 // pred_region
        _
      $region16: #{gpt_forward.8} parent=11 // pred_fallthru
        _
      // Predicated region
      $region17: #{gpt_forward.8} parent=11 // pred_check
        %p240 = pneg %p96
      $region18: #{gpt_forward.8} parent=11 // pred_check_branch
        %242 = sbr.rel (%p240) target = $region20
      $region19: #{gpt_forward.8} parent=11 // pred_region
        _
      $region20: #{gpt_forward.8} parent=11 // pred_fallthru
        _
      // Predicated region
      $region21: #{gpt_forward.8} parent=11 // pred_check
        %p243 = pneg %p117
      $region22: #{gpt_forward.8} parent=11 // pred_check_branch
        %245 = sbr.rel (%p243) target = $region24
      $region23: #{gpt_forward.8} parent=11 // pred_region
        _
      $region24: #{gpt_forward.8} parent=11 // pred_fallthru
        _
      // Predicated region
      $region25: #{gpt_forward.8} parent=11 // pred_check
        %p246 = pneg %p138
      $region26: #{gpt_forward.8} parent=11 // pred_check_branch
        %248 = sbr.rel (%p246) target = $region28
      $region27: #{gpt_forward.8} parent=11 // pred_region
        _
      $region28: #{gpt_forward.8} parent=11 // pred_fallthru
        _
    $region12: #{gpt_forward.8} parent=5 // pred_fallthru
      _
    %p249 = scmp.lt.s32.totalorder %s14, 2
    // Predicated region
    $region29: #{gpt_forward.8} parent=5 // pred_check
      %p250 = pneg %p249
    $region30: #{gpt_forward.8} parent=5 // pred_check_branch
      %252 = sbr.rel (%p250) target = $region32
    $region31: #{gpt_forward.8} parent=5 // pred_region
      // Predicated region
      $region33: #{gpt_forward.8} parent=31 // pred_check
        %p253 = pneg %p48
      $region34: #{gpt_forward.8} parent=31 // pred_check_branch
        %255 = sbr.rel (%p253) target = $region36
      $region35: #{gpt_forward.8} parent=31 // pred_region
        %p256 = scmp.lt.s32.totalorder %s21, 1
        %s257 = scalar_select %p256, %s21, 1
        %p258 = scmp.lt.s32.totalorder %s22, 0
        %s259 = scalar_select %p258, %s22, 0
        %s260 = sadd.s32 %s259, %s257
        %s261 = smul.addr %s260, 8
        %s262 = scalar_lea.vmem %s0, %s261
      $region36: #{gpt_forward.8} parent=31 // pred_fallthru
        _
    $region32: #{gpt_forward.8} parent=5 // pred_fallthru
      _
    %p263 = scmp.le.s32.totalorder 1, %s14
    %p264 = scmp.lt.s32.totalorder %s14, 3
    %p265 = pnand %p263, %p264
    %p266 = pneg %p265
    // Predicated region
    $region37: #{gpt_forward.8} parent=5 // pred_check
      _
    $region38: #{gpt_forward.8} parent=5 // pred_check_branch
      %268 = sbr.rel (%p265) target = $region40
    $region39: #{gpt_forward.8} parent=5 // pred_region
      %s269 = ssub.s32 %s14, 1
      %p270 = scmp.lt.s32.totalorder %s23, 1
      %s271 = scalar_select %p270, %s23, 1
      %p272 = scmp.lt.s32.totalorder %s24, 0
      %s273 = scalar_select %p272, %s24, 0
      %s274 = sadd.s32 %s273, %s271
      %s275 = smul.addr %s274, 8
      %s276 = scalar_lea.vmem %s0, %s275
      %p277 = pneg %p54
      %p278 = pneg %p51
      %p279 = pneg %p75
      %p280 = pneg %p72
      %p281 = pneg %p96
      %p282 = pneg %p93
      %p283 = pneg %p117
      %p284 = pneg %p114
      %p285 = pneg %p138
      %p286 = pneg %p135
      %p287 = pneg %p166
      %p288 = pneg %p163
      %p289 = scmp.lt.s32.totalorder %s23, 1
      %s290 = scalar_select %p289, %s23, 1
      %p291 = scmp.lt.s32.totalorder %s24, 0
      %s292 = scalar_select %p291, %s24, 0
      %s293 = smul.addr %s290, 8
      %s294 = sadd.s32 %s292, %s293
      %s295 = smul.addr %s294, 4
      %s296 = scalar_lea.vmem %s5, %s295
      %p297 = pneg %p194
      %p298 = pneg %p191
      %p299 = scmp.lt.s32.totalorder %s23, 1
      %s300 = scalar_select %p299, %s23, 1
      %p301 = scmp.lt.s32.totalorder %s24, 0
      %s302 = scalar_select %p301, %s24, 0
      %s303 = smul.addr %s300, 8
      %s304 = sadd.s32 %s302, %s303
      %s305 = smul.addr %s304, 4
      %s306 = scalar_lea.vmem %s6, %s305
      %p307 = pneg %p222
      %p308 = pneg %p219
      %p309 = scmp.lt.s32.totalorder %s23, 1
      %s310 = scalar_select %p309, %s23, 1
      %p311 = scmp.lt.s32.totalorder %s24, 0
      %s312 = scalar_select %p311, %s24, 0
      %s313 = smul.addr %s310, 8
      %s314 = sadd.s32 %s312, %s313
      %s315 = smul.addr %s314, 4
      %s316 = scalar_lea.vmem %s7, %s315
      %p317 = scmp.lt.s32.totalorder %s23, 1
      %s318 = scalar_select %p317, %s23, 1
      %p319 = scmp.lt.s32.totalorder %s24, 0
      %s320 = scalar_select %p319, %s24, 0
      %s321 = sadd.s32 %s320, %s318
      %s322 = smul.addr %s321, 8
      %s323 = scalar_lea.vmem %s0, %s322
      %p324 = scmp.lt.s32.totalorder %s23, 1
      %s325 = scalar_select %p324, %s23, 1
      %p326 = scmp.lt.s32.totalorder %s24, 0
      %s327 = scalar_select %p326, %s24, 0
      %s328 = smul.addr %s325, 8
      %s329 = sadd.s32 %s327, %s328
      %s330 = smul.addr %s329, 4
      %s331 = scalar_lea.vmem %s5, %s330
      %p332 = scmp.lt.s32.totalorder %s23, 1
      %s333 = scalar_select %p332, %s23, 1
      %p334 = scmp.lt.s32.totalorder %s24, 0
      %s335 = scalar_select %p334, %s24, 0
      %s336 = smul.addr %s333, 8
      %s337 = sadd.s32 %s335, %s336
      %s338 = smul.addr %s337, 4
      %s339 = scalar_lea.vmem %s6, %s338
      %p340 = scmp.lt.s32.totalorder %s23, 1
      %s341 = scalar_select %p340, %s23, 1
      %p342 = scmp.lt.s32.totalorder %s24, 0
      %s343 = scalar_select %p342, %s24, 0
      %s344 = smul.addr %s341, 8
      %s345 = sadd.s32 %s343, %s344
      %s346 = smul.addr %s345, 4
      %s347 = scalar_lea.vmem %s7, %s346
      %v349 = vld [vmem:[%s323] sm:$0xff]
      %v350 = vld [vmem:[%s1] sm:$0x1]
      %v351 = vld [vmem:[%s2] sm:$0x1]
      %vm352 = vcmask 523264
      %v353 = vsel %vm352, %v349, 0.0
      %354 = vadd.xlane.f32.xlu0 %v353
      %v355 = vpop.xlane.xlu0 %354
      %v356 = vrcp.pop 64.0
      %v357 = vmul.f32 %v355, %v356
      %v358 = vsub.f32 %v349, %v357
      %v359 = vmul.f32 %v358, %v358
      %v360 = vsel %vm352, %v359, 0.0
      %361 = vadd.xlane.f32.xlu0 %v360
      %v362 = vpop.xlane.xlu0 %361
      %v363 = vmul.f32 %v362, %v356
      %v364 = vadd.f32 %v363, 1e-05
      %v365 = vrsqrt.pop %v364
      %v366 = vmul.f32 %v358, %v365
      %v368 = vlaneseq
      %v369 = vshrl.u32 %v368, 7
      %v370 = vsub.s32 0, %v369
      %v371 = vrot.slane %v350, %v370
      %v373 = vmul.f32 %v366, %v371
      %v375 = vlaneseq
      %v376 = vshrl.u32 %v375, 7
      %v377 = vsub.s32 0, %v376
      %v378 = vrot.slane %v351, %v377
      %v380 = vadd.f32 %v373, %v378
      %v381 = vpack.c.bf16 %v380, %v380
      %v382 = vld [vmem:[%s3] sm:$0xff]
      %v383 = vld [vmem:[%s3 + $0x8] sm:$0xff]
      %v384 = vld [vmem:[%s3 + $0x10] sm:$0xff]
      %v385 = vld [vmem:[%s3 + $0x18] sm:$0xff]
      %v386 = vld [vmem:[%s3 + $0x20] sm:$0xff]
      %v387 = vld [vmem:[%s3 + $0x28] sm:$0xff]
      %v388 = vld [vmem:[%s3 + $0x30] sm:$0xff]
      %v389 = vld [vmem:[%s3 + $0x38] sm:$0xff]
      %v390 = vld [vmem:[%s4] sm:$0x3]
      %v392 = vlaneseq
      %v393 = vshrl.u32 %v392, 7
      %v394 = vsub.s32 0, %v393
      %v395 = vrot.slane %v390, %v394
      %v396 = vlaneseq
      %v397 = vshrl.u32 %v396, 7
      %v398 = vsub.s32 1, %v397
      %v399 = vrot.slane %v390, %v398
      %v410 = vunpack.c.l.b16 %v382
      %v411 = vunpack.c.h.b16 %v382
      %v412 = vunpack.c.l.b16 %v383
      %v413 = vunpack.c.h.b16 %v383
      %v414 = vunpack.c.l.b16 %v384
      %v415 = vunpack.c.h.b16 %v384
      %v416 = vunpack.c.l.b16 %v385
      %v417 = vunpack.c.h.b16 %v385
      %v418 = vunpack.c.l.b16 %v386
      %v419 = vunpack.c.h.b16 %v386
      %v420 = vunpack.c.l.b16 %v387
      %v421 = vunpack.c.h.b16 %v387
      %v422 = vunpack.c.l.b16 %v388
      %v423 = vunpack.c.h.b16 %v388
      %v424 = vunpack.c.l.b16 %v389
      %v425 = vunpack.c.h.b16 %v389
      %v426 = vpack.c.b16 %v412, %v410
      %v427 = vpack.c.b16 %v413, %v411
      %v428 = vpack.c.b16 %v416, %v414
      %v429 = vpack.c.b16 %v417, %v415
      %v430 = vpack.c.b16 %v420, %v418
      %v431 = vpack.c.b16 %v421, %v419
      %v432 = vpack.c.b16 %v424, %v422
      %v433 = vpack.c.b16 %v425, %v423
      %v443 = vsel %vm352, %v381, 0
      %445 = vmatprep.subr.bf16.mxu0 %v427
      %446 = vmatpush1.bf16.msra.mxu0 %v426
      %447 = vmatprep.subr.bf16.mxu0 %v429
      %448 = vmatpush1.bf16.msra.mxu0 %v428
      %449 = vmatprep.subr.bf16.mxu0 %v431
      %450 = vmatpush1.bf16.msra.mxu0 %v430
      %451 = vmatprep.subr.bf16.mxu0 %v433
      %452 = vmatpush1.bf16.msra.mxu0 %v432
      %453 = vmatprep.subr.bf16.mxu0 0
      %454 = vmatpush1.bf16.msra.mxu0 0
      %455 = vmatprep.subr.bf16.mxu0 0
      %456 = vmatpush1.bf16.msra.mxu0 0
      %457 = vmatprep.subr.bf16.mxu0 0
      %458 = vmatpush1.bf16.msra.mxu0 0
      %459 = vmatprep.subr.bf16.mxu0 0
      %460 = vmatpush1.bf16.msra.mxu0 0
      %461 = vmatprep.subr.bf16.mxu0 0
      %462 = vmatpush1.bf16.msra.mxu0 0
      %463 = vmatprep.subr.bf16.mxu0 0
      %464 = vmatpush1.bf16.msra.mxu0 0
      %465 = vmatprep.subr.bf16.mxu0 0
      %466 = vmatpush1.bf16.msra.mxu0 0
      %467 = vmatprep.subr.bf16.mxu0 0
      %468 = vmatpush1.bf16.msra.mxu0 0
      %469 = vmatprep.subr.bf16.mxu0 0
      %470 = vmatpush1.bf16.msra.mxu0 0
      %471 = vmatprep.subr.bf16.mxu0 0
      %472 = vmatpush1.bf16.msra.mxu0 0
      %473 = vmatprep.subr.bf16.mxu0 0
      %474 = vmatpush1.bf16.msra.mxu0 0
      %475 = vmatprep.subr.bf16.mxu0 0
      %476 = vmatpush1.bf16.msra.mxu0 0
      %477 = vmatprep.mubr.bf16.mxu0 0
      %478 = vmatmul.mubr.bf16.gmra.mrb[0].mxu0 %v443
      %v479 = vpop.f32.mrb[0].mxu0
      %v480 = vadd.f32 %v395, %v479
      %v481 = vpop.f32.mrb[0].mxu0
      %v482 = vadd.f32 %v399, %v481
      %v483 = vpop.f32.mrb[0].mxu0
      %v484 = vpop.f32.mrb[0].mxu0
      %485 = vdwg.mxu0
      %v486 = vmul.f32 %v480, 0.35355338
      %v487 = vpack.c.bf16 %v486, %v486
      %vm488 = vcmask 60416
      %489 = vst.msk [vmem:[%s331] sm:$0xf] %vm488, %v487
      %v490 = vpack.c.bf16 %v480, %v480
      %v492 = vunpack.c.l.b16 %v490
      %v493 = vpack.c.b16 %v492, %v492
      %494 = vrot.lane.b32.xlu0 %v493, 64
      %v495 = vpop.permute.xlu0 %494
      %497 = vst.msk [vmem:[%s339] sm:$0xf] %vm488, %v495
      %v498 = vpack.c.bf16 %v482, %v482
      %499 = vst.msk [vmem:[%s347] sm:$0xf] %vm488, %v498
      %v501 = vunpack.c.l.b16 %v487
      %v502 = vpack.c.b16 %v501, %v501
      %503 = vrot.lane.b32.xlu0 %v502, 120
      %v504 = vpop.permute.xlu0 %503
      %s506 = scalar_lea.vmem %s331, 4
      %507 = vst.msk [vmem:[%s506] sm:$0xf] %vm488, %v504
      %508 = vrot.lane.b32.xlu0 %v493, 56
      %v509 = vpop.permute.xlu0 %508
      %s511 = scalar_lea.vmem %s339, 4
      %512 = vst.msk [vmem:[%s511] sm:$0xf] %vm488, %v509
      %v514 = vunpack.c.l.b16 %v498
      %v515 = vpack.c.b16 %v514, %v514
      %516 = vrot.lane.b32.xlu0 %v515, 120
      %v517 = vpop.permute.xlu0 %516
      %s519 = scalar_lea.vmem %s347, 4
      %520 = vst.msk [vmem:[%s519] sm:$0xf] %vm488, %v517
      %521 = vrot.lane.b32.xlu0 %v502, 112
      %v522 = vpop.permute.xlu0 %521
      %s524 = scalar_lea.vmem %s331, 8
      %525 = vst.msk [vmem:[%s524] sm:$0xf] %vm488, %v522
      %526 = vrot.lane.b32.xlu0 %v493, 48
      %v527 = vpop.permute.xlu0 %526
      %s529 = scalar_lea.vmem %s339, 8
      %530 = vst.msk [vmem:[%s529] sm:$0xf] %vm488, %v527
      %531 = vrot.lane.b32.xlu0 %v515, 112
      %v532 = vpop.permute.xlu0 %531
      %s534 = scalar_lea.vmem %s347, 8
      %535 = vst.msk [vmem:[%s534] sm:$0xf] %vm488, %v532
      %536 = vrot.lane.b32.xlu0 %v502, 104
      %v537 = vpop.permute.xlu0 %536
      %s539 = scalar_lea.vmem %s331, 12
      %540 = vst.msk [vmem:[%s539] sm:$0xf] %vm488, %v537
      %541 = vrot.lane.b32.xlu0 %v493, 40
      %v542 = vpop.permute.xlu0 %541
      %s544 = scalar_lea.vmem %s339, 12
      %545 = vst.msk [vmem:[%s544] sm:$0xf] %vm488, %v542
      %546 = vrot.lane.b32.xlu0 %v515, 104
      %v547 = vpop.permute.xlu0 %546
      %s549 = scalar_lea.vmem %s347, 12
      %550 = vst.msk [vmem:[%s549] sm:$0xf] %vm488, %v547
      %551 = vrot.lane.b32.xlu0 %v502, 96
      %v552 = vpop.permute.xlu0 %551
      %s554 = scalar_lea.vmem %s331, 16
      %555 = vst.msk [vmem:[%s554] sm:$0xf] %vm488, %v552
      %556 = vrot.lane.b32.xlu0 %v493, 32
      %v557 = vpop.permute.xlu0 %556
      %s559 = scalar_lea.vmem %s339, 16
      %560 = vst.msk [vmem:[%s559] sm:$0xf] %vm488, %v557
      %561 = vrot.lane.b32.xlu0 %v515, 96
      %v562 = vpop.permute.xlu0 %561
      %s564 = scalar_lea.vmem %s347, 16
      %565 = vst.msk [vmem:[%s564] sm:$0xf] %vm488, %v562
      %566 = vrot.lane.b32.xlu0 %v502, 88
      %v567 = vpop.permute.xlu0 %566
      %s569 = scalar_lea.vmem %s331, 20
      %570 = vst.msk [vmem:[%s569] sm:$0xf] %vm488, %v567
      %571 = vrot.lane.b32.xlu0 %v493, 24
      %v572 = vpop.permute.xlu0 %571
      %s574 = scalar_lea.vmem %s339, 20
      %575 = vst.msk [vmem:[%s574] sm:$0xf] %vm488, %v572
      %576 = vrot.lane.b32.xlu0 %v515, 88
      %v577 = vpop.permute.xlu0 %576
      %s579 = scalar_lea.vmem %s347, 20
      %580 = vst.msk [vmem:[%s579] sm:$0xf] %vm488, %v577
      %581 = vrot.lane.b32.xlu0 %v502, 80
      %v582 = vpop.permute.xlu0 %581
      %s584 = scalar_lea.vmem %s331, 24
      %585 = vst.msk [vmem:[%s584] sm:$0xf] %vm488, %v582
      %586 = vrot.lane.b32.xlu0 %v493, 16
      %v587 = vpop.permute.xlu0 %586
      %s589 = scalar_lea.vmem %s339, 24
      %590 = vst.msk [vmem:[%s589] sm:$0xf] %vm488, %v587
      %591 = vrot.lane.b32.xlu0 %v515, 80
      %v592 = vpop.permute.xlu0 %591
      %s594 = scalar_lea.vmem %s347, 24
      %595 = vst.msk [vmem:[%s594] sm:$0xf] %vm488, %v592
      %596 = vrot.lane.b32.xlu0 %v502, 72
      %v597 = vpop.permute.xlu0 %596
      %s599 = scalar_lea.vmem %s331, 28
      %600 = vst.msk [vmem:[%s599] sm:$0xf] %vm488, %v597
      %601 = vrot.lane.b32.xlu0 %v493, 8
      %v602 = vpop.permute.xlu0 %601
      %s604 = scalar_lea.vmem %s339, 28
      %605 = vst.msk [vmem:[%s604] sm:$0xf] %vm488, %v602
      %606 = vrot.lane.b32.xlu0 %v515, 72
      %v607 = vpop.permute.xlu0 %606
      %s609 = scalar_lea.vmem %s347, 28
      %610 = vst.msk [vmem:[%s609] sm:$0xf] %vm488, %v607
      %p611 = scmp.lt.s32.totalorder %s23, 1
      %s612 = scalar_select %p611, %s23, 1
      %p613 = scmp.lt.s32.totalorder %s24, 0
      %s614 = scalar_select %p613, %s24, 0
      %s615 = smul.addr %s612, 8
      %s616 = sadd.s32 %s614, %s615
      %s617 = smul.addr %s616, 4
      %s618 = scalar_lea.vmem %s5, %s617
      %p619 = scmp.lt.s32.totalorder %s23, 1
      %s620 = scalar_select %p619, %s23, 1
      %p621 = scmp.lt.s32.totalorder %s24, 0
      %s622 = scalar_select %p621, %s24, 0
      %s623 = smul.addr %s620, 8
      %s624 = sadd.s32 %s622, %s623
      %s625 = smul.addr %s624, 4
      %s626 = scalar_lea.vmem %s6, %s625
      %p627 = scmp.lt.s32.totalorder %s23, 1
      %s628 = scalar_select %p627, %s23, 1
      %p629 = scmp.lt.s32.totalorder %s24, 0
      %s630 = scalar_select %p629, %s24, 0
      %s631 = smul.addr %s628, 8
      %s632 = sadd.s32 %s630, %s631
      %s633 = smul.addr %s632, 4
      %s634 = scalar_lea.vmem %s7, %s633
      // Predicated region
      $region41: #{gpt_forward.8} parent=39 // pred_check
        %p635 = pneg %p163
      $region42: #{gpt_forward.8} parent=39 // pred_check_branch
        %637 = sbr.rel (%p635) target = $region44
      $region43: #{gpt_forward.8} parent=39 // pred_region
        _
      $region44: #{gpt_forward.8} parent=39 // pred_fallthru
        _
      // Predicated region
      $region45: #{gpt_forward.8} parent=39 // pred_check
        %p638 = pneg %p191
      $region46: #{gpt_forward.8} parent=39 // pred_check_branch
        %640 = sbr.rel (%p638) target = $region48
      $region47: #{gpt_forward.8} parent=39 // pred_region
        _
      $region48: #{gpt_forward.8} parent=39 // pred_fallthru
        _
      // Predicated region
      $region49: #{gpt_forward.8} parent=39 // pred_check
        %p641 = pneg %p219
      $region50: #{gpt_forward.8} parent=39 // pred_check_branch
        %643 = sbr.rel (%p641) target = $region52
      $region51: #{gpt_forward.8} parent=39 // pred_region
        _
      $region52: #{gpt_forward.8} parent=39 // pred_fallthru
        _
    $region40: #{gpt_forward.8} parent=5 // pred_fallthru
      _
    %p644 = scmp.le.s32.totalorder 2, %s14
    // Predicated region
    $region53: #{gpt_forward.8} parent=5 // pred_check
      %p645 = pneg %p644
    $region54: #{gpt_forward.8} parent=5 // pred_check_branch
      %647 = sbr.rel (%p645) target = $region56
    $region55: #{gpt_forward.8} parent=5 // pred_region
      %s648 = ssub.s32 %s14, 2
      // Predicated region
      $region57: #{gpt_forward.8} parent=55 // pred_check
        %p649 = pneg %p169
      $region58: #{gpt_forward.8} parent=55 // pred_check_branch
        %651 = sbr.rel (%p649) target = $region60
      $region59: #{gpt_forward.8} parent=55 // pred_region
        %p652 = scmp.lt.s32.totalorder %s25, 1
        %s653 = scalar_select %p652, %s25, 1
        %p654 = scmp.lt.s32.totalorder %s26, 0
        %s655 = scalar_select %p654, %s26, 0
        %s656 = smul.addr %s653, 8
        %s657 = sadd.s32 %s655, %s656
        %s658 = smul.addr %s657, 4
        %s659 = scalar_lea.vmem %s5, %s658
      $region60: #{gpt_forward.8} parent=55 // pred_fallthru
        _
      // Predicated region
      $region61: #{gpt_forward.8} parent=55 // pred_check
        %p660 = pneg %p197
      $region62: #{gpt_forward.8} parent=55 // pred_check_branch
        %662 = sbr.rel (%p660) target = $region64
      $region63: #{gpt_forward.8} parent=55 // pred_region
        %p663 = scmp.lt.s32.totalorder %s25, 1
        %s664 = scalar_select %p663, %s25, 1
        %p665 = scmp.lt.s32.totalorder %s26, 0
        %s666 = scalar_select %p665, %s26, 0
        %s667 = smul.addr %s664, 8
        %s668 = sadd.s32 %s666, %s667
        %s669 = smul.addr %s668, 4
        %s670 = scalar_lea.vmem %s6, %s669
      $region64: #{gpt_forward.8} parent=55 // pred_fallthru
        _
      // Predicated region
      $region65: #{gpt_forward.8} parent=55 // pred_check
        %p671 = pneg %p225
      $region66: #{gpt_forward.8} parent=55 // pred_check_branch
        %673 = sbr.rel (%p671) target = $region68
      $region67: #{gpt_forward.8} parent=55 // pred_region
        %p674 = scmp.lt.s32.totalorder %s25, 1
        %s675 = scalar_select %p674, %s25, 1
        %p676 = scmp.lt.s32.totalorder %s26, 0
        %s677 = scalar_select %p676, %s26, 0
        %s678 = smul.addr %s675, 8
        %s679 = sadd.s32 %s677, %s678
        %s680 = smul.addr %s679, 4
        %s681 = scalar_lea.vmem %s7, %s680
      $region68: #{gpt_forward.8} parent=55 // pred_fallthru
        _
    $region56: #{gpt_forward.8} parent=5 // pred_fallthru
      _
  $region6: #{gpt_forward.8} parent=0 // loop_footer
    %s18 = sadd.s32 1, %s14
  $region7: #{gpt_forward.8} parent=0 // loop_footer_branch
    %13 = sbr.rel target = $region3
  $region8: #{gpt_forward.8} parent=0 // loop_exit
    _

// kernel: gpt_forward.10
$region0: #{gpt_forward.10}
  #allocation0 [shape = 'u32[]', space=smem, size = 0x4, offset = 0x4, fixed_abs, tag = 'smem constant byte address 0x4 - core index']
  #allocation1 [shape = 'u32[144,128]{1,0:T(1,128)}', space=vmem, size = 0x12000, scoped, tag = 'internal scratch']
  #allocation2 [shape = 'f32[16,64]{1,0:T(8,128)}', space=vmem, size = 0x2000, scoped, tag = 'scratch operand']
  #allocation3 [shape = 'bf16[16,64]{1,0:T(16,128)(2,1)}', space=vmem, size = 0x1000, scoped, tag = 'scratch operand']
  #allocation4 [shape = 'f32[16,64]{1,0:T(8,128)}', space=vmem, size = 0x2000, scoped, tag = 'scratch operand']
  %s0 = inlined_call_operand.vmem [shape: bf16[16,64], index: 0, kind: input, shape index: {}]
  %s1 = inlined_call_operand.vmem [shape: f32[16,64], index: 1, kind: input, shape index: {}]
  %s2 = inlined_call_operand.vmem [shape: f32[1,64], index: 2, kind: input, shape index: {}]
  %s3 = inlined_call_operand.vmem [shape: f32[1,64], index: 3, kind: input, shape index: {}]
  %s4 = inlined_call_operand.vmem [shape: bf16[64,256], index: 4, kind: input, shape index: {}]
  %s5 = inlined_call_operand.vmem [shape: f32[1,256], index: 5, kind: input, shape index: {}]
  %s6 = inlined_call_operand.vmem [shape: bf16[256,64], index: 6, kind: input, shape index: {}]
  %s7 = inlined_call_operand.vmem [shape: f32[1,64], index: 7, kind: input, shape index: {}]
  %s8 = inlined_call_operand.vmem [shape: f32[16,64], index: 8, kind: output, shape index: {}]
  %s9 = sld [smem:[#allocation0]]
  $region50: #{gpt_forward.10} parent=0
    _
  %s11 = ssub.s32 1, %s9
  %s12 = scalar_select 0, %s11, %s9
  // Predicated region
  $region2: #{gpt_forward.10} parent=0 // pred_check
    _
  $region3: #{gpt_forward.10} parent=0 // pred_check_branch
    %14 = sbr.rel (0) target = $region5
  $region4: #{gpt_forward.10} parent=0 // pred_region
    _
  $region5: #{gpt_forward.10} parent=0 // pred_fallthru
    _
  // Predicated region
  $region6: #{gpt_forward.10} parent=0 // pred_check
    _
  $region7: #{gpt_forward.10} parent=0 // pred_check_branch
    %16 = sbr.rel (0) target = $region9
  $region8: #{gpt_forward.10} parent=0 // pred_region
    _
  $region9: #{gpt_forward.10} parent=0 // pred_fallthru
    _
  // Predicated region
  $region10: #{gpt_forward.10} parent=0 // pred_check
    _
  $region11: #{gpt_forward.10} parent=0 // pred_check_branch
    %18 = sbr.rel (0) target = $region13
  $region12: #{gpt_forward.10} parent=0 // pred_region
    _
  $region13: #{gpt_forward.10} parent=0 // pred_fallthru
    _
  // Predicated region
  $region14: #{gpt_forward.10} parent=0 // pred_check
    _
  $region15: #{gpt_forward.10} parent=0 // pred_check_branch
    %20 = sbr.rel (0) target = $region17
  $region16: #{gpt_forward.10} parent=0 // pred_region
    _
  $region17: #{gpt_forward.10} parent=0 // pred_fallthru
    _
  // Predicated region
  $region18: #{gpt_forward.10} parent=0 // pred_check
    _
  $region19: #{gpt_forward.10} parent=0 // pred_check_branch
    %22 = sbr.rel (0) target = $region21
  $region20: #{gpt_forward.10} parent=0 // pred_region
    _
  $region21: #{gpt_forward.10} parent=0 // pred_fallthru
    _
  // Predicated region
  $region22: #{gpt_forward.10} parent=0 // pred_check
    _
  $region23: #{gpt_forward.10} parent=0 // pred_check_branch
    %24 = sbr.rel (0) target = $region25
  $region24: #{gpt_forward.10} parent=0 // pred_region
    _
  $region25: #{gpt_forward.10} parent=0 // pred_fallthru
    _
  // Predicated region
  $region26: #{gpt_forward.10} parent=0 // pred_check
    _
  $region27: #{gpt_forward.10} parent=0 // pred_check_branch
    %26 = sbr.rel (0) target = $region29
  $region28: #{gpt_forward.10} parent=0 // pred_region
    _
  $region29: #{gpt_forward.10} parent=0 // pred_fallthru
    _
  // Predicated region
  $region30: #{gpt_forward.10} parent=0 // pred_check
    _
  $region31: #{gpt_forward.10} parent=0 // pred_check_branch
    %28 = sbr.rel (0) target = $region33
  $region32: #{gpt_forward.10} parent=0 // pred_region
    _
  $region33: #{gpt_forward.10} parent=0 // pred_fallthru
    _
  %p30 = scmp.eq.s32.totalorder 0, 0
  // Predicated region
  $region34: #{gpt_forward.10} parent=0 // pred_check
    %p31 = pneg %p30
  $region35: #{gpt_forward.10} parent=0 // pred_check_branch
    %33 = sbr.rel (%p31) target = $region37
  $region36: #{gpt_forward.10} parent=0 // pred_region
    %v34 = vld [vmem:[%s1] sm:$0xff]
    %v35 = vld [vmem:[%s1 + $0x8] sm:$0xff]
    %v36 = vld [vmem:[%s0] sm:$0xf]
    %v37 = vld [vmem:[%s0 + $0x4] sm:$0xf]
    %v38 = vunpack.c.l.bf16 %v36
    %v39 = vunpack.c.l.bf16 %v37
    %v40 = vadd.f32 %v34, %v38
    %v41 = vadd.f32 %v35, %v39
    %vm42 = vcmask 523264
    %43 = vst.msk [vmem:[#allocation2] sm:$0xff] %vm42, %v40
    %44 = vst.msk [vmem:[#allocation2 + $0x8] sm:$0xff] %vm42, %v41
    %v45 = vld [vmem:[%s2] sm:$0x1]
    %v46 = vld [vmem:[%s3] sm:$0x1]
    %v47 = vsel %vm42, %v40, 0.0
    %48 = vadd.xlane.f32.xlu0 %v47
    %v49 = vpop.xlane.xlu0 %48
    %v50 = vsel %vm42, %v41, 0.0
    %51 = vadd.xlane.f32.xlu0 %v50
    %v52 = vpop.xlane.xlu0 %51
    %v53 = vrcp.pop 64.0
    %v54 = vmul.f32 %v49, %v53
    %v55 = vmul.f32 %v52, %v53
    %v56 = vsub.f32 %v40, %v54
    %v57 = vsub.f32 %v41, %v55
    %v58 = vmul.f32 %v56, %v56
    %v59 = vmul.f32 %v57, %v57
    %v60 = vsel %vm42, %v58, 0.0
    %61 = vadd.xlane.f32.xlu0 %v60
    %v62 = vpop.xlane.xlu0 %61
    %v63 = vsel %vm42, %v59, 0.0
    %64 = vadd.xlane.f32.xlu0 %v63
    %v65 = vpop.xlane.xlu0 %64
    %v66 = vmul.f32 %v62, %v53
    %v67 = vmul.f32 %v65, %v53
    %v68 = vadd.f32 %v66, 1e-05
    %v69 = vadd.f32 %v67, 1e-05
    %v70 = vrsqrt.pop %v68
    %v71 = vrsqrt.pop %v69
    %v72 = vmul.f32 %v56, %v70
    %v73 = vmul.f32 %v57, %v71
    %v75 = vlaneseq
    %v76 = vshrl.u32 %v75, 7
    %v77 = vsub.s32 0, %v76
    %v78 = vrot.slane %v45, %v77
    %v80 = vmul.f32 %v72, %v78
    %v81 = vmul.f32 %v73, %v78
    %v83 = vlaneseq
    %v84 = vshrl.u32 %v83, 7
    %v85 = vsub.s32 0, %v84
    %v86 = vrot.slane %v46, %v85
    %v88 = vadd.f32 %v80, %v86
    %v89 = vadd.f32 %v81, %v86
    %v90 = vpack.c.bf16 %v89, %v88
    %91 = vst.msk [vmem:[#allocation3] sm:$0xff] %vm42, %v90
    %92 = vst.msk [vmem:[#allocation4] sm:$0xff] %vm42, 0.0
    %93 = vst.msk [vmem:[#allocation4 + $0x8] sm:$0xff] %vm42, 0.0
  $region37: #{gpt_forward.10} parent=0 // pred_fallthru
    _
  %v94 = vld [vmem:[#allocation3] sm:$0xff]
  %v95 = vld [vmem:[%s4] sm:$0xff]
  %v96 = vld [vmem:[%s4 + $0x8] sm:$0xff]
  %v97 = vld [vmem:[%s4 + $0x10] sm:$0xff]
  %v98 = vld [vmem:[%s4 + $0x18] sm:$0xff]
  %v99 = vld [vmem:[%s4 + $0x20] sm:$0xff]
  %v100 = vld [vmem:[%s4 + $0x28] sm:$0xff]
  %v101 = vld [vmem:[%s4 + $0x30] sm:$0xff]
  %v102 = vld [vmem:[%s4 + $0x38] sm:$0xff]
  %v103 = vld [vmem:[%s5] sm:$0x3]
  %v105 = vlaneseq
  %v106 = vshrl.u32 %v105, 7
  %v107 = vsub.s32 0, %v106
  %v108 = vrot.slane %v103, %v107
  %v109 = vlaneseq
  %v110 = vshrl.u32 %v109, 7
  %v111 = vsub.s32 1, %v110
  %v112 = vrot.slane %v103, %v111
  %v123 = vunpack.c.l.b16 %v95
  %v124 = vunpack.c.h.b16 %v95
  %v125 = vunpack.c.l.b16 %v96
  %v126 = vunpack.c.h.b16 %v96
  %v127 = vunpack.c.l.b16 %v97
  %v128 = vunpack.c.h.b16 %v97
  %v129 = vunpack.c.l.b16 %v98
  %v130 = vunpack.c.h.b16 %v98
  %v131 = vunpack.c.l.b16 %v99
  %v132 = vunpack.c.h.b16 %v99
  %v133 = vunpack.c.l.b16 %v100
  %v134 = vunpack.c.h.b16 %v100
  %v135 = vunpack.c.l.b16 %v101
  %v136 = vunpack.c.h.b16 %v101
  %v137 = vunpack.c.l.b16 %v102
  %v138 = vunpack.c.h.b16 %v102
  %v139 = vpack.c.b16 %v125, %v123
  %v140 = vpack.c.b16 %v126, %v124
  %v141 = vpack.c.b16 %v129, %v127
  %v142 = vpack.c.b16 %v130, %v128
  %v143 = vpack.c.b16 %v133, %v131
  %v144 = vpack.c.b16 %v134, %v132
  %v145 = vpack.c.b16 %v137, %v135
  %v146 = vpack.c.b16 %v138, %v136
  %vm155 = vcmask 523264
  %v157 = vsel %vm155, %v94, 0
  %159 = vmatprep.subr.bf16.mxu0 %v140
  %160 = vmatpush1.bf16.msra.mxu0 %v139
  %161 = vmatprep.subr.bf16.mxu0 %v142
  %162 = vmatpush1.bf16.msra.mxu0 %v141
  %163 = vmatprep.subr.bf16.mxu0 %v144
  %164 = vmatpush1.bf16.msra.mxu0 %v143
  %165 = vmatprep.subr.bf16.mxu0 %v146
  %166 = vmatpush1.bf16.msra.mxu0 %v145
  %167 = vmatprep.subr.bf16.mxu0 0
  %168 = vmatpush1.bf16.msra.mxu0 0
  %169 = vmatprep.subr.bf16.mxu0 0
  %170 = vmatpush1.bf16.msra.mxu0 0
  %171 = vmatprep.subr.bf16.mxu0 0
  %172 = vmatpush1.bf16.msra.mxu0 0
  %173 = vmatprep.subr.bf16.mxu0 0
  %174 = vmatpush1.bf16.msra.mxu0 0
  %175 = vmatprep.subr.bf16.mxu0 0
  %176 = vmatpush1.bf16.msra.mxu0 0
  %177 = vmatprep.subr.bf16.mxu0 0
  %178 = vmatpush1.bf16.msra.mxu0 0
  %179 = vmatprep.subr.bf16.mxu0 0
  %180 = vmatpush1.bf16.msra.mxu0 0
  %181 = vmatprep.subr.bf16.mxu0 0
  %182 = vmatpush1.bf16.msra.mxu0 0
  %183 = vmatprep.subr.bf16.mxu0 0
  %184 = vmatpush1.bf16.msra.mxu0 0
  %185 = vmatprep.subr.bf16.mxu0 0
  %186 = vmatpush1.bf16.msra.mxu0 0
  %187 = vmatprep.subr.bf16.mxu0 0
  %188 = vmatpush1.bf16.msra.mxu0 0
  %189 = vmatprep.subr.bf16.mxu0 0
  %190 = vmatpush1.bf16.msra.mxu0 0
  %191 = vmatprep.mubr.bf16.mxu0 0
  %192 = vmatmul.mubr.bf16.gmra.mrb[0].mxu0 %v157
  %v193 = vpop.f32.mrb[0].mxu0
  %v194 = vadd.f32 %v108, %v193
  %v195 = vpop.f32.mrb[0].mxu0
  %v196 = vadd.f32 %v112, %v195
  %v197 = vpop.f32.mrb[0].mxu0
  %v198 = vadd.f32 %v108, %v197
  %v199 = vpop.f32.mrb[0].mxu0
  %v200 = vadd.f32 %v112, %v199
  %201 = vdwg.mxu0
  %v202 = vmax.f32 %v194, 0.0
  %v203 = vmax.f32 %v196, 0.0
  %v204 = vmax.f32 %v198, 0.0
  %v205 = vmax.f32 %v200, 0.0
  %v206 = vpack.c.bf16 %v204, %v202
  %v207 = vpack.c.bf16 %v205, %v203
  %v208 = vld [vmem:[#allocation4] sm:$0xff]
  %v209 = vld [vmem:[#allocation4 + $0x8] sm:$0xff]
  %v210 = vld [vmem:[%s6] sm:$0xf]
  %v211 = vld [vmem:[%s6 + $0x4] sm:$0xf]
  %v212 = vld [vmem:[%s6 + $0x8] sm:$0xf]
  %v213 = vld [vmem:[%s6 + $0xc] sm:$0xf]
  %v214 = vld [vmem:[%s6 + $0x10] sm:$0xf]
  %v215 = vld [vmem:[%s6 + $0x14] sm:$0xf]
  %v216 = vld [vmem:[%s6 + $0x18] sm:$0xf]
  %v217 = vld [vmem:[%s6 + $0x1c] sm:$0xf]
  %v218 = vld [vmem:[%s6 + $0x20] sm:$0xf]
  %v219 = vld [vmem:[%s6 + $0x24] sm:$0xf]
  %v220 = vld [vmem:[%s6 + $0x28] sm:$0xf]
  %v221 = vld [vmem:[%s6 + $0x2c] sm:$0xf]
  %v222 = vld [vmem:[%s6 + $0x30] sm:$0xf]
  %v223 = vld [vmem:[%s6 + $0x34] sm:$0xf]
  %v224 = vld [vmem:[%s6 + $0x38] sm:$0xf]
  %v225 = vld [vmem:[%s6 + $0x3c] sm:$0xf]
  %v226 = vld [vmem:[%s6 + $0x40] sm:$0xf]
  %v227 = vld [vmem:[%s6 + $0x44] sm:$0xf]
  %v228 = vld [vmem:[%s6 + $0x48] sm:$0xf]
  %v229 = vld [vmem:[%s6 + $0x4c] sm:$0xf]
  %v230 = vld [vmem:[%s6 + $0x50] sm:$0xf]
  %v231 = vld [vmem:[%s6 + $0x54] sm:$0xf]
  %v232 = vld [vmem:[%s6 + $0x58] sm:$0xf]
  %v233 = vld [vmem:[%s6 + $0x5c] sm:$0xf]
  %v234 = vld [vmem:[%s6 + $0x60] sm:$0xf]
  %v235 = vld [vmem:[%s6 + $0x64] sm:$0xf]
  %v236 = vld [vmem:[%s6 + $0x68] sm:$0xf]
  %v237 = vld [vmem:[%s6 + $0x6c] sm:$0xf]
  %v238 = vld [vmem:[%s6 + $0x70] sm:$0xf]
  %v239 = vld [vmem:[%s6 + $0x74] sm:$0xf]
  %v240 = vld [vmem:[%s6 + $0x78] sm:$0xf]
  %v241 = vld [vmem:[%s6 + $0x7c] sm:$0xf]
  %v274 = vunpack.c.l.b16 %v210
  %v275 = vunpack.c.l.b16 %v211
  %v276 = vunpack.c.l.b16 %v212
  %v277 = vunpack.c.l.b16 %v213
  %v278 = vunpack.c.l.b16 %v214
  %v279 = vunpack.c.l.b16 %v215
  %v280 = vunpack.c.l.b16 %v216
  %v281 = vunpack.c.l.b16 %v217
  %v282 = vunpack.c.l.b16 %v218
  %v283 = vunpack.c.l.b16 %v219
  %v284 = vunpack.c.l.b16 %v220
  %v285 = vunpack.c.l.b16 %v221
  %v286 = vunpack.c.l.b16 %v222
  %v287 = vunpack.c.l.b16 %v223
  %v288 = vunpack.c.l.b16 %v224
  %v289 = vunpack.c.l.b16 %v225
  %v290 = vunpack.c.l.b16 %v226
  %v291 = vunpack.c.l.b16 %v227
  %v292 = vunpack.c.l.b16 %v228
  %v293 = vunpack.c.l.b16 %v229
  %v294 = vunpack.c.l.b16 %v230
  %v295 = vunpack.c.l.b16 %v231
  %v296 = vunpack.c.l.b16 %v232
  %v297 = vunpack.c.l.b16 %v233
  %v298 = vunpack.c.l.b16 %v234
  %v299 = vunpack.c.l.b16 %v235
  %v300 = vunpack.c.l.b16 %v236
  %v301 = vunpack.c.l.b16 %v237
  %v302 = vunpack.c.l.b16 %v238
  %v303 = vunpack.c.l.b16 %v239
  %v304 = vunpack.c.l.b16 %v240
  %v305 = vunpack.c.l.b16 %v241
  %v306 = vpack.c.b16 %v275, %v274
  %v307 = vpack.c.b16 %v277, %v276
  %v308 = vpack.c.b16 %v279, %v278
  %v309 = vpack.c.b16 %v281, %v280
  %v310 = vpack.c.b16 %v283, %v282
  %v311 = vpack.c.b16 %v285, %v284
  %v312 = vpack.c.b16 %v287, %v286
  %v313 = vpack.c.b16 %v289, %v288
  %v314 = vpack.c.b16 %v291, %v290
  %v315 = vpack.c.b16 %v293, %v292
  %v316 = vpack.c.b16 %v295, %v294
  %v317 = vpack.c.b16 %v297, %v296
  %v318 = vpack.c.b16 %v299, %v298
  %v319 = vpack.c.b16 %v301, %v300
  %v320 = vpack.c.b16 %v303, %v302
  %v321 = vpack.c.b16 %v305, %v304
  %338 = vmatprep.subr.bf16.mxu0 0
  %339 = vmatpush1.bf16.msra.mxu0 %v306
  %340 = vmatprep.subr.bf16.mxu0 0
  %341 = vmatpush1.bf16.msra.mxu0 %v307
  %342 = vmatprep.subr.bf16.mxu0 0
  %343 = vmatpush1.bf16.msra.mxu0 %v308
  %344 = vmatprep.subr.bf16.mxu0 0
  %345 = vmatpush1.bf16.msra.mxu0 %v309
  %346 = vmatprep.subr.bf16.mxu0 0
  %347 = vmatpush1.bf16.msra.mxu0 %v310
  %348 = vmatprep.subr.bf16.mxu0 0
  %349 = vmatpush1.bf16.msra.mxu0 %v311
  %350 = vmatprep.subr.bf16.mxu0 0
  %351 = vmatpush1.bf16.msra.mxu0 %v312
  %352 = vmatprep.subr.bf16.mxu0 0
  %353 = vmatpush1.bf16.msra.mxu0 %v313
  %354 = vmatprep.subr.bf16.mxu0 0
  %355 = vmatpush1.bf16.msra.mxu0 %v314
  %356 = vmatprep.subr.bf16.mxu0 0
  %357 = vmatpush1.bf16.msra.mxu0 %v315
  %358 = vmatprep.subr.bf16.mxu0 0
  %359 = vmatpush1.bf16.msra.mxu0 %v316
  %360 = vmatprep.subr.bf16.mxu0 0
  %361 = vmatpush1.bf16.msra.mxu0 %v317
  %362 = vmatprep.subr.bf16.mxu0 0
  %363 = vmatpush1.bf16.msra.mxu0 %v318
  %364 = vmatprep.subr.bf16.mxu0 0
  %365 = vmatpush1.bf16.msra.mxu0 %v319
  %366 = vmatprep.subr.bf16.mxu0 0
  %367 = vmatpush1.bf16.msra.mxu0 %v320
  %368 = vmatprep.subr.bf16.mxu0 0
  %369 = vmatpush1.bf16.msra.mxu0 %v321
  %370 = vmatprep.mubr.bf16.mxu0 %v207
  %371 = vmatmul.mubr.bf16.gmra.mrb[0].mxu0 %v206
  %v372 = vpop.f32.mrb[0].mxu0
  %v373 = vadd.f32 0.0, %v372
  %v374 = vpop.f32.mrb[0].mxu0
  %v375 = vpop.f32.mrb[0].mxu0
  %v376 = vadd.f32 0.0, %v375
  %v377 = vpop.f32.mrb[0].mxu0
  %378 = vdwg.mxu0
  %v379 = vadd.f32 %v208, %v373
  %v380 = vadd.f32 %v209, %v376
  %381 = vst.msk [vmem:[#allocation4] sm:$0xff] %vm155, %v379
  %382 = vst.msk [vmem:[#allocation4 + $0x8] sm:$0xff] %vm155, %v380
  // Predicated region
  $region38: #{gpt_forward.10} parent=0 // pred_check
    %p383 = pneg %p30
  $region39: #{gpt_forward.10} parent=0 // pred_check_branch
    %385 = sbr.rel (%p383) target = $region41
  $region40: #{gpt_forward.10} parent=0 // pred_region
    %v386 = vld [vmem:[#allocation2] sm:$0xff]
    %v387 = vld [vmem:[#allocation2 + $0x8] sm:$0xff]
    %v388 = vld [vmem:[#allocation4] sm:$0xff]
    %v389 = vld [vmem:[#allocation4 + $0x8] sm:$0xff]
    %v390 = vadd.f32 %v386, %v388
    %v391 = vadd.f32 %v387, %v389
    %v392 = vld [vmem:[%s7] sm:$0x1]
    %v394 = vlaneseq
    %v395 = vshrl.u32 %v394, 7
    %v396 = vsub.s32 0, %v395
    %v397 = vrot.slane %v392, %v396
    %v399 = vadd.f32 %v390, %v397
    %v400 = vadd.f32 %v391, %v397
    %401 = vst.msk [vmem:[%s8] sm:$0xff] %vm155, %v399
    %402 = vst.msk [vmem:[%s8 + $0x8] sm:$0xff] %vm155, %v400
  $region41: #{gpt_forward.10} parent=0 // pred_fallthru
    _
  // Predicated region
  $region42: #{gpt_forward.10} parent=0 // pred_check
    _
  $region43: #{gpt_forward.10} parent=0 // pred_check_branch
    %404 = sbr.rel (0) target = $region45
  $region44: #{gpt_forward.10} parent=0 // pred_region
    _
  $region45: #{gpt_forward.10} parent=0 // pred_fallthru
    _
  // Predicated region
  $region46: #{gpt_forward.10} parent=0 // pred_check
    _
  $region47: #{gpt_forward.10} parent=0 // pred_check_branch
    %406 = sbr.rel (0) target = $region49
  $region48: #{gpt_forward.10} parent=0 // pred_region
    _
  $region49: #{gpt_forward.10} parent=0 // pred_fallthru
    _

// kernel: gpt_forward.15
$region0: #{gpt_forward.15}
  #allocation0 [shape = 'u32[]', space=smem, size = 0x4, offset = 0x4, fixed_abs, tag = 'smem constant byte address 0x4 - core index']
  #allocation1 [shape = 'u32[144,128]{1,0:T(1,128)}', space=vmem, size = 0x12000, scoped, tag = 'internal scratch']
  %s0 = inlined_call_operand.vmem [shape: bf16[16,64], index: 0, kind: input, shape index: {}]
  %s1 = inlined_call_operand.vmem [shape: bf16[64,128], index: 1, kind: input, shape index: {}]
  %s2 = inlined_call_operand.vmem [shape: f32[1,128], index: 2, kind: input, shape index: {}]
  %s3 = inlined_call_operand.hbm [shape: f32[16,128], index: 3, kind: output, shape index: {}]
  %s4 = sld [smem:[#allocation0]]
  $region22: #{gpt_forward.15} parent=0
    _
  %s6 = ssub.s32 1, %s4
  %s7 = scalar_select 0, %s6, %s4
  $region1: #{gpt_forward.15} parent=0
    #allocation2 [shape = 'u8[8192]{0}', space=vmem, size = 0x2000, scoped, tag = 'output window, operand 0, single buffered']
    #allocation3 [shape = 's32[1]{0}', space=sflag, size = 0x4, scoped, tag = 'scoped memory for gpt_forward.15']
    %8 = vsyncpa [#allocation3], 0
    // Predicated region
    $region2: #{gpt_forward.15} parent=1 // pred_check
      _
    $region3: #{gpt_forward.15} parent=1 // pred_check_branch
      %10 = sbr.rel (0) target = $region5
    $region4: #{gpt_forward.15} parent=1 // pred_region
      _
    $region5: #{gpt_forward.15} parent=1 // pred_fallthru
      _
    // Predicated region
    $region6: #{gpt_forward.15} parent=1 // pred_check
      _
    $region7: #{gpt_forward.15} parent=1 // pred_check_branch
      %12 = sbr.rel (0) target = $region9
    $region8: #{gpt_forward.15} parent=1 // pred_region
      _
    $region9: #{gpt_forward.15} parent=1 // pred_fallthru
      _
    // Predicated region
    $region10: #{gpt_forward.15} parent=1 // pred_check
      _
    $region11: #{gpt_forward.15} parent=1 // pred_check_branch
      %14 = sbr.rel (0) target = $region13
    $region12: #{gpt_forward.15} parent=1 // pred_region
      _
    $region13: #{gpt_forward.15} parent=1 // pred_fallthru
      _
    %v16 = vld [vmem:[%s0] sm:$0xf]
    %v17 = vld [vmem:[%s0 + $0x4] sm:$0xf]
    %v18 = vld [vmem:[%s1] sm:$0xf]
    %v19 = vld [vmem:[%s1 + $0x4] sm:$0xf]
    %v20 = vld [vmem:[%s1 + $0x8] sm:$0xf]
    %v21 = vld [vmem:[%s1 + $0xc] sm:$0xf]
    %v22 = vld [vmem:[%s1 + $0x10] sm:$0xf]
    %v23 = vld [vmem:[%s1 + $0x14] sm:$0xf]
    %v24 = vld [vmem:[%s1 + $0x18] sm:$0xf]
    %v25 = vld [vmem:[%s1 + $0x1c] sm:$0xf]
    %v26 = vld [vmem:[%s2] sm:$0x1]
    %v28 = vlaneseq
    %v29 = vshrl.u32 %v28, 7
    %v30 = vsub.s32 0, %v29
    %v31 = vrot.slane %v26, %v30
    %v35 = vunpack.c.l.b16 %v16
    %v36 = vunpack.c.l.b16 %v17
    %v37 = vpack.c.b16 %v36, %v35
    %v46 = vunpack.c.l.b16 %v18
    %v47 = vunpack.c.l.b16 %v19
    %v48 = vunpack.c.l.b16 %v20
    %v49 = vunpack.c.l.b16 %v21
    %v50 = vunpack.c.l.b16 %v22
    %v51 = vunpack.c.l.b16 %v23
    %v52 = vunpack.c.l.b16 %v24
    %v53 = vunpack.c.l.b16 %v25
    %v54 = vpack.c.b16 %v47, %v46
    %v55 = vpack.c.b16 %v49, %v48
    %v56 = vpack.c.b16 %v51, %v50
    %v57 = vpack.c.b16 %v53, %v52
    %vm62 = vcmask 523264
    %v64 = vsel %vm62, %v37, 0
    %66 = vmatprep.subr.bf16.mxu0 0
    %67 = vmatpush1.bf16.msra.mxu0 %v54
    %68 = vmatprep.subr.bf16.mxu0 0
    %69 = vmatpush1.bf16.msra.mxu0 %v55
    %70 = vmatprep.subr.bf16.mxu0 0
    %71 = vmatpush1.bf16.msra.mxu0 %v56
    %72 = vmatprep.subr.bf16.mxu0 0
    %73 = vmatpush1.bf16.msra.mxu0 %v57
    %74 = vmatprep.subr.bf16.mxu0 0
    %75 = vmatpush1.bf16.msra.mxu0 0
    %76 = vmatprep.subr.bf16.mxu0 0
    %77 = vmatpush1.bf16.msra.mxu0 0
    %78 = vmatprep.subr.bf16.mxu0 0
    %79 = vmatpush1.bf16.msra.mxu0 0
    %80 = vmatprep.subr.bf16.mxu0 0
    %81 = vmatpush1.bf16.msra.mxu0 0
    %82 = vmatprep.subr.bf16.mxu0 0
    %83 = vmatpush1.bf16.msra.mxu0 0
    %84 = vmatprep.subr.bf16.mxu0 0
    %85 = vmatpush1.bf16.msra.mxu0 0
    %86 = vmatprep.subr.bf16.mxu0 0
    %87 = vmatpush1.bf16.msra.mxu0 0
    %88 = vmatprep.subr.bf16.mxu0 0
    %89 = vmatpush1.bf16.msra.mxu0 0
    %90 = vmatprep.subr.bf16.mxu0 0
    %91 = vmatpush1.bf16.msra.mxu0 0
    %92 = vmatprep.subr.bf16.mxu0 0
    %93 = vmatpush1.bf16.msra.mxu0 0
    %94 = vmatprep.subr.bf16.mxu0 0
    %95 = vmatpush1.bf16.msra.mxu0 0
    %96 = vmatprep.subr.bf16.mxu0 0
    %97 = vmatpush1.bf16.msra.mxu0 0
    %98 = vmatprep.mubr.bf16.mxu0 0
    %99 = vmatmul.mubr.bf16.gmra.mrb[0].mxu0 %v64
    %v100 = vpop.f32.mrb[0].mxu0
    %v101 = vadd.f32 %v31, %v100
    %v102 = vpop.f32.mrb[0].mxu0
    %v103 = vpop.f32.mrb[0].mxu0
    %v104 = vadd.f32 %v31, %v103
    %v105 = vpop.f32.mrb[0].mxu0
    %106 = vdwg.mxu0
    %107 = vst [vmem:[#allocation2] sm:$0xff] %v101
    %108 = vst [vmem:[#allocation2 + $0x8] sm:$0xff] %v104
    // Predicated region
    $region14: #{gpt_forward.15} parent=1 // pred_check
      _
    $region15: #{gpt_forward.15} parent=1 // pred_check_branch
      %110 = sbr.rel (0) target = $region17
    $region16: #{gpt_forward.15} parent=1 // pred_region
      %s112 = ssub.s32 256, 256
      %113 = vsyncadd [#allocation3], %s112
      %s114 = sshll.u32 [#allocation2], 4
      %s115 = int_to_ptr.vmem [resolvable:$true] %s114
      %120 = dma.vmem_to_hbm [thread:$0]  %s115, 256, %s3, [#allocation3], 128, 128, 8
    $region17: #{gpt_forward.15} parent=1 // pred_fallthru
      _
    // Predicated region
    $region18: #{gpt_forward.15} parent=1 // pred_check
      _
    $region19: #{gpt_forward.15} parent=1 // pred_check_branch
      %122 = sbr.rel (0) target = $region21
    $region20: #{gpt_forward.15} parent=1 // pred_region
      %123 = dma.done [#allocation3], 256
    $region21: #{gpt_forward.15} parent=1 // pred_fallthru
      _
    %124 = vsyncpa [#allocation3], 1

// kernel: gpt_forward.9
$region0: #{gpt_forward.9}
  #allocation0 [shape = 'u32[]', space=smem, size = 0x4, offset = 0x4, fixed_abs, tag = 'smem constant byte address 0x4 - core index']
  #allocation1 [shape = 'u32[144,128]{1,0:T(1,128)}', space=vmem, size = 0x12000, scoped, tag = 'internal scratch']
  #allocation2 [shape = 'f32[8,8]{1,0:T(8,128)}', space=vmem, size = 0x1000, scoped, tag = 'scratch operand']
  #allocation3 [shape = 'f32[8,8]{1,0:T(8,128)}', space=vmem, size = 0x1000, scoped, tag = 'scratch operand']
  #allocation4 [shape = 'f32[8,8,8]{2,1,0:T(8,128)}', space=vmem, size = 0x8000, scoped, tag = 'scratch operand']
  %s0 = inlined_call_operand.vmem [shape: bf16[2,8,8,8], index: 0, kind: input, shape index: {}]
  %s1 = inlined_call_operand.vmem [shape: bf16[2,8,8,8], index: 1, kind: input, shape index: {}]
  %s2 = inlined_call_operand.vmem [shape: bf16[2,8,8,8], index: 2, kind: input, shape index: {}]
  %s3 = inlined_call_operand.vmem [shape: bf16[8,8,64], index: 3, kind: input, shape index: {}]
  %s4 = inlined_call_operand.vmem [shape: f32[1,64], index: 4, kind: input, shape index: {}]
  %s5 = inlined_call_operand.vmem [shape: bf16[2,8,64], index: 5, kind: output, shape index: {}]
  %s6 = sld [smem:[#allocation0]]
  $region65: #{gpt_forward.9} parent=0
    _
  %s8 = ssub.s32 1, %s6
  %s9 = scalar_select 0, %s8, %s6
  loop: start=0, step=1, limit=4
  $region2: #{gpt_forward.9} parent=0 // loop_pre_header
    _
  $region3: #{gpt_forward.9} parent=0 // loop_header
    %s11 = sphi 0, %s15
    %p12 = scmp.ge.s32.totalorder %s11, 4
    %s18 = sphi 0, %s37
    %s19 = sphi 0, %s33
    %s20 = sphi 0, %s29
    %s21 = sphi 0, %s18
    %s22 = sphi 0, %s19
    %s23 = sphi 0, %s20
    %s24 = sphi 0, %s21
    %s25 = sphi 0, %s22
    %s26 = sphi 0, %s23
    %s42 = sphi 0, %s44
    %s45 = sphi 0, %s42
    %s46 = sphi 0, %s45
    %s62 = sphi 0, %s46
    %s74 = sphi 0, %s76
    %s77 = sphi 0, %s74
    %s78 = sphi 0, %s77
    %s94 = sphi 0, %s78
    %s106 = sphi 0, %s108
    %s109 = sphi 0, %s106
    %s110 = sphi 0, %s109
    %s126 = sphi 0, %s110
    %s130 = sphi 0, %s130
    %s132 = sphi 0, %s130
    %s133 = sphi 0, %s132
    %s147 = sphi 0, %s133
    %s151 = sphi 0, %s151
    %s153 = sphi 0, %s151
    %s154 = sphi 0, %s153
    %s168 = sphi 0, %s154
    %s176 = sphi 0, %s178
    %s179 = sphi 0, %s176
    %s180 = sphi 0, %s179
    %s196 = sphi 0, %s180
  $region4: #{gpt_forward.9} parent=0 // loop_header_branch
    %14 = sbr.rel (%p12) target = $region8
  $region5: #{gpt_forward.9} parent=0 // loop_body
    %s16 = ssub.s32 %s11, 1
    %s17 = ssub.s32 %s11, 2
    %s27 = sadd.s32 1, %s20
    %p28 = scmp.ge.s32.totalorder %s27, 1
    %s29 = scalar_select %p28, 0, %s27
    %s30 = sadd.s32 1, %s19
    %s31 = scalar_select %p28, %s30, %s19
    %p32 = scmp.ge.s32.totalorder %s31, 1
    %s33 = scalar_select %p32, 0, %s31
    %s34 = sadd.s32 1, %s18
    %s35 = scalar_select %p32, %s34, %s18
    %p36 = scmp.ge.s32.totalorder %s35, 2
    %s37 = scalar_select %p36, 0, %s35
    %s38 = ssub.s32 %s18, %s37
    %s39 = ssub.s32 %s19, %s33
    %s40 = sor.u32 %s38, %s39
    %p41 = scmp.eq.s32.totalorder %s40, 0
    %s43 = sadd.s32 %s42, 1
    %s44 = scalar_select %p41, %s42, %s43
    %p47 = pneg %p41
    %p48 = scmp.eq.s32.totalorder %s11, 1
    %p49 = por %p47, %p48
    %p50 = scmp.ne.s32.totalorder %s42, %s45
    %p51 = scmp.eq.s32.totalorder %s11, 0
    %p52 = por %p50, %p51
    %p53 = scmp.ne.s32.totalorder %s42, %s45
    %p54 = scmp.eq.s32.totalorder %s16, 1
    %p55 = por %p53, %p54
    %p56 = scmp.ne.s32.totalorder %s45, %s46
    %p57 = scmp.eq.s32.totalorder %s16, 0
    %p58 = por %p56, %p57
    %p59 = scmp.ne.s32.totalorder %s45, %s46
    %p60 = scmp.eq.s32.totalorder %s17, 1
    %p61 = por %p59, %p60
    %p63 = scmp.ne.s32.totalorder %s46, %s62
    %p64 = scmp.eq.s32.totalorder %s17, 0
    %p65 = por %p63, %p64
    %p66 = scmp.lt.s32.totalorder %s19, %s20
    %s67 = scalar_select %p66, %s19, %s20
    %p68 = scmp.lt.s32.totalorder %s33, %s29
    %s69 = scalar_select %p68, %s33, %s29
    %s70 = ssub.s32 %s18, %s37
    %s71 = ssub.s32 %s67, %s69
    %s72 = sor.u32 %s70, %s71
    %p73 = scmp.eq.s32.totalorder %s72, 0
    %s75 = sadd.s32 %s74, 1
    %s76 = scalar_select %p73, %s74, %s75
    %p79 = pneg %p73
    %p80 = scmp.eq.s32.totalorder %s11, 1
    %p81 = por %p79, %p80
    %p82 = scmp.ne.s32.totalorder %s74, %s77
    %p83 = scmp.eq.s32.totalorder %s11, 0
    %p84 = por %p82, %p83
    %p85 = scmp.ne.s32.totalorder %s74, %s77
    %p86 = scmp.eq.s32.totalorder %s16, 1
    %p87 = por %p85, %p86
    %p88 = scmp.ne.s32.totalorder %s77, %s78
    %p89 = scmp.eq.s32.totalorder %s16, 0
    %p90 = por %p88, %p89
    %p91 = scmp.ne.s32.totalorder %s77, %s78
    %p92 = scmp.eq.s32.totalorder %s17, 1
    %p93 = por %p91, %p92
    %p95 = scmp.ne.s32.totalorder %s78, %s94
    %p96 = scmp.eq.s32.totalorder %s17, 0
    %p97 = por %p95, %p96
    %p98 = scmp.lt.s32.totalorder %s19, %s20
    %s99 = scalar_select %p98, %s19, %s20
    %p100 = scmp.lt.s32.totalorder %s33, %s29
    %s101 = scalar_select %p100, %s33, %s29
    %s102 = ssub.s32 %s18, %s37
    %s103 = ssub.s32 %s99, %s101
    %s104 = sor.u32 %s102, %s103
    %p105 = scmp.eq.s32.totalorder %s104, 0
    %s107 = sadd.s32 %s106, 1
    %s108 = scalar_select %p105, %s106, %s107
    %p111 = pneg %p105
    %p112 = scmp.eq.s32.totalorder %s11, 1
    %p113 = por %p111, %p112
    %p114 = scmp.ne.s32.totalorder %s106, %s109
    %p115 = scmp.eq.s32.totalorder %s11, 0
    %p116 = por %p114, %p115
    %p117 = scmp.ne.s32.totalorder %s106, %s109
    %p118 = scmp.eq.s32.totalorder %s16, 1
    %p119 = por %p117, %p118
    %p120 = scmp.ne.s32.totalorder %s109, %s110
    %p121 = scmp.eq.s32.totalorder %s16, 0
    %p122 = por %p120, %p121
    %p123 = scmp.ne.s32.totalorder %s109, %s110
    %p124 = scmp.eq.s32.totalorder %s17, 1
    %p125 = por %p123, %p124
    %p127 = scmp.ne.s32.totalorder %s110, %s126
    %p128 = scmp.eq.s32.totalorder %s17, 0
    %p129 = por %p127, %p128
    %s131 = sadd.s32 %s130, 1
    %p134 = scmp.eq.s32.totalorder %s11, 1
    %p135 = scmp.ne.s32.totalorder %s130, %s132
    %p136 = scmp.eq.s32.totalorder %s11, 0
    %p137 = por %p135, %p136
    %p138 = scmp.ne.s32.totalorder %s130, %s132
    %p139 = scmp.eq.s32.totalorder %s16, 1
    %p140 = por %p138, %p139
    %p141 = scmp.ne.s32.totalorder %s132, %s133
    %p142 = scmp.eq.s32.totalorder %s16, 0
    %p143 = por %p141, %p142
    %p144 = scmp.ne.s32.totalorder %s132, %s133
    %p145 = scmp.eq.s32.totalorder %s17, 1
    %p146 = por %p144, %p145
    %p148 = scmp.ne.s32.totalorder %s133, %s147
    %p149 = scmp.eq.s32.totalorder %s17, 0
    %p150 = por %p148, %p149
    %s152 = sadd.s32 %s151, 1
    %p155 = scmp.eq.s32.totalorder %s11, 1
    %p156 = scmp.ne.s32.totalorder %s151, %s153
    %p157 = scmp.eq.s32.totalorder %s11, 0
    %p158 = por %p156, %p157
    %p159 = scmp.ne.s32.totalorder %s151, %s153
    %p160 = scmp.eq.s32.totalorder %s16, 1
    %p161 = por %p159, %p160
    %p162 = scmp.ne.s32.totalorder %s153, %s154
    %p163 = scmp.eq.s32.totalorder %s16, 0
    %p164 = por %p162, %p163
    %p165 = scmp.ne.s32.totalorder %s153, %s154
    %p166 = scmp.eq.s32.totalorder %s17, 1
    %p167 = por %p165, %p166
    %p169 = scmp.ne.s32.totalorder %s154, %s168
    %p170 = scmp.eq.s32.totalorder %s17, 0
    %p171 = por %p169, %p170
    %s172 = ssub.s32 %s18, %s37
    %s173 = ssub.s32 %s19, %s33
    %s174 = sor.u32 %s172, %s173
    %p175 = scmp.eq.s32.totalorder %s174, 0
    %s177 = sadd.s32 %s176, 1
    %s178 = scalar_select %p175, %s176, %s177
    %p181 = pneg %p175
    %p182 = scmp.eq.s32.totalorder %s11, 1
    %p183 = por %p181, %p182
    %p184 = scmp.ne.s32.totalorder %s176, %s179
    %p185 = scmp.eq.s32.totalorder %s11, 0
    %p186 = por %p184, %p185
    %p187 = scmp.ne.s32.totalorder %s176, %s179
    %p188 = scmp.eq.s32.totalorder %s16, 1
    %p189 = por %p187, %p188
    %p190 = scmp.ne.s32.totalorder %s179, %s180
    %p191 = scmp.eq.s32.totalorder %s16, 0
    %p192 = por %p190, %p191
    %p193 = scmp.ne.s32.totalorder %s179, %s180
    %p194 = scmp.eq.s32.totalorder %s17, 1
    %p195 = por %p193, %p194
    %p197 = scmp.ne.s32.totalorder %s180, %s196
    %p198 = scmp.eq.s32.totalorder %s17, 0
    %p199 = por %p197, %p198
    %p200 = scmp.le.s32.totalorder 1, %s11
    %p201 = scmp.lt.s32.totalorder %s11, 3
    %p202 = pnand %p200, %p201
    %p203 = pneg %p202
    // Predicated region
    $region9: #{gpt_forward.9} parent=5 // pred_check
      _
    $region10: #{gpt_forward.9} parent=5 // pred_check_branch
      %205 = sbr.rel (%p202) target = $region12
    $region11: #{gpt_forward.9} parent=5 // pred_region
      %s206 = ssub.s32 %s11, 1
      // Predicated region
      $region13: #{gpt_forward.9} parent=11 // pred_check
        %p207 = pneg %p143
      $region14: #{gpt_forward.9} parent=11 // pred_check_branch
        %209 = sbr.rel (%p207) target = $region16
      $region15: #{gpt_forward.9} parent=11 // pred_region
        _
      $region16: #{gpt_forward.9} parent=11 // pred_fallthru
        _
      // Predicated region
      $region17: #{gpt_forward.9} parent=11 // pred_check
        %p210 = pneg %p164
      $region18: #{gpt_forward.9} parent=11 // pred_check_branch
        %212 = sbr.rel (%p210) target = $region20
      $region19: #{gpt_forward.9} parent=11 // pred_region
        _
      $region20: #{gpt_forward.9} parent=11 // pred_fallthru
        _
    $region12: #{gpt_forward.9} parent=5 // pred_fallthru
      _
    %p213 = scmp.lt.s32.totalorder %s11, 2
    // Predicated region
    $region21: #{gpt_forward.9} parent=5 // pred_check
      %p214 = pneg %p213
    $region22: #{gpt_forward.9} parent=5 // pred_check_branch
      %216 = sbr.rel (%p214) target = $region24
    $region23: #{gpt_forward.9} parent=5 // pred_region
      // Predicated region
      $region25: #{gpt_forward.9} parent=23 // pred_check
        %p217 = pneg %p52
      $region26: #{gpt_forward.9} parent=23 // pred_check_branch
        %219 = sbr.rel (%p217) target = $region28
      $region27: #{gpt_forward.9} parent=23 // pred_region
        %p220 = scmp.lt.s32.totalorder %s18, 1
        %s221 = scalar_select %p220, %s18, 1
        %p222 = scmp.lt.s32.totalorder %s19, 0
        %s223 = scalar_select %p222, %s19, 0
        %s224 = smul.addr %s221, 8
        %s225 = sadd.s32 %s223, %s224
        %s226 = smul.addr %s225, 4
        %s227 = scalar_lea.vmem %s0, %s226
      $region28: #{gpt_forward.9} parent=23 // pred_fallthru
        _
      // Predicated region
      $region29: #{gpt_forward.9} parent=23 // pred_check
        %p228 = pneg %p84
      $region30: #{gpt_forward.9} parent=23 // pred_check_branch
        %230 = sbr.rel (%p228) target = $region32
      $region31: #{gpt_forward.9} parent=23 // pred_region
        %p231 = scmp.lt.s32.totalorder %s19, %s20
        %s232 = scalar_select %p231, %s19, %s20
        %p233 = scmp.lt.s32.totalorder %s18, 1
        %s234 = scalar_select %p233, %s18, 1
        %p235 = scmp.lt.s32.totalorder %s232, 0
        %s236 = scalar_select %p235, %s232, 0
        %s237 = smul.addr %s234, 8
        %s238 = sadd.s32 %s236, %s237
        %s239 = smul.addr %s238, 4
        %s240 = scalar_lea.vmem %s1, %s239
        %p241 = scmp.lt.s32.totalorder %s19, %s20
        %s242 = scalar_select %p241, %s19, %s20
      $region32: #{gpt_forward.9} parent=23 // pred_fallthru
        _
      // Predicated region
      $region33: #{gpt_forward.9} parent=23 // pred_check
        %p243 = pneg %p116
      $region34: #{gpt_forward.9} parent=23 // pred_check_branch
        %245 = sbr.rel (%p243) target = $region36
      $region35: #{gpt_forward.9} parent=23 // pred_region
        %p246 = scmp.lt.s32.totalorder %s19, %s20
        %s247 = scalar_select %p246, %s19, %s20
        %p248 = scmp.lt.s32.totalorder %s18, 1
        %s249 = scalar_select %p248, %s18, 1
        %p250 = scmp.lt.s32.totalorder %s247, 0
        %s251 = scalar_select %p250, %s247, 0
        %s252 = smul.addr %s249, 8
        %s253 = sadd.s32 %s251, %s252
        %s254 = smul.addr %s253, 4
        %s255 = scalar_lea.vmem %s2, %s254
        %p256 = scmp.lt.s32.totalorder %s19, %s20
        %s257 = scalar_select %p256, %s19, %s20
      $region36: #{gpt_forward.9} parent=23 // pred_fallthru
        _
    $region24: #{gpt_forward.9} parent=5 // pred_fallthru
      _
    %p258 = scmp.le.s32.totalorder 1, %s11
    %p259 = scmp.lt.s32.totalorder %s11, 3
    %p260 = pnand %p258, %p259
    %p261 = pneg %p260
    // Predicated region
    $region37: #{gpt_forward.9} parent=5 // pred_check
      _
    $region38: #{gpt_forward.9} parent=5 // pred_check_branch
      %263 = sbr.rel (%p260) target = $region40
    $region39: #{gpt_forward.9} parent=5 // pred_region
      %s264 = ssub.s32 %s11, 1
      %p265 = scmp.lt.s32.totalorder %s21, 1
      %s266 = scalar_select %p265, %s21, 1
      %p267 = scmp.lt.s32.totalorder %s22, 0
      %s268 = scalar_select %p267, %s22, 0
      %s269 = smul.addr %s266, 8
      %s270 = sadd.s32 %s268, %s269
      %s271 = smul.addr %s270, 4
      %s272 = scalar_lea.vmem %s0, %s271
      %p273 = pneg %p58
      %p274 = pneg %p55
      %p275 = scmp.lt.s32.totalorder %s22, %s23
      %s276 = scalar_select %p275, %s22, %s23
      %p277 = scmp.lt.s32.totalorder %s21, 1
      %s278 = scalar_select %p277, %s21, 1
      %p279 = scmp.lt.s32.totalorder %s276, 0
      %s280 = scalar_select %p279, %s276, 0
      %s281 = smul.addr %s278, 8
      %s282 = sadd.s32 %s280, %s281
      %s283 = smul.addr %s282, 4
      %s284 = scalar_lea.vmem %s1, %s283
      %p285 = pneg %p90
      %p286 = pneg %p87
      %p287 = scmp.lt.s32.totalorder %s22, %s23
      %s288 = scalar_select %p287, %s22, %s23
      %p289 = scmp.lt.s32.totalorder %s21, 1
      %s290 = scalar_select %p289, %s21, 1
      %p291 = scmp.lt.s32.totalorder %s288, 0
      %s292 = scalar_select %p291, %s288, 0
      %s293 = smul.addr %s290, 8
      %s294 = sadd.s32 %s292, %s293
      %s295 = smul.addr %s294, 4
      %s296 = scalar_lea.vmem %s2, %s295
      %p297 = pneg %p122
      %p298 = pneg %p119
      %p299 = pneg %p143
      %p300 = pneg %p140
      %p301 = pneg %p164
      %p302 = pneg %p161
      %p303 = pneg %p192
      %p304 = pneg %p189
      %p305 = scmp.lt.s32.totalorder %s21, 1
      %s306 = scalar_select %p305, %s21, 1
      %p307 = scmp.lt.s32.totalorder %s22, 0
      %s308 = scalar_select %p307, %s22, 0
      %s309 = sadd.s32 %s308, %s306
      %s310 = smul.addr %s309, 4
      %s311 = scalar_lea.vmem %s5, %s310
      %p312 = scmp.lt.s32.totalorder %s21, 1
      %s313 = scalar_select %p312, %s21, 1
      %p314 = scmp.lt.s32.totalorder %s22, 0
      %s315 = scalar_select %p314, %s22, 0
      %s316 = smul.addr %s313, 8
      %s317 = sadd.s32 %s315, %s316
      %s318 = smul.addr %s317, 4
      %s319 = scalar_lea.vmem %s0, %s318
      %p320 = scmp.lt.s32.totalorder %s22, %s23
      %s321 = scalar_select %p320, %s22, %s23
      %p322 = scmp.lt.s32.totalorder %s21, 1
      %s323 = scalar_select %p322, %s21, 1
      %p324 = scmp.lt.s32.totalorder %s321, 0
      %s325 = scalar_select %p324, %s321, 0
      %s326 = smul.addr %s323, 8
      %s327 = sadd.s32 %s325, %s326
      %s328 = smul.addr %s327, 4
      %s329 = scalar_lea.vmem %s1, %s328
      %p330 = scmp.lt.s32.totalorder %s22, %s23
      %s331 = scalar_select %p330, %s22, %s23
      %p332 = scmp.lt.s32.totalorder %s22, %s23
      %s333 = scalar_select %p332, %s22, %s23
      %p334 = scmp.lt.s32.totalorder %s21, 1
      %s335 = scalar_select %p334, %s21, 1
      %p336 = scmp.lt.s32.totalorder %s333, 0
      %s337 = scalar_select %p336, %s333, 0
      %s338 = smul.addr %s335, 8
      %s339 = sadd.s32 %s337, %s338
      %s340 = smul.addr %s339, 4
      %s341 = scalar_lea.vmem %s2, %s340
      %p342 = scmp.lt.s32.totalorder %s22, %s23
      %s343 = scalar_select %p342, %s22, %s23
      %p344 = scmp.lt.s32.totalorder %s21, 1
      %s345 = scalar_select %p344, %s21, 1
      %p346 = scmp.lt.s32.totalorder %s22, 0
      %s347 = scalar_select %p346, %s22, 0
      %s348 = sadd.s32 %s347, %s345
      %s349 = smul.addr %s348, 4
      %s350 = scalar_lea.vmem %s5, %s349
      %p352 = scmp.eq.s32.totalorder %s23, 0
      // Predicated region
      $region41: #{gpt_forward.9} parent=39 // pred_check
        %p353 = pneg %p352
      $region42: #{gpt_forward.9} parent=39 // pred_check_branch
        %355 = sbr.rel (%p353) target = $region44
      $region43: #{gpt_forward.9} parent=39 // pred_region
        %vm356 = vcmask 64512
        %357 = vst.msk [vmem:[#allocation2] sm:$0xff] %vm356, -1e+30
        %358 = vst.msk [vmem:[#allocation3] sm:$0xff] %vm356, 0.0
        %359 = vst.msk [vmem:[#allocation4] sm:$0xff] %vm356, 0.0
        %360 = vst.msk [vmem:[#allocation4 + $0x8] sm:$0xff] %vm356, 0.0
        %361 = vst.msk [vmem:[#allocation4 + $0x10] sm:$0xff] %vm356, 0.0
        %362 = vst.msk [vmem:[#allocation4 + $0x18] sm:$0xff] %vm356, 0.0
        %363 = vst.msk [vmem:[#allocation4 + $0x20] sm:$0xff] %vm356, 0.0
        %364 = vst.msk [vmem:[#allocation4 + $0x28] sm:$0xff] %vm356, 0.0
        %365 = vst.msk [vmem:[#allocation4 + $0x30] sm:$0xff] %vm356, 0.0
        %366 = vst.msk [vmem:[#allocation4 + $0x38] sm:$0xff] %vm356, 0.0
      $region44: #{gpt_forward.9} parent=39 // pred_fallthru
        _
      %p367 = scmp.lt.s32.totalorder %s23, %s22
      // Predicated region
      $region45: #{gpt_forward.9} parent=39 // pred_check
        %p368 = pneg %p367
      $region46: #{gpt_forward.9} parent=39 // pred_check_branch
        %370 = sbr.rel (%p368) target = $region48
      $region47: #{gpt_forward.9} parent=39 // pred_region
        %v371 = vld [vmem:[%s319] sm:$0xf]
        %v372 = vld [vmem:[%s319 + $0x4] sm:$0xf]
        %v373 = vld [vmem:[%s319 + $0x8] sm:$0xf]
        %v374 = vld [vmem:[%s319 + $0xc] sm:$0xf]
        %v375 = vld [vmem:[%s319 + $0x10] sm:$0xf]
        %v376 = vld [vmem:[%s319 + $0x14] sm:$0xf]
        %v377 = vld [vmem:[%s319 + $0x18] sm:$0xf]
        %v378 = vld [vmem:[%s319 + $0x1c] sm:$0xf]
        %v379 = vld [vmem:[%s329] sm:$0xf]
        %v380 = vld [vmem:[%s329 + $0x4] sm:$0xf]
        %v381 = vld [vmem:[%s329 + $0x8] sm:$0xf]
        %v382 = vld [vmem:[%s329 + $0xc] sm:$0xf]
        %v383 = vld [vmem:[%s329 + $0x10] sm:$0xf]
        %v384 = vld [vmem:[%s329 + $0x14] sm:$0xf]
        %v385 = vld [vmem:[%s329 + $0x18] sm:$0xf]
        %v386 = vld [vmem:[%s329 + $0x1c] sm:$0xf]
        %vm387 = vcmask 64512
        %v389 = vsel %vm387, %v371, 0
        %v392 = vsel %vm387, %v379, 0
        %394 = vmatprep.subr.bf16.mxu0 0
        %395 = vmatpush1.bf16.xpose.msra.mxu0 %v392
        %396 = vmatprep.subr.bf16.mxu0 0
        %397 = vmatpush1.bf16.xpose.msra.mxu0 0
        %398 = vmatprep.subr.bf16.mxu0 0
        %399 = vmatpush1.bf16.xpose.msra.mxu0 0
        %400 = vmatprep.subr.bf16.mxu0 0
        %401 = vmatpush1.bf16.xpose.msra.mxu0 0
        %402 = vmatprep.subr.bf16.mxu0 0
        %403 = vmatpush1.bf16.xpose.msra.mxu0 0
        %404 = vmatprep.subr.bf16.mxu0 0
        %405 = vmatpush1.bf16.xpose.msra.mxu0 0
        %406 = vmatprep.subr.bf16.mxu0 0
        %407 = vmatpush1.bf16.xpose.msra.mxu0 0
        %408 = vmatprep.subr.bf16.mxu0 0
        %409 = vmatpush1.bf16.xpose.msra.mxu0 0
        %410 = vmatprep.subr.bf16.mxu0 0
        %411 = vmatpush1.bf16.xpose.msra.mxu0 0
        %412 = vmatprep.subr.bf16.mxu0 0
        %413 = vmatpush1.bf16.xpose.msra.mxu0 0
        %414 = vmatprep.subr.bf16.mxu0 0
        %415 = vmatpush1.bf16.xpose.msra.mxu0 0
        %416 = vmatprep.subr.bf16.mxu0 0
        %417 = vmatpush1.bf16.xpose.msra.mxu0 0
        %418 = vmatprep.subr.bf16.mxu0 0
        %419 = vmatpush1.bf16.xpose.msra.mxu0 0
        %420 = vmatprep.subr.bf16.mxu0 0
        %421 = vmatpush1.bf16.xpose.msra.mxu0 0
        %422 = vmatprep.subr.bf16.mxu0 0
        %423 = vmatpush1.bf16.xpose.msra.mxu0 0
        %424 = vmatprep.subr.bf16.mxu0 0
        %425 = vmatpush1.bf16.xpose.msra.mxu0 0
        %426 = vmatprep.mubr.bf16.mxu0 0
        %427 = vmatmul.mubr.bf16.gmra.mrb[0].mxu0 %v389
        %v428 = vpop.f32.mrb[0].mxu0
        %v429 = vadd.f32 0.0, %v428
        %v430 = vpop.f32.mrb[0].mxu0
        %v431 = vpop.f32.mrb[0].mxu0
        %v432 = vpop.f32.mrb[0].mxu0
        %433 = vdwg.mxu0
        %v435 = vsel %vm387, %v372, 0
        %v438 = vsel %vm387, %v380, 0
        %440 = vmatprep.subr.bf16.mxu0 0
        %441 = vmatpush1.bf16.xpose.msra.mxu0 %v438
        %442 = vmatprep.subr.bf16.mxu0 0
        %443 = vmatpush1.bf16.xpose.msra.mxu0 0
        %444 = vmatprep.subr.bf16.mxu0 0
        %445 = vmatpush1.bf16.xpose.msra.mxu0 0
        %446 = vmatprep.subr.bf16.mxu0 0
        %447 = vmatpush1.bf16.xpose.msra.mxu0 0
        %448 = vmatprep.subr.bf16.mxu0 0
        %449 = vmatpush1.bf16.xpose.msra.mxu0 0
        %450 = vmatprep.subr.bf16.mxu0 0
        %451 = vmatpush1.bf16.xpose.msra.mxu0 0
        %452 = vmatprep.subr.bf16.mxu0 0
        %453 = vmatpush1.bf16.xpose.msra.mxu0 0
        %454 = vmatprep.subr.bf16.mxu0 0
        %455 = vmatpush1.bf16.xpose.msra.mxu0 0
        %456 = vmatprep.subr.bf16.mxu0 0
        %457 = vmatpush1.bf16.xpose.msra.mxu0 0
        %458 = vmatprep.subr.bf16.mxu0 0
        %459 = vmatpush1.bf16.xpose.msra.mxu0 0
        %460 = vmatprep.subr.bf16.mxu0 0
        %461 = vmatpush1.bf16.xpose.msra.mxu0 0
        %462 = vmatprep.subr.bf16.mxu0 0
        %463 = vmatpush1.bf16.xpose.msra.mxu0 0
        %464 = vmatprep.subr.bf16.mxu0 0
        %465 = vmatpush1.bf16.xpose.msra.mxu0 0
        %466 = vmatprep.subr.bf16.mxu0 0
        %467 = vmatpush1.bf16.xpose.msra.mxu0 0
        %468 = vmatprep.subr.bf16.mxu0 0
        %469 = vmatpush1.bf16.xpose.msra.mxu0 0
        %470 = vmatprep.subr.bf16.mxu0 0
        %471 = vmatpush1.bf16.xpose.msra.mxu0 0
        %472 = vmatprep.mubr.bf16.mxu0 0
        %473 = vmatmul.mubr.bf16.gmra.mrb[0].mxu0 %v435
        %v474 = vpop.f32.mrb[0].mxu0
        %v475 = vadd.f32 0.0, %v474
        %v476 = vpop.f32.mrb[0].mxu0
        %v477 = vpop.f32.mrb[0].mxu0
        %v478 = vpop.f32.mrb[0].mxu0
        %479 = vdwg.mxu0
        %v481 = vsel %vm387, %v373, 0
        %v484 = vsel %vm387, %v381, 0
        %486 = vmatprep.subr.bf16.mxu0 0
        %487 = vmatpush1.bf16.xpose.msra.mxu0 %v484
        %488 = vmatprep.subr.bf16.mxu0 0
        %489 = vmatpush1.bf16.xpose.msra.mxu0 0
        %490 = vmatprep.subr.bf16.mxu0 0
        %491 = vmatpush1.bf16.xpose.msra.mxu0 0
        %492 = vmatprep.subr.bf16.mxu0 0
        %493 = vmatpush1.bf16.xpose.msra.mxu0 0
        %494 = vmatprep.subr.bf16.mxu0 0
        %495 = vmatpush1.bf16.xpose.msra.mxu0 0
        %496 = vmatprep.subr.bf16.mxu0 0
        %497 = vmatpush1.bf16.xpose.msra.mxu0 0
        %498 = vmatprep.subr.bf16.mxu0 0
        %499 = vmatpush1.bf16.xpose.msra.mxu0 0
        %500 = vmatprep.subr.bf16.mxu0 0
        %501 = vmatpush1.bf16.xpose.msra.mxu0 0
        %502 = vmatprep.subr.bf16.mxu0 0
        %503 = vmatpush1.bf16.xpose.msra.mxu0 0
        %504 = vmatprep.subr.bf16.mxu0 0
        %505 = vmatpush1.bf16.xpose.msra.mxu0 0
        %506 = vmatprep.subr.bf16.mxu0 0
        %507 = vmatpush1.bf16.xpose.msra.mxu0 0
        %508 = vmatprep.subr.bf16.mxu0 0
        %509 = vmatpush1.bf16.xpose.msra.mxu0 0
        %510 = vmatprep.subr.bf16.mxu0 0
        %511 = vmatpush1.bf16.xpose.msra.mxu0 0
        %512 = vmatprep.subr.bf16.mxu0 0
        %513 = vmatpush1.bf16.xpose.msra.mxu0 0
        %514 = vmatprep.subr.bf16.mxu0 0
        %515 = vmatpush1.bf16.xpose.msra.mxu0 0
        %516 = vmatprep.subr.bf16.mxu0 0
        %517 = vmatpush1.bf16.xpose.msra.mxu0 0
        %518 = vmatprep.mubr.bf16.mxu0 0
        %519 = vmatmul.mubr.bf16.gmra.mrb[0].mxu0 %v481
        %v520 = vpop.f32.mrb[0].mxu0
        %v521 = vadd.f32 0.0, %v520
        %v522 = vpop.f32.mrb[0].mxu0
        %v523 = vpop.f32.mrb[0].mxu0
        %v524 = vpop.f32.mrb[0].mxu0
        %525 = vdwg.mxu0
        %v527 = vsel %vm387, %v374, 0
        %v530 = vsel %vm387, %v382, 0
        %532 = vmatprep.subr.bf16.mxu0 0
        %533 = vmatpush1.bf16.xpose.msra.mxu0 %v530
        %534 = vmatprep.subr.bf16.mxu0 0
        %535 = vmatpush1.bf16.xpose.msra.mxu0 0
        %536 = vmatprep.subr.bf16.mxu0 0
        %537 = vmatpush1.bf16.xpose.msra.mxu0 0
        %538 = vmatprep.subr.bf16.mxu0 0
        %539 = vmatpush1.bf16.xpose.msra.mxu0 0
        %540 = vmatprep.subr.bf16.mxu0 0
        %541 = vmatpush1.bf16.xpose.msra.mxu0 0
        %542 = vmatprep.subr.bf16.mxu0 0
        %543 = vmatpush1.bf16.xpose.msra.mxu0 0
        %544 = vmatprep.subr.bf16.mxu0 0
        %545 = vmatpush1.bf16.xpose.msra.mxu0 0
        %546 = vmatprep.subr.bf16.mxu0 0
        %547 = vmatpush1.bf16.xpose.msra.mxu0 0
        %548 = vmatprep.subr.bf16.mxu0 0
        %549 = vmatpush1.bf16.xpose.msra.mxu0 0
        %550 = vmatprep.subr.bf16.mxu0 0
        %551 = vmatpush1.bf16.xpose.msra.mxu0 0
        %552 = vmatprep.subr.bf16.mxu0 0
        %553 = vmatpush1.bf16.xpose.msra.mxu0 0
        %554 = vmatprep.subr.bf16.mxu0 0
        %555 = vmatpush1.bf16.xpose.msra.mxu0 0
        %556 = vmatprep.subr.bf16.mxu0 0
        %557 = vmatpush1.bf16.xpose.msra.mxu0 0
        %558 = vmatprep.subr.bf16.mxu0 0
        %559 = vmatpush1.bf16.xpose.msra.mxu0 0
        %560 = vmatprep.subr.bf16.mxu0 0
        %561 = vmatpush1.bf16.xpose.msra.mxu0 0
        %562 = vmatprep.subr.bf16.mxu0 0
        %563 = vmatpush1.bf16.xpose.msra.mxu0 0
        %564 = vmatprep.mubr.bf16.mxu0 0
        %565 = vmatmul.mubr.bf16.gmra.mrb[0].mxu0 %v527
        %v566 = vpop.f32.mrb[0].mxu0
        %v567 = vadd.f32 0.0, %v566
        %v568 = vpop.f32.mrb[0].mxu0
        %v569 = vpop.f32.mrb[0].mxu0
        %v570 = vpop.f32.mrb[0].mxu0
        %571 = vdwg.mxu0
        %v573 = vsel %vm387, %v375, 0
        %v576 = vsel %vm387, %v383, 0
        %578 = vmatprep.subr.bf16.mxu0 0
        %579 = vmatpush1.bf16.xpose.msra.mxu0 %v576
        %580 = vmatprep.subr.bf16.mxu0 0
        %581 = vmatpush1.bf16.xpose.msra.mxu0 0
        %582 = vmatprep.subr.bf16.mxu0 0
        %583 = vmatpush1.bf16.xpose.msra.mxu0 0
        %584 = vmatprep.subr.bf16.mxu0 0
        %585 = vmatpush1.bf16.xpose.msra.mxu0 0
        %586 = vmatprep.subr.bf16.mxu0 0
        %587 = vmatpush1.bf16.xpose.msra.mxu0 0
        %588 = vmatprep.subr.bf16.mxu0 0
        %589 = vmatpush1.bf16.xpose.msra.mxu0 0
        %590 = vmatprep.subr.bf16.mxu0 0
        %591 = vmatpush1.bf16.xpose.msra.mxu0 0
        %592 = vmatprep.subr.bf16.mxu0 0
        %593 = vmatpush1.bf16.xpose.msra.mxu0 0
        %594 = vmatprep.subr.bf16.mxu0 0
        %595 = vmatpush1.bf16.xpose.msra.mxu0 0
        %596 = vmatprep.subr.bf16.mxu0 0
        %597 = vmatpush1.bf16.xpose.msra.mxu0 0
        %598 = vmatprep.subr.bf16.mxu0 0
        %599 = vmatpush1.bf16.xpose.msra.mxu0 0
        %600 = vmatprep.subr.bf16.mxu0 0
        %601 = vmatpush1.bf16.xpose.msra.mxu0 0
        %602 = vmatprep.subr.bf16.mxu0 0
        %603 = vmatpush1.bf16.xpose.msra.mxu0 0
        %604 = vmatprep.subr.bf16.mxu0 0
        %605 = vmatpush1.bf16.xpose.msra.mxu0 0
        %606 = vmatprep.subr.bf16.mxu0 0
        %607 = vmatpush1.bf16.xpose.msra.mxu0 0
        %608 = vmatprep.subr.bf16.mxu0 0
        %609 = vmatpush1.bf16.xpose.msra.mxu0 0
        %610 = vmatprep.mubr.bf16.mxu0 0
        %611 = vmatmul.mubr.bf16.gmra.mrb[0].mxu0 %v573
        %v612 = vpop.f32.mrb[0].mxu0
        %v613 = vadd.f32 0.0, %v612
        %v614 = vpop.f32.mrb[0].mxu0
        %v615 = vpop.f32.mrb[0].mxu0
        %v616 = vpop.f32.mrb[0].mxu0
        %617 = vdwg.mxu0
        %v619 = vsel %vm387, %v376, 0
        %v622 = vsel %vm387, %v384, 0
        %624 = vmatprep.subr.bf16.mxu0 0
        %625 = vmatpush1.bf16.xpose.msra.mxu0 %v622
        %626 = vmatprep.subr.bf16.mxu0 0
        %627 = vmatpush1.bf16.xpose.msra.mxu0 0
        %628 = vmatprep.subr.bf16.mxu0 0
        %629 = vmatpush1.bf16.xpose.msra.mxu0 0
        %630 = vmatprep.subr.bf16.mxu0 0
        %631 = vmatpush1.bf16.xpose.msra.mxu0 0
        %632 = vmatprep.subr.bf16.mxu0 0
        %633 = vmatpush1.bf16.xpose.msra.mxu0 0
        %634 = vmatprep.subr.bf16.mxu0 0
        %635 = vmatpush1.bf16.xpose.msra.mxu0 0
        %636 = vmatprep.subr.bf16.mxu0 0
        %637 = vmatpush1.bf16.xpose.msra.mxu0 0
        %638 = vmatprep.subr.bf16.mxu0 0
        %639 = vmatpush1.bf16.xpose.msra.mxu0 0
        %640 = vmatprep.subr.bf16.mxu0 0
        %641 = vmatpush1.bf16.xpose.msra.mxu0 0
        %642 = vmatprep.subr.bf16.mxu0 0
        %643 = vmatpush1.bf16.xpose.msra.mxu0 0
        %644 = vmatprep.subr.bf16.mxu0 0
        %645 = vmatpush1.bf16.xpose.msra.mxu0 0
        %646 = vmatprep.subr.bf16.mxu0 0
        %647 = vmatpush1.bf16.xpose.msra.mxu0 0
        %648 = vmatprep.subr.bf16.mxu0 0
        %649 = vmatpush1.bf16.xpose.msra.mxu0 0
        %650 = vmatprep.subr.bf16.mxu0 0
        %651 = vmatpush1.bf16.xpose.msra.mxu0 0
        %652 = vmatprep.subr.bf16.mxu0 0
        %653 = vmatpush1.bf16.xpose.msra.mxu0 0
        %654 = vmatprep.subr.bf16.mxu0 0
        %655 = vmatpush1.bf16.xpose.msra.mxu0 0
        %656 = vmatprep.mubr.bf16.mxu0 0
        %657 = vmatmul.mubr.bf16.gmra.mrb[0].mxu0 %v619
        %v658 = vpop.f32.mrb[0].mxu0
        %v659 = vadd.f32 0.0, %v658
        %v660 = vpop.f32.mrb[0].mxu0
        %v661 = vpop.f32.mrb[0].mxu0
        %v662 = vpop.f32.mrb[0].mxu0
        %663 = vdwg.mxu0
        %v665 = vsel %vm387, %v377, 0
        %v668 = vsel %vm387, %v385, 0
        %670 = vmatprep.subr.bf16.mxu0 0
        %671 = vmatpush1.bf16.xpose.msra.mxu0 %v668
        %672 = vmatprep.subr.bf16.mxu0 0
        %673 = vmatpush1.bf16.xpose.msra.mxu0 0
        %674 = vmatprep.subr.bf16.mxu0 0
        %675 = vmatpush1.bf16.xpose.msra.mxu0 0
        %676 = vmatprep.subr.bf16.mxu0 0
        %677 = vmatpush1.bf16.xpose.msra.mxu0 0
        %678 = vmatprep.subr.bf16.mxu0 0
        %679 = vmatpush1.bf16.xpose.msra.mxu0 0
        %680 = vmatprep.subr.bf16.mxu0 0
        %681 = vmatpush1.bf16.xpose.msra.mxu0 0
        %682 = vmatprep.subr.bf16.mxu0 0
        %683 = vmatpush1.bf16.xpose.msra.mxu0 0
        %684 = vmatprep.subr.bf16.mxu0 0
        %685 = vmatpush1.bf16.xpose.msra.mxu0 0
        %686 = vmatprep.subr.bf16.mxu0 0
        %687 = vmatpush1.bf16.xpose.msra.mxu0 0
        %688 = vmatprep.subr.bf16.mxu0 0
        %689 = vmatpush1.bf16.xpose.msra.mxu0 0
        %690 = vmatprep.subr.bf16.mxu0 0
        %691 = vmatpush1.bf16.xpose.msra.mxu0 0
        %692 = vmatprep.subr.bf16.mxu0 0
        %693 = vmatpush1.bf16.xpose.msra.mxu0 0
        %694 = vmatprep.subr.bf16.mxu0 0
        %695 = vmatpush1.bf16.xpose.msra.mxu0 0
        %696 = vmatprep.subr.bf16.mxu0 0
        %697 = vmatpush1.bf16.xpose.msra.mxu0 0
        %698 = vmatprep.subr.bf16.mxu0 0
        %699 = vmatpush1.bf16.xpose.msra.mxu0 0
        %700 = vmatprep.subr.bf16.mxu0 0
        %701 = vmatpush1.bf16.xpose.msra.mxu0 0
        %702 = vmatprep.mubr.bf16.mxu0 0
        %703 = vmatmul.mubr.bf16.gmra.mrb[0].mxu0 %v665
        %v704 = vpop.f32.mrb[0].mxu0
        %v705 = vadd.f32 0.0, %v704
        %v706 = vpop.f32.mrb[0].mxu0
        %v707 = vpop.f32.mrb[0].mxu0
        %v708 = vpop.f32.mrb[0].mxu0
        %709 = vdwg.mxu0
        %v711 = vsel %vm387, %v378, 0
        %v714 = vsel %vm387, %v386, 0
        %716 = vmatprep.subr.bf16.mxu0 0
        %717 = vmatpush1.bf16.xpose.msra.mxu0 %v714
        %718 = vmatprep.subr.bf16.mxu0 0
        %719 = vmatpush1.bf16.xpose.msra.mxu0 0
        %720 = vmatprep.subr.bf16.mxu0 0
        %721 = vmatpush1.bf16.xpose.msra.mxu0 0
        %722 = vmatprep.subr.bf16.mxu0 0
        %723 = vmatpush1.bf16.xpose.msra.mxu0 0
        %724 = vmatprep.subr.bf16.mxu0 0
        %725 = vmatpush1.bf16.xpose.msra.mxu0 0
        %726 = vmatprep.subr.bf16.mxu0 0
        %727 = vmatpush1.bf16.xpose.msra.mxu0 0
        %728 = vmatprep.subr.bf16.mxu0 0
        %729 = vmatpush1.bf16.xpose.msra.mxu0 0
        %730 = vmatprep.subr.bf16.mxu0 0
        %731 = vmatpush1.bf16.xpose.msra.mxu0 0
        %732 = vmatprep.subr.bf16.mxu0 0
        %733 = vmatpush1.bf16.xpose.msra.mxu0 0
        %734 = vmatprep.subr.bf16.mxu0 0
        %735 = vmatpush1.bf16.xpose.msra.mxu0 0
        %736 = vmatprep.subr.bf16.mxu0 0
        %737 = vmatpush1.bf16.xpose.msra.mxu0 0
        %738 = vmatprep.subr.bf16.mxu0 0
        %739 = vmatpush1.bf16.xpose.msra.mxu0 0
        %740 = vmatprep.subr.bf16.mxu0 0
        %741 = vmatpush1.bf16.xpose.msra.mxu0 0
        %742 = vmatprep.subr.bf16.mxu0 0
        %743 = vmatpush1.bf16.xpose.msra.mxu0 0
        %744 = vmatprep.subr.bf16.mxu0 0
        %745 = vmatpush1.bf16.xpose.msra.mxu0 0
        %746 = vmatprep.subr.bf16.mxu0 0
        %747 = vmatpush1.bf16.xpose.msra.mxu0 0
        %748 = vmatprep.mubr.bf16.mxu0 0
        %749 = vmatmul.mubr.bf16.gmra.mrb[0].mxu0 %v711
        %v750 = vpop.f32.mrb[0].mxu0
        %v751 = vadd.f32 0.0, %v750
        %v752 = vpop.f32.mrb[0].mxu0
        %v753 = vpop.f32.mrb[0].mxu0
        %v754 = vpop.f32.mrb[0].mxu0
        %755 = vdwg.mxu0
        %v756 = vld [vmem:[#allocation2] sm:$0xff]
        %v757 = vsel %vm387, %v429, -inf
        %758 = vmax.xlane.f32.xlu0 %v757
        %v759 = vpop.xlane.xlu0 %758
        %v760 = vsel %vm387, %v475, -inf
        %761 = vmax.xlane.f32.xlu0 %v760
        %v762 = vpop.xlane.xlu0 %761
        %v763 = vsel %vm387, %v521, -inf
        %764 = vmax.xlane.f32.xlu0 %v763
        %v765 = vpop.xlane.xlu0 %764
        %v766 = vsel %vm387, %v567, -inf
        %767 = vmax.xlane.f32.xlu0 %v766
        %v768 = vpop.xlane.xlu0 %767
        %v769 = vsel %vm387, %v613, -inf
        %770 = vmax.xlane.f32.xlu0 %v769
        %v771 = vpop.xlane.xlu0 %770
        %v772 = vsel %vm387, %v659, -inf
        %773 = vmax.xlane.f32.xlu0 %v772
        %v774 = vpop.xlane.xlu0 %773
        %v775 = vsel %vm387, %v705, -inf
        %776 = vmax.xlane.f32.xlu0 %v775
        %v777 = vpop.xlane.xlu0 %776
        %v778 = vsel %vm387, %v751, -inf
        %779 = vmax.xlane.f32.xlu0 %v778
        %v780 = vpop.xlane.xlu0 %779
        %v789 = vlaneseq
        %v790 = vand.u32 %v789, 127
        %v791 = vlaneseq
        %v792 = vshrl.u32 %v791, 7
        %v793 = vsub.s32 %v790, %v792
        %v794 = vrot.slane %v759, %v793
        %v795 = vlaneseq
        %v796 = vshrl.u32 %v795, 7
        %v797 = vsub.s32 %v790, %v796
        %v798 = vrot.slane %v762, %v797
        %v799 = vlaneseq
        %v800 = vshrl.u32 %v799, 7
        %v801 = vsub.s32 %v790, %v800
        %v802 = vrot.slane %v765, %v801
        %v803 = vlaneseq
        %v804 = vshrl.u32 %v803, 7
        %v805 = vsub.s32 %v790, %v804
        %v806 = vrot.slane %v768, %v805
        %v807 = vlaneseq
        %v808 = vshrl.u32 %v807, 7
        %v809 = vsub.s32 %v790, %v808
        %v810 = vrot.slane %v771, %v809
        %v811 = vlaneseq
        %v812 = vshrl.u32 %v811, 7
        %v813 = vsub.s32 %v790, %v812
        %v814 = vrot.slane %v774, %v813
        %v815 = vlaneseq
        %v816 = vshrl.u32 %v815, 7
        %v817 = vsub.s32 %v790, %v816
        %v818 = vrot.slane %v777, %v817
        %v819 = vlaneseq
        %v820 = vshrl.u32 %v819, 7
        %v821 = vsub.s32 %v790, %v820
        %v822 = vrot.slane %v780, %v821
        %vm823 = vcmask 1041409
        %v824 = vsel %vm823, %v798, %v794
        %vm825 = vcmask 1042434
        %v826 = vsel %vm825, %v802, %v824
        %vm827 = vcmask 1043459
        %v828 = vsel %vm827, %v806, %v826
        %vm829 = vcmask 1044484
        %v830 = vsel %vm829, %v810, %v828
        %vm831 = vcmask 1045509
        %v832 = vsel %vm831, %v814, %v830
        %vm833 = vcmask 1046534
        %v834 = vsel %vm833, %v818, %v832
        %vm835 = vcmask 1047559
        %v836 = vsel %vm835, %v822, %v834
        %v838 = vmax.f32 %v756, %v836
        %v839 = vsub.f32 %v756, %v838
        %v840 = vmul.f32 %v839, 1.442695
        %v841 = vpow.pop %v840
        %v842 = vlaneseq
        %v843 = vshrl.u32 %v842, 7
        %v844 = vsub.s32 0, %v843
        %v845 = vrot.slane %v838, %v844
        %847 = vbcast.lane.b32.xlu0 %v845, 256
        %v848 = vpop.permute.xlu0 %847
        %v849 = vlaneseq
        %v850 = vshrl.u32 %v849, 7
        %v851 = vsub.s32 1, %v850
        %v852 = vrot.slane %v838, %v851
        %854 = vbcast.lane.b32.xlu0 %v852, 256
        %v855 = vpop.permute.xlu0 %854
        %v856 = vlaneseq
        %v857 = vshrl.u32 %v856, 7
        %v858 = vsub.s32 2, %v857
        %v859 = vrot.slane %v838, %v858
        %861 = vbcast.lane.b32.xlu0 %v859, 256
        %v862 = vpop.permute.xlu0 %861
        %v863 = vlaneseq
        %v864 = vshrl.u32 %v863, 7
        %v865 = vsub.s32 3, %v864
        %v866 = vrot.slane %v838, %v865
        %868 = vbcast.lane.b32.xlu0 %v866, 256
        %v869 = vpop.permute.xlu0 %868
        %v870 = vlaneseq
        %v871 = vshrl.u32 %v870, 7
        %v872 = vsub.s32 4, %v871
        %v873 = vrot.slane %v838, %v872
        %875 = vbcast.lane.b32.xlu0 %v873, 256
        %v876 = vpop.permute.xlu0 %875
        %v877 = vlaneseq
        %v878 = vshrl.u32 %v877, 7
        %v879 = vsub.s32 5, %v878
        %v880 = vrot.slane %v838, %v879
        %882 = vbcast.lane.b32.xlu0 %v880, 256
        %v883 = vpop.permute.xlu0 %882
        %v884 = vlaneseq
        %v885 = vshrl.u32 %v884, 7
        %v886 = vsub.s32 6, %v885
        %v887 = vrot.slane %v838, %v886
        %889 = vbcast.lane.b32.xlu0 %v887, 256
        %v890 = vpop.permute.xlu0 %889
        %v891 = vlaneseq
        %v892 = vshrl.u32 %v891, 7
        %v893 = vsub.s32 7, %v892
        %v894 = vrot.slane %v838, %v893
        %896 = vbcast.lane.b32.xlu0 %v894, 256
        %v897 = vpop.permute.xlu0 %896
        %v898 = vsub.f32 %v429, %v848
        %v899 = vsub.f32 %v475, %v855
        %v900 = vsub.f32 %v521, %v862
        %v901 = vsub.f32 %v567, %v869
        %v902 = vsub.f32 %v613, %v876
        %v903 = vsub.f32 %v659, %v883
        %v904 = vsub.f32 %v705, %v890
        %v905 = vsub.f32 %v751, %v897
        %v906 = vmul.f32 %v898, 1.442695
        %v907 = vpow.pop %v906
        %v908 = vmul.f32 %v899, 1.442695
        %v909 = vpow.pop %v908
        %v910 = vmul.f32 %v900, 1.442695
        %v911 = vpow.pop %v910
        %v912 = vmul.f32 %v901, 1.442695
        %v913 = vpow.pop %v912
        %v914 = vmul.f32 %v902, 1.442695
        %v915 = vpow.pop %v914
        %v916 = vmul.f32 %v903, 1.442695
        %v917 = vpow.pop %v916
        %v918 = vmul.f32 %v904, 1.442695
        %v919 = vpow.pop %v918
        %v920 = vmul.f32 %v905, 1.442695
        %v921 = vpow.pop %v920
        %v922 = vld [vmem:[#allocation3] sm:$0xff]
        %v923 = vmul.f32 %v841, %v922
        %v924 = vsel %vm387, %v907, 0.0
        %925 = vadd.xlane.f32.xlu0 %v924
        %v926 = vpop.xlane.xlu0 %925
        %v927 = vsel %vm387, %v909, 0.0
        %928 = vadd.xlane.f32.xlu0 %v927
        %v929 = vpop.xlane.xlu0 %928
        %v930 = vsel %vm387, %v911, 0.0
        %931 = vadd.xlane.f32.xlu0 %v930
        %v932 = vpop.xlane.xlu0 %931
        %v933 = vsel %vm387, %v913, 0.0
        %934 = vadd.xlane.f32.xlu0 %v933
        %v935 = vpop.xlane.xlu0 %934
        %v936 = vsel %vm387, %v915, 0.0
        %937 = vadd.xlane.f32.xlu0 %v936
        %v938 = vpop.xlane.xlu0 %937
        %v939 = vsel %vm387, %v917, 0.0
        %940 = vadd.xlane.f32.xlu0 %v939
        %v941 = vpop.xlane.xlu0 %940
        %v942 = vsel %vm387, %v919, 0.0
        %943 = vadd.xlane.f32.xlu0 %v942
        %v944 = vpop.xlane.xlu0 %943
        %v945 = vsel %vm387, %v921, 0.0
        %946 = vadd.xlane.f32.xlu0 %v945
        %v947 = vpop.xlane.xlu0 %946
        %v956 = vlaneseq
        %v957 = vshrl.u32 %v956, 7
        %v958 = vsub.s32 %v790, %v957
        %v959 = vrot.slane %v926, %v958
        %v960 = vlaneseq
        %v961 = vshrl.u32 %v960, 7
        %v962 = vsub.s32 %v790, %v961
        %v963 = vrot.slane %v929, %v962
        %v964 = vlaneseq
        %v965 = vshrl.u32 %v964, 7
        %v966 = vsub.s32 %v790, %v965
        %v967 = vrot.slane %v932, %v966
        %v968 = vlaneseq
        %v969 = vshrl.u32 %v968, 7
        %v970 = vsub.s32 %v790, %v969
        %v971 = vrot.slane %v935, %v970
        %v972 = vlaneseq
        %v973 = vshrl.u32 %v972, 7
        %v974 = vsub.s32 %v790, %v973
        %v975 = vrot.slane %v938, %v974
        %v976 = vlaneseq
        %v977 = vshrl.u32 %v976, 7
        %v978 = vsub.s32 %v790, %v977
        %v979 = vrot.slane %v941, %v978
        %v980 = vlaneseq
        %v981 = vshrl.u32 %v980, 7
        %v982 = vsub.s32 %v790, %v981
        %v983 = vrot.slane %v944, %v982
        %v984 = vlaneseq
        %v985 = vshrl.u32 %v984, 7
        %v986 = vsub.s32 %v790, %v985
        %v987 = vrot.slane %v947, %v986
        %v988 = vsel %vm823, %v963, %v959
        %v989 = vsel %vm825, %v967, %v988
        %v990 = vsel %vm827, %v971, %v989
        %v991 = vsel %vm829, %v975, %v990
        %v992 = vsel %vm831, %v979, %v991
        %v993 = vsel %vm833, %v983, %v992
        %v994 = vsel %vm835, %v987, %v993
        %v996 = vadd.f32 %v923, %v994
        %997 = vst.msk [vmem:[#allocation3] sm:$0xff] %vm387, %v996
        %v998 = vlaneseq
        %v999 = vshrl.u32 %v998, 7
        %v1000 = vsub.s32 0, %v999
        %v1001 = vrot.slane %v841, %v1000
        %1003 = vbcast.lane.b32.xlu0 %v1001, 256
        %v1004 = vpop.permute.xlu0 %1003
        %v1005 = vlaneseq
        %v1006 = vshrl.u32 %v1005, 7
        %v1007 = vsub.s32 1, %v1006
        %v1008 = vrot.slane %v841, %v1007
        %1010 = vbcast.lane.b32.xlu0 %v1008, 256
        %v1011 = vpop.permute.xlu0 %1010
        %v1012 = vlaneseq
        %v1013 = vshrl.u32 %v1012, 7
        %v1014 = vsub.s32 2, %v1013
        %v1015 = vrot.slane %v841, %v1014
        %1017 = vbcast.lane.b32.xlu0 %v1015, 256
        %v1018 = vpop.permute.xlu0 %1017
        %v1019 = vlaneseq
        %v1020 = vshrl.u32 %v1019, 7
        %v1021 = vsub.s32 3, %v1020
        %v1022 = vrot.slane %v841, %v1021
        %1024 = vbcast.lane.b32.xlu0 %v1022, 256
        %v1025 = vpop.permute.xlu0 %1024
        %v1026 = vlaneseq
        %v1027 = vshrl.u32 %v1026, 7
        %v1028 = vsub.s32 4, %v1027
        %v1029 = vrot.slane %v841, %v1028
        %1031 = vbcast.lane.b32.xlu0 %v1029, 256
        %v1032 = vpop.permute.xlu0 %1031
        %v1033 = vlaneseq
        %v1034 = vshrl.u32 %v1033, 7
        %v1035 = vsub.s32 5, %v1034
        %v1036 = vrot.slane %v841, %v1035
        %1038 = vbcast.lane.b32.xlu0 %v1036, 256
        %v1039 = vpop.permute.xlu0 %1038
        %v1040 = vlaneseq
        %v1041 = vshrl.u32 %v1040, 7
        %v1042 = vsub.s32 6, %v1041
        %v1043 = vrot.slane %v841, %v1042
        %1045 = vbcast.lane.b32.xlu0 %v1043, 256
        %v1046 = vpop.permute.xlu0 %1045
        %v1047 = vlaneseq
        %v1048 = vshrl.u32 %v1047, 7
        %v1049 = vsub.s32 7, %v1048
        %v1050 = vrot.slane %v841, %v1049
        %1052 = vbcast.lane.b32.xlu0 %v1050, 256
        %v1053 = vpop.permute.xlu0 %1052
        %v1054 = vld [vmem:[#allocation4] sm:$0xff]
        %v1055 = vld [vmem:[#allocation4 + $0x8] sm:$0xff]
        %v1056 = vld [vmem:[#allocation4 + $0x10] sm:$0xff]
        %v1057 = vld [vmem:[#allocation4 + $0x18] sm:$0xff]
        %v1058 = vld [vmem:[#allocation4 + $0x20] sm:$0xff]
        %v1059 = vld [vmem:[#allocation4 + $0x28] sm:$0xff]
        %v1060 = vld [vmem:[#allocation4 + $0x30] sm:$0xff]
        %v1061 = vld [vmem:[#allocation4 + $0x38] sm:$0xff]
        %v1062 = vmul.f32 %v1004, %v1054
        %v1063 = vmul.f32 %v1011, %v1055
        %v1064 = vmul.f32 %v1018, %v1056
        %v1065 = vmul.f32 %v1025, %v1057
        %v1066 = vmul.f32 %v1032, %v1058
        %v1067 = vmul.f32 %v1039, %v1059
        %v1068 = vmul.f32 %v1046, %v1060
        %v1069 = vmul.f32 %v1053, %v1061
        %v1070 = vpack.c.bf16 %v907, %v907
        %v1071 = vpack.c.bf16 %v909, %v909
        %v1072 = vpack.c.bf16 %v911, %v911
        %v1073 = vpack.c.bf16 %v913, %v913
        %v1074 = vpack.c.bf16 %v915, %v915
        %v1075 = vpack.c.bf16 %v917, %v917
        %v1076 = vpack.c.bf16 %v919, %v919
        %v1077 = vpack.c.bf16 %v921, %v921
        %v1078 = vld [vmem:[%s341] sm:$0xf]
        %v1079 = vld [vmem:[%s341 + $0x4] sm:$0xf]
        %v1080 = vld [vmem:[%s341 + $0x8] sm:$0xf]
        %v1081 = vld [vmem:[%s341 + $0xc] sm:$0xf]
        %v1082 = vld [vmem:[%s341 + $0x10] sm:$0xf]
        %v1083 = vld [vmem:[%s341 + $0x14] sm:$0xf]
        %v1084 = vld [vmem:[%s341 + $0x18] sm:$0xf]
        %v1085 = vld [vmem:[%s341 + $0x1c] sm:$0xf]
        %v1087 = vsel %vm387, %v1070, 0
        %vm1089 = vcmask 1043456
        %v1091 = vsel %vm1089, %v1078, 0
        %1093 = vmatprep.subr.bf16.mxu0 0
        %1094 = vmatpush1.bf16.msra.mxu0 %v1091
        %1095 = vmatprep.subr.bf16.mxu0 0
        %1096 = vmatpush1.bf16.msra.mxu0 0
        %1097 = vmatprep.subr.bf16.mxu0 0
        %1098 = vmatpush1.bf16.msra.mxu0 0
        %1099 = vmatprep.subr.bf16.mxu0 0
        %1100 = vmatpush1.bf16.msra.mxu0 0
        %1101 = vmatprep.subr.bf16.mxu0 0
        %1102 = vmatpush1.bf16.msra.mxu0 0
        %1103 = vmatprep.subr.bf16.mxu0 0
        %1104 = vmatpush1.bf16.msra.mxu0 0
        %1105 = vmatprep.subr.bf16.mxu0 0
        %1106 = vmatpush1.bf16.msra.mxu0 0
        %1107 = vmatprep.subr.bf16.mxu0 0
        %1108 = vmatpush1.bf16.msra.mxu0 0
        %1109 = vmatprep.subr.bf16.mxu0 0
        %1110 = vmatpush1.bf16.msra.mxu0 0
        %1111 = vmatprep.subr.bf16.mxu0 0
        %1112 = vmatpush1.bf16.msra.mxu0 0
        %1113 = vmatprep.subr.bf16.mxu0 0
        %1114 = vmatpush1.bf16.msra.mxu0 0
        %1115 = vmatprep.subr.bf16.mxu0 0
        %1116 = vmatpush1.bf16.msra.mxu0 0
        %1117 = vmatprep.subr.bf16.mxu0 0
        %1118 = vmatpush1.bf16.msra.mxu0 0
        %1119 = vmatprep.subr.bf16.mxu0 0
        %1120 = vmatpush1.bf16.msra.mxu0 0
        %1121 = vmatprep.subr.bf16.mxu0 0
        %1122 = vmatpush1.bf16.msra.mxu0 0
        %1123 = vmatprep.subr.bf16.mxu0 0
        %1124 = vmatpush1.bf16.msra.mxu0 0
        %1125 = vmatprep.mubr.bf16.mxu0 0
        %1126 = vmatmul.mubr.bf16.gmra.mrb[0].mxu0 %v1087
        %v1127 = vpop.f32.mrb[0].mxu0
        %v1128 = vadd.f32 0.0, %v1127
        %v1129 = vpop.f32.mrb[0].mxu0
        %v1130 = vpop.f32.mrb[0].mxu0
        %v1131 = vpop.f32.mrb[0].mxu0
        %1132 = vdwg.mxu0
        %v1134 = vsel %vm387, %v1071, 0
        %v1137 = vsel %vm1089, %v1079, 0
        %1139 = vmatprep.subr.bf16.mxu0 0
        %1140 = vmatpush1.bf16.msra.mxu0 %v1137
        %1141 = vmatprep.subr.bf16.mxu0 0
        %1142 = vmatpush1.bf16.msra.mxu0 0
        %1143 = vmatprep.subr.bf16.mxu0 0
        %1144 = vmatpush1.bf16.msra.mxu0 0
        %1145 = vmatprep.subr.bf16.mxu0 0
        %1146 = vmatpush1.bf16.msra.mxu0 0
        %1147 = vmatprep.subr.bf16.mxu0 0
        %1148 = vmatpush1.bf16.msra.mxu0 0
        %1149 = vmatprep.subr.bf16.mxu0 0
        %1150 = vmatpush1.bf16.msra.mxu0 0
        %1151 = vmatprep.subr.bf16.mxu0 0
        %1152 = vmatpush1.bf16.msra.mxu0 0
        %1153 = vmatprep.subr.bf16.mxu0 0
        %1154 = vmatpush1.bf16.msra.mxu0 0
        %1155 = vmatprep.subr.bf16.mxu0 0
        %1156 = vmatpush1.bf16.msra.mxu0 0
        %1157 = vmatprep.subr.bf16.mxu0 0
        %1158 = vmatpush1.bf16.msra.mxu0 0
        %1159 = vmatprep.subr.bf16.mxu0 0
        %1160 = vmatpush1.bf16.msra.mxu0 0
        %1161 = vmatprep.subr.bf16.mxu0 0
        %1162 = vmatpush1.bf16.msra.mxu0 0
        %1163 = vmatprep.subr.bf16.mxu0 0
        %1164 = vmatpush1.bf16.msra.mxu0 0
        %1165 = vmatprep.subr.bf16.mxu0 0
        %1166 = vmatpush1.bf16.msra.mxu0 0
        %1167 = vmatprep.subr.bf16.mxu0 0
        %1168 = vmatpush1.bf16.msra.mxu0 0
        %1169 = vmatprep.subr.bf16.mxu0 0
        %1170 = vmatpush1.bf16.msra.mxu0 0
        %1171 = vmatprep.mubr.bf16.mxu0 0
        %1172 = vmatmul.mubr.bf16.gmra.mrb[0].mxu0 %v1134
        %v1173 = vpop.f32.mrb[0].mxu0
        %v1174 = vadd.f32 0.0, %v1173
        %v1175 = vpop.f32.mrb[0].mxu0
        %v1176 = vpop.f32.mrb[0].mxu0
        %v1177 = vpop.f32.mrb[0].mxu0
        %1178 = vdwg.mxu0
        %v1180 = vsel %vm387, %v1072, 0
        %v1183 = vsel %vm1089, %v1080, 0
        %1185 = vmatprep.subr.bf16.mxu0 0
        %1186 = vmatpush1.bf16.msra.mxu0 %v1183
        %1187 = vmatprep.subr.bf16.mxu0 0
        %1188 = vmatpush1.bf16.msra.mxu0 0
        %1189 = vmatprep.subr.bf16.mxu0 0
        %1190 = vmatpush1.bf16.msra.mxu0 0
        %1191 = vmatprep.subr.bf16.mxu0 0
        %1192 = vmatpush1.bf16.msra.mxu0 0
        %1193 = vmatprep.subr.bf16.mxu0 0
        %1194 = vmatpush1.bf16.msra.mxu0 0
        %1195 = vmatprep.subr.bf16.mxu0 0
        %1196 = vmatpush1.bf16.msra.mxu0 0
        %1197 = vmatprep.subr.bf16.mxu0 0
        %1198 = vmatpush1.bf16.msra.mxu0 0
        %1199 = vmatprep.subr.bf16.mxu0 0
        %1200 = vmatpush1.bf16.msra.mxu0 0
        %1201 = vmatprep.subr.bf16.mxu0 0
        %1202 = vmatpush1.bf16.msra.mxu0 0
        %1203 = vmatprep.subr.bf16.mxu0 0
        %1204 = vmatpush1.bf16.msra.mxu0 0
        %1205 = vmatprep.subr.bf16.mxu0 0
        %1206 = vmatpush1.bf16.msra.mxu0 0
        %1207 = vmatprep.subr.bf16.mxu0 0
        %1208 = vmatpush1.bf16.msra.mxu0 0
        %1209 = vmatprep.subr.bf16.mxu0 0
        %1210 = vmatpush1.bf16.msra.mxu0 0
        %1211 = vmatprep.subr.bf16.mxu0 0
        %1212 = vmatpush1.bf16.msra.mxu0 0
        %1213 = vmatprep.subr.bf16.mxu0 0
        %1214 = vmatpush1.bf16.msra.mxu0 0
        %1215 = vmatprep.subr.bf16.mxu0 0
        %1216 = vmatpush1.bf16.msra.mxu0 0
        %1217 = vmatprep.mubr.bf16.mxu0 0
        %1218 = vmatmul.mubr.bf16.gmra.mrb[0].mxu0 %v1180
        %v1219 = vpop.f32.mrb[0].mxu0
        %v1220 = vadd.f32 0.0, %v1219
        %v1221 = vpop.f32.mrb[0].mxu0
        %v1222 = vpop.f32.mrb[0].mxu0
        %v1223 = vpop.f32.mrb[0].mxu0
        %1224 = vdwg.mxu0
        %v1226 = vsel %vm387, %v1073, 0
        %v1229 = vsel %vm1089, %v1081, 0
        %1231 = vmatprep.subr.bf16.mxu0 0
        %1232 = vmatpush1.bf16.msra.mxu0 %v1229
        %1233 = vmatprep.subr.bf16.mxu0 0
        %1234 = vmatpush1.bf16.msra.mxu0 0
        %1235 = vmatprep.subr.bf16.mxu0 0
        %1236 = vmatpush1.bf16.msra.mxu0 0
        %1237 = vmatprep.subr.bf16.mxu0 0
        %1238 = vmatpush1.bf16.msra.mxu0 0
        %1239 = vmatprep.subr.bf16.mxu0 0
        %1240 = vmatpush1.bf16.msra.mxu0 0
        %1241 = vmatprep.subr.bf16.mxu0 0
        %1242 = vmatpush1.bf16.msra.mxu0 0
        %1243 = vmatprep.subr.bf16.mxu0 0
        %1244 = vmatpush1.bf16.msra.mxu0 0
        %1245 = vmatprep.subr.bf16.mxu0 0
        %1246 = vmatpush1.bf16.msra.mxu0 0
        %1247 = vmatprep.subr.bf16.mxu0 0
        %1248 = vmatpush1.bf16.msra.mxu0 0
        %1249 = vmatprep.subr.bf16.mxu0 0
        %1250 = vmatpush1.bf16.msra.mxu0 0
        %1251 = vmatprep.subr.bf16.mxu0 0
        %1252 = vmatpush1.bf16.msra.mxu0 0
        %1253 = vmatprep.subr.bf16.mxu0 0
        %1254 = vmatpush1.bf16.msra.mxu0 0
        %1255 = vmatprep.subr.bf16.mxu0 0
        %1256 = vmatpush1.bf16.msra.mxu0 0
        %1257 = vmatprep.subr.bf16.mxu0 0
        %1258 = vmatpush1.bf16.msra.mxu0 0
        %1259 = vmatprep.subr.bf16.mxu0 0
        %1260 = vmatpush1.bf16.msra.mxu0 0
        %1261 = vmatprep.subr.bf16.mxu0 0
        %1262 = vmatpush1.bf16.msra.mxu0 0
        %1263 = vmatprep.mubr.bf16.mxu0 0
        %1264 = vmatmul.mubr.bf16.gmra.mrb[0].mxu0 %v1226
        %v1265 = vpop.f32.mrb[0].mxu0
        %v1266 = vadd.f32 0.0, %v1265
        %v1267 = vpop.f32.mrb[0].mxu0
        %v1268 = vpop.f32.mrb[0].mxu0
        %v1269 = vpop.f32.mrb[0].mxu0
        %1270 = vdwg.mxu0
        %v1272 = vsel %vm387, %v1074, 0
        %v1275 = vsel %vm1089, %v1082, 0
        %1277 = vmatprep.subr.bf16.mxu0 0
        %1278 = vmatpush1.bf16.msra.mxu0 %v1275
        %1279 = vmatprep.subr.bf16.mxu0 0
        %1280 = vmatpush1.bf16.msra.mxu0 0
        %1281 = vmatprep.subr.bf16.mxu0 0
        %1282 = vmatpush1.bf16.msra.mxu0 0
        %1283 = vmatprep.subr.bf16.mxu0 0
        %1284 = vmatpush1.bf16.msra.mxu0 0
        %1285 = vmatprep.subr.bf16.mxu0 0
        %1286 = vmatpush1.bf16.msra.mxu0 0
        %1287 = vmatprep.subr.bf16.mxu0 0
        %1288 = vmatpush1.bf16.msra.mxu0 0
        %1289 = vmatprep.subr.bf16.mxu0 0
        %1290 = vmatpush1.bf16.msra.mxu0 0
        %1291 = vmatprep.subr.bf16.mxu0 0
        %1292 = vmatpush1.bf16.msra.mxu0 0
        %1293 = vmatprep.subr.bf16.mxu0 0
        %1294 = vmatpush1.bf16.msra.mxu0 0
        %1295 = vmatprep.subr.bf16.mxu0 0
        %1296 = vmatpush1.bf16.msra.mxu0 0
        %1297 = vmatprep.subr.bf16.mxu0 0
        %1298 = vmatpush1.bf16.msra.mxu0 0
        %1299 = vmatprep.subr.bf16.mxu0 0
        %1300 = vmatpush1.bf16.msra.mxu0 0
        %1301 = vmatprep.subr.bf16.mxu0 0
        %1302 = vmatpush1.bf16.msra.mxu0 0
        %1303 = vmatprep.subr.bf16.mxu0 0
        %1304 = vmatpush1.bf16.msra.mxu0 0
        %1305 = vmatprep.subr.bf16.mxu0 0
        %1306 = vmatpush1.bf16.msra.mxu0 0
        %1307 = vmatprep.subr.bf16.mxu0 0
        %1308 = vmatpush1.bf16.msra.mxu0 0
        %1309 = vmatprep.mubr.bf16.mxu0 0
        %1310 = vmatmul.mubr.bf16.gmra.mrb[0].mxu0 %v1272
        %v1311 = vpop.f32.mrb[0].mxu0
        %v1312 = vadd.f32 0.0, %v1311
        %v1313 = vpop.f32.mrb[0].mxu0
        %v1314 = vpop.f32.mrb[0].mxu0
        %v1315 = vpop.f32.mrb[0].mxu0
        %1316 = vdwg.mxu0
        %v1318 = vsel %vm387, %v1075, 0
        %v1321 = vsel %vm1089, %v1083, 0
        %1323 = vmatprep.subr.bf16.mxu0 0
        %1324 = vmatpush1.bf16.msra.mxu0 %v1321
        %1325 = vmatprep.subr.bf16.mxu0 0
        %1326 = vmatpush1.bf16.msra.mxu0 0
        %1327 = vmatprep.subr.bf16.mxu0 0
        %1328 = vmatpush1.bf16.msra.mxu0 0
        %1329 = vmatprep.subr.bf16.mxu0 0
        %1330 = vmatpush1.bf16.msra.mxu0 0
        %1331 = vmatprep.subr.bf16.mxu0 0
        %1332 = vmatpush1.bf16.msra.mxu0 0
        %1333 = vmatprep.subr.bf16.mxu0 0
        %1334 = vmatpush1.bf16.msra.mxu0 0
        %1335 = vmatprep.subr.bf16.mxu0 0
        %1336 = vmatpush1.bf16.msra.mxu0 0
        %1337 = vmatprep.subr.bf16.mxu0 0
        %1338 = vmatpush1.bf16.msra.mxu0 0
        %1339 = vmatprep.subr.bf16.mxu0 0
        %1340 = vmatpush1.bf16.msra.mxu0 0
        %1341 = vmatprep.subr.bf16.mxu0 0
        %1342 = vmatpush1.bf16.msra.mxu0 0
        %1343 = vmatprep.subr.bf16.mxu0 0
        %1344 = vmatpush1.bf16.msra.mxu0 0
        %1345 = vmatprep.subr.bf16.mxu0 0
        %1346 = vmatpush1.bf16.msra.mxu0 0
        %1347 = vmatprep.subr.bf16.mxu0 0
        %1348 = vmatpush1.bf16.msra.mxu0 0
        %1349 = vmatprep.subr.bf16.mxu0 0
        %1350 = vmatpush1.bf16.msra.mxu0 0
        %1351 = vmatprep.subr.bf16.mxu0 0
        %1352 = vmatpush1.bf16.msra.mxu0 0
        %1353 = vmatprep.subr.bf16.mxu0 0
        %1354 = vmatpush1.bf16.msra.mxu0 0
        %1355 = vmatprep.mubr.bf16.mxu0 0
        %1356 = vmatmul.mubr.bf16.gmra.mrb[0].mxu0 %v1318
        %v1357 = vpop.f32.mrb[0].mxu0
        %v1358 = vadd.f32 0.0, %v1357
        %v1359 = vpop.f32.mrb[0].mxu0
        %v1360 = vpop.f32.mrb[0].mxu0
        %v1361 = vpop.f32.mrb[0].mxu0
        %1362 = vdwg.mxu0
        %v1364 = vsel %vm387, %v1076, 0
        %v1367 = vsel %vm1089, %v1084, 0
        %1369 = vmatprep.subr.bf16.mxu0 0
        %1370 = vmatpush1.bf16.msra.mxu0 %v1367
        %1371 = vmatprep.subr.bf16.mxu0 0
        %1372 = vmatpush1.bf16.msra.mxu0 0
        %1373 = vmatprep.subr.bf16.mxu0 0
        %1374 = vmatpush1.bf16.msra.mxu0 0
        %1375 = vmatprep.subr.bf16.mxu0 0
        %1376 = vmatpush1.bf16.msra.mxu0 0
        %1377 = vmatprep.subr.bf16.mxu0 0
        %1378 = vmatpush1.bf16.msra.mxu0 0
        %1379 = vmatprep.subr.bf16.mxu0 0
        %1380 = vmatpush1.bf16.msra.mxu0 0
        %1381 = vmatprep.subr.bf16.mxu0 0
        %1382 = vmatpush1.bf16.msra.mxu0 0
        %1383 = vmatprep.subr.bf16.mxu0 0
        %1384 = vmatpush1.bf16.msra.mxu0 0
        %1385 = vmatprep.subr.bf16.mxu0 0
        %1386 = vmatpush1.bf16.msra.mxu0 0
        %1387 = vmatprep.subr.bf16.mxu0 0
        %1388 = vmatpush1.bf16.msra.mxu0 0
        %1389 = vmatprep.subr.bf16.mxu0 0
        %1390 = vmatpush1.bf16.msra.mxu0 0
        %1391 = vmatprep.subr.bf16.mxu0 0
        %1392 = vmatpush1.bf16.msra.mxu0 0
        %1393 = vmatprep.subr.bf16.mxu0 0
        %1394 = vmatpush1.bf16.msra.mxu0 0
        %1395 = vmatprep.subr.bf16.mxu0 0
        %1396 = vmatpush1.bf16.msra.mxu0 0
        %1397 = vmatprep.subr.bf16.mxu0 0
        %1398 = vmatpush1.bf16.msra.mxu0 0
        %1399 = vmatprep.subr.bf16.mxu0 0
        %1400 = vmatpush1.bf16.msra.mxu0 0
        %1401 = vmatprep.mubr.bf16.mxu0 0
        %1402 = vmatmul.mubr.bf16.gmra.mrb[0].mxu0 %v1364
        %v1403 = vpop.f32.mrb[0].mxu0
        %v1404 = vadd.f32 0.0, %v1403
        %v1405 = vpop.f32.mrb[0].mxu0
        %v1406 = vpop.f32.mrb[0].mxu0
        %v1407 = vpop.f32.mrb[0].mxu0
        %1408 = vdwg.mxu0
        %v1410 = vsel %vm387, %v1077, 0
        %v1413 = vsel %vm1089, %v1085, 0
        %1415 = vmatprep.subr.bf16.mxu0 0
        %1416 = vmatpush1.bf16.msra.mxu0 %v1413
        %1417 = vmatprep.subr.bf16.mxu0 0
        %1418 = vmatpush1.bf16.msra.mxu0 0
        %1419 = vmatprep.subr.bf16.mxu0 0
        %1420 = vmatpush1.bf16.msra.mxu0 0
        %1421 = vmatprep.subr.bf16.mxu0 0
        %1422 = vmatpush1.bf16.msra.mxu0 0
        %1423 = vmatprep.subr.bf16.mxu0 0
        %1424 = vmatpush1.bf16.msra.mxu0 0
        %1425 = vmatprep.subr.bf16.mxu0 0
        %1426 = vmatpush1.bf16.msra.mxu0 0
        %1427 = vmatprep.subr.bf16.mxu0 0
        %1428 = vmatpush1.bf16.msra.mxu0 0
        %1429 = vmatprep.subr.bf16.mxu0 0
        %1430 = vmatpush1.bf16.msra.mxu0 0
        %1431 = vmatprep.subr.bf16.mxu0 0
        %1432 = vmatpush1.bf16.msra.mxu0 0
        %1433 = vmatprep.subr.bf16.mxu0 0
        %1434 = vmatpush1.bf16.msra.mxu0 0
        %1435 = vmatprep.subr.bf16.mxu0 0
        %1436 = vmatpush1.bf16.msra.mxu0 0
        %1437 = vmatprep.subr.bf16.mxu0 0
        %1438 = vmatpush1.bf16.msra.mxu0 0
        %1439 = vmatprep.subr.bf16.mxu0 0
        %1440 = vmatpush1.bf16.msra.mxu0 0
        %1441 = vmatprep.subr.bf16.mxu0 0
        %1442 = vmatpush1.bf16.msra.mxu0 0
        %1443 = vmatprep.subr.bf16.mxu0 0
        %1444 = vmatpush1.bf16.msra.mxu0 0
        %1445 = vmatprep.subr.bf16.mxu0 0
        %1446 = vmatpush1.bf16.msra.mxu0 0
        %1447 = vmatprep.mubr.bf16.mxu0 0
        %1448 = vmatmul.mubr.bf16.gmra.mrb[0].mxu0 %v1410
        %v1449 = vpop.f32.mrb[0].mxu0
        %v1450 = vadd.f32 0.0, %v1449
        %v1451 = vpop.f32.mrb[0].mxu0
        %v1452 = vpop.f32.mrb[0].mxu0
        %v1453 = vpop.f32.mrb[0].mxu0
        %1454 = vdwg.mxu0
        %v1455 = vadd.f32 %v1062, %v1128
        %v1456 = vadd.f32 %v1063, %v1174
        %v1457 = vadd.f32 %v1064, %v1220
        %v1458 = vadd.f32 %v1065, %v1266
        %v1459 = vadd.f32 %v1066, %v1312
        %v1460 = vadd.f32 %v1067, %v1358
        %v1461 = vadd.f32 %v1068, %v1404
        %v1462 = vadd.f32 %v1069, %v1450
        %1463 = vst.msk [vmem:[#allocation4] sm:$0xff] %vm387, %v1455
        %1464 = vst.msk [vmem:[#allocation4 + $0x8] sm:$0xff] %vm387, %v1456
        %1465 = vst.msk [vmem:[#allocation4 + $0x10] sm:$0xff] %vm387, %v1457
        %1466 = vst.msk [vmem:[#allocation4 + $0x18] sm:$0xff] %vm387, %v1458
        %1467 = vst.msk [vmem:[#allocation4 + $0x20] sm:$0xff] %vm387, %v1459
        %1468 = vst.msk [vmem:[#allocation4 + $0x28] sm:$0xff] %vm387, %v1460
        %1469 = vst.msk [vmem:[#allocation4 + $0x30] sm:$0xff] %vm387, %v1461
        %1470 = vst.msk [vmem:[#allocation4 + $0x38] sm:$0xff] %vm387, %v1462
        %1471 = vst.msk [vmem:[#allocation2] sm:$0xff] %vm387, %v838
      $region48: #{gpt_forward.9} parent=39 // pred_fallthru
        _
      %p1472 = scmp.eq.s32.totalorder %s23, %s22
      // Predicated region
      $region49: #{gpt_forward.9} parent=39 // pred_check
        %p1473 = pneg %p1472
      $region50: #{gpt_forward.9} parent=39 // pred_check_branch
        %1475 = sbr.rel (%p1473) target = $region52
      $region51: #{gpt_forward.9} parent=39 // pred_region
        %v1476 = vld [vmem:[%s319] sm:$0xf]
        %v1477 = vld [vmem:[%s319 + $0x4] sm:$0xf]
        %v1478 = vld [vmem:[%s319 + $0x8] sm:$0xf]
        %v1479 = vld [vmem:[%s319 + $0xc] sm:$0xf]
        %v1480 = vld [vmem:[%s319 + $0x10] sm:$0xf]
        %v1481 = vld [vmem:[%s319 + $0x14] sm:$0xf]
        %v1482 = vld [vmem:[%s319 + $0x18] sm:$0xf]
        %v1483 = vld [vmem:[%s319 + $0x1c] sm:$0xf]
        %v1484 = vld [vmem:[%s329] sm:$0xf]
        %v1485 = vld [vmem:[%s329 + $0x4] sm:$0xf]
        %v1486 = vld [vmem:[%s329 + $0x8] sm:$0xf]
        %v1487 = vld [vmem:[%s329 + $0xc] sm:$0xf]
        %v1488 = vld [vmem:[%s329 + $0x10] sm:$0xf]
        %v1489 = vld [vmem:[%s329 + $0x14] sm:$0xf]
        %v1490 = vld [vmem:[%s329 + $0x18] sm:$0xf]
        %v1491 = vld [vmem:[%s329 + $0x1c] sm:$0xf]
        %vm1492 = vcmask 64512
        %v1494 = vsel %vm1492, %v1476, 0
        %v1497 = vsel %vm1492, %v1484, 0
        %1499 = vmatprep.subr.bf16.mxu0 0
        %1500 = vmatpush1.bf16.xpose.msra.mxu0 %v1497
        %1501 = vmatprep.subr.bf16.mxu0 0
        %1502 = vmatpush1.bf16.xpose.msra.mxu0 0
        %1503 = vmatprep.subr.bf16.mxu0 0
        %1504 = vmatpush1.bf16.xpose.msra.mxu0 0
        %1505 = vmatprep.subr.bf16.mxu0 0
        %1506 = vmatpush1.bf16.xpose.msra.mxu0 0
        %1507 = vmatprep.subr.bf16.mxu0 0
        %1508 = vmatpush1.bf16.xpose.msra.mxu0 0
        %1509 = vmatprep.subr.bf16.mxu0 0
        %1510 = vmatpush1.bf16.xpose.msra.mxu0 0
        %1511 = vmatprep.subr.bf16.mxu0 0
        %1512 = vmatpush1.bf16.xpose.msra.mxu0 0
        %1513 = vmatprep.subr.bf16.mxu0 0
        %1514 = vmatpush1.bf16.xpose.msra.mxu0 0
        %1515 = vmatprep.subr.bf16.mxu0 0
        %1516 = vmatpush1.bf16.xpose.msra.mxu0 0
        %1517 = vmatprep.subr.bf16.mxu0 0
        %1518 = vmatpush1.bf16.xpose.msra.mxu0 0
        %1519 = vmatprep.subr.bf16.mxu0 0
        %1520 = vmatpush1.bf16.xpose.msra.mxu0 0
        %1521 = vmatprep.subr.bf16.mxu0 0
        %1522 = vmatpush1.bf16.xpose.msra.mxu0 0
        %1523 = vmatprep.subr.bf16.mxu0 0
        %1524 = vmatpush1.bf16.xpose.msra.mxu0 0
        %1525 = vmatprep.subr.bf16.mxu0 0
        %1526 = vmatpush1.bf16.xpose.msra.mxu0 0
        %1527 = vmatprep.subr.bf16.mxu0 0
        %1528 = vmatpush1.bf16.xpose.msra.mxu0 0
        %1529 = vmatprep.subr.bf16.mxu0 0
        %1530 = vmatpush1.bf16.xpose.msra.mxu0 0
        %1531 = vmatprep.mubr.bf16.mxu0 0
        %1532 = vmatmul.mubr.bf16.gmra.mrb[0].mxu0 %v1494
        %v1533 = vpop.f32.mrb[0].mxu0
        %v1534 = vadd.f32 0.0, %v1533
        %v1535 = vpop.f32.mrb[0].mxu0
        %v1536 = vpop.f32.mrb[0].mxu0
        %v1537 = vpop.f32.mrb[0].mxu0
        %1538 = vdwg.mxu0
        %v1540 = vsel %vm1492, %v1477, 0
        %v1543 = vsel %vm1492, %v1485, 0
        %1545 = vmatprep.subr.bf16.mxu0 0
        %1546 = vmatpush1.bf16.xpose.msra.mxu0 %v1543
        %1547 = vmatprep.subr.bf16.mxu0 0
        %1548 = vmatpush1.bf16.xpose.msra.mxu0 0
        %1549 = vmatprep.subr.bf16.mxu0 0
        %1550 = vmatpush1.bf16.xpose.msra.mxu0 0
        %1551 = vmatprep.subr.bf16.mxu0 0
        %1552 = vmatpush1.bf16.xpose.msra.mxu0 0
        %1553 = vmatprep.subr.bf16.mxu0 0
        %1554 = vmatpush1.bf16.xpose.msra.mxu0 0
        %1555 = vmatprep.subr.bf16.mxu0 0
        %1556 = vmatpush1.bf16.xpose.msra.mxu0 0
        %1557 = vmatprep.subr.bf16.mxu0 0
        %1558 = vmatpush1.bf16.xpose.msra.mxu0 0
        %1559 = vmatprep.subr.bf16.mxu0 0
        %1560 = vmatpush1.bf16.xpose.msra.mxu0 0
        %1561 = vmatprep.subr.bf16.mxu0 0
        %1562 = vmatpush1.bf16.xpose.msra.mxu0 0
        %1563 = vmatprep.subr.bf16.mxu0 0
        %1564 = vmatpush1.bf16.xpose.msra.mxu0 0
        %1565 = vmatprep.subr.bf16.mxu0 0
        %1566 = vmatpush1.bf16.xpose.msra.mxu0 0
        %1567 = vmatprep.subr.bf16.mxu0 0
        %1568 = vmatpush1.bf16.xpose.msra.mxu0 0
        %1569 = vmatprep.subr.bf16.mxu0 0
        %1570 = vmatpush1.bf16.xpose.msra.mxu0 0
        %1571 = vmatprep.subr.bf16.mxu0 0
        %1572 = vmatpush1.bf16.xpose.msra.mxu0 0
        %1573 = vmatprep.subr.bf16.mxu0 0
        %1574 = vmatpush1.bf16.xpose.msra.mxu0 0
        %1575 = vmatprep.subr.bf16.mxu0 0
        %1576 = vmatpush1.bf16.xpose.msra.mxu0 0
        %1577 = vmatprep.mubr.bf16.mxu0 0
        %1578 = vmatmul.mubr.bf16.gmra.mrb[0].mxu0 %v1540
        %v1579 = vpop.f32.mrb[0].mxu0
        %v1580 = vadd.f32 0.0, %v1579
        %v1581 = vpop.f32.mrb[0].mxu0
        %v1582 = vpop.f32.mrb[0].mxu0
        %v1583 = vpop.f32.mrb[0].mxu0
        %1584 = vdwg.mxu0
        %v1586 = vsel %vm1492, %v1478, 0
        %v1589 = vsel %vm1492, %v1486, 0
        %1591 = vmatprep.subr.bf16.mxu0 0
        %1592 = vmatpush1.bf16.xpose.msra.mxu0 %v1589
        %1593 = vmatprep.subr.bf16.mxu0 0
        %1594 = vmatpush1.bf16.xpose.msra.mxu0 0
        %1595 = vmatprep.subr.bf16.mxu0 0
        %1596 = vmatpush1.bf16.xpose.msra.mxu0 0
        %1597 = vmatprep.subr.bf16.mxu0 0
        %1598 = vmatpush1.bf16.xpose.msra.mxu0 0
        %1599 = vmatprep.subr.bf16.mxu0 0
        %1600 = vmatpush1.bf16.xpose.msra.mxu0 0
        %1601 = vmatprep.subr.bf16.mxu0 0
        %1602 = vmatpush1.bf16.xpose.msra.mxu0 0
        %1603 = vmatprep.subr.bf16.mxu0 0
        %1604 = vmatpush1.bf16.xpose.msra.mxu0 0
        %1605 = vmatprep.subr.bf16.mxu0 0
        %1606 = vmatpush1.bf16.xpose.msra.mxu0 0
        %1607 = vmatprep.subr.bf16.mxu0 0
        %1608 = vmatpush1.bf16.xpose.msra.mxu0 0
        %1609 = vmatprep.subr.bf16.mxu0 0
        %1610 = vmatpush1.bf16.xpose.msra.mxu0 0
        %1611 = vmatprep.subr.bf16.mxu0 0
        %1612 = vmatpush1.bf16.xpose.msra.mxu0 0
        %1613 = vmatprep.subr.bf16.mxu0 0
        %1614 = vmatpush1.bf16.xpose.msra.mxu0 0
        %1615 = vmatprep.subr.bf16.mxu0 0
        %1616 = vmatpush1.bf16.xpose.msra.mxu0 0
        %1617 = vmatprep.subr.bf16.mxu0 0
        %1618 = vmatpush1.bf16.xpose.msra.mxu0 0
        %1619 = vmatprep.subr.bf16.mxu0 0
        %1620 = vmatpush1.bf16.xpose.msra.mxu0 0
        %1621 = vmatprep.subr.bf16.mxu0 0
        %1622 = vmatpush1.bf16.xpose.msra.mxu0 0
        %1623 = vmatprep.mubr.bf16.mxu0 0
        %1624 = vmatmul.mubr.bf16.gmra.mrb[0].mxu0 %v1586
        %v1625 = vpop.f32.mrb[0].mxu0
        %v1626 = vadd.f32 0.0, %v1625
        %v1627 = vpop.f32.mrb[0].mxu0
        %v1628 = vpop.f32.mrb[0].mxu0
        %v1629 = vpop.f32.mrb[0].mxu0
        %1630 = vdwg.mxu0
        %v1632 = vsel %vm1492, %v1479, 0
        %v1635 = vsel %vm1492, %v1487, 0
        %1637 = vmatprep.subr.bf16.mxu0 0
        %1638 = vmatpush1.bf16.xpose.msra.mxu0 %v1635
        %1639 = vmatprep.subr.bf16.mxu0 0
        %1640 = vmatpush1.bf16.xpose.msra.mxu0 0
        %1641 = vmatprep.subr.bf16.mxu0 0
        %1642 = vmatpush1.bf16.xpose.msra.mxu0 0
        %1643 = vmatprep.subr.bf16.mxu0 0
        %1644 = vmatpush1.bf16.xpose.msra.mxu0 0
        %1645 = vmatprep.subr.bf16.mxu0 0
        %1646 = vmatpush1.bf16.xpose.msra.mxu0 0
        %1647 = vmatprep.subr.bf16.mxu0 0
        %1648 = vmatpush1.bf16.xpose.msra.mxu0 0
        %1649 = vmatprep.subr.bf16.mxu0 0
        %1650 = vmatpush1.bf16.xpose.msra.mxu0 0
        %1651 = vmatprep.subr.bf16.mxu0 0
        %1652 = vmatpush1.bf16.xpose.msra.mxu0 0
        %1653 = vmatprep.subr.bf16.mxu0 0
        %1654 = vmatpush1.bf16.xpose.msra.mxu0 0
        %1655 = vmatprep.subr.bf16.mxu0 0
        %1656 = vmatpush1.bf16.xpose.msra.mxu0 0
        %1657 = vmatprep.subr.bf16.mxu0 0
        %1658 = vmatpush1.bf16.xpose.msra.mxu0 0
        %1659 = vmatprep.subr.bf16.mxu0 0
        %1660 = vmatpush1.bf16.xpose.msra.mxu0 0
        %1661 = vmatprep.subr.bf16.mxu0 0
        %1662 = vmatpush1.bf16.xpose.msra.mxu0 0
        %1663 = vmatprep.subr.bf16.mxu0 0
        %1664 = vmatpush1.bf16.xpose.msra.mxu0 0
        %1665 = vmatprep.subr.bf16.mxu0 0
        %1666 = vmatpush1.bf16.xpose.msra.mxu0 0
        %1667 = vmatprep.subr.bf16.mxu0 0
        %1668 = vmatpush1.bf16.xpose.msra.mxu0 0
        %1669 = vmatprep.mubr.bf16.mxu0 0
        %1670 = vmatmul.mubr.bf16.gmra.mrb[0].mxu0 %v1632
        %v1671 = vpop.f32.mrb[0].mxu0
        %v1672 = vadd.f32 0.0, %v1671
        %v1673 = vpop.f32.mrb[0].mxu0
        %v1674 = vpop.f32.mrb[0].mxu0
        %v1675 = vpop.f32.mrb[0].mxu0
        %1676 = vdwg.mxu0
        %v1678 = vsel %vm1492, %v1480, 0
        %v1681 = vsel %vm1492, %v1488, 0
        %1683 = vmatprep.subr.bf16.mxu0 0
        %1684 = vmatpush1.bf16.xpose.msra.mxu0 %v1681
        %1685 = vmatprep.subr.bf16.mxu0 0
        %1686 = vmatpush1.bf16.xpose.msra.mxu0 0
        %1687 = vmatprep.subr.bf16.mxu0 0
        %1688 = vmatpush1.bf16.xpose.msra.mxu0 0
        %1689 = vmatprep.subr.bf16.mxu0 0
        %1690 = vmatpush1.bf16.xpose.msra.mxu0 0
        %1691 = vmatprep.subr.bf16.mxu0 0
        %1692 = vmatpush1.bf16.xpose.msra.mxu0 0
        %1693 = vmatprep.subr.bf16.mxu0 0
        %1694 = vmatpush1.bf16.xpose.msra.mxu0 0
        %1695 = vmatprep.subr.bf16.mxu0 0
        %1696 = vmatpush1.bf16.xpose.msra.mxu0 0
        %1697 = vmatprep.subr.bf16.mxu0 0
        %1698 = vmatpush1.bf16.xpose.msra.mxu0 0
        %1699 = vmatprep.subr.bf16.mxu0 0
        %1700 = vmatpush1.bf16.xpose.msra.mxu0 0
        %1701 = vmatprep.subr.bf16.mxu0 0
        %1702 = vmatpush1.bf16.xpose.msra.mxu0 0
        %1703 = vmatprep.subr.bf16.mxu0 0
        %1704 = vmatpush1.bf16.xpose.msra.mxu0 0
        %1705 = vmatprep.subr.bf16.mxu0 0
        %1706 = vmatpush1.bf16.xpose.msra.mxu0 0
        %1707 = vmatprep.subr.bf16.mxu0 0
        %1708 = vmatpush1.bf16.xpose.msra.mxu0 0
        %1709 = vmatprep.subr.bf16.mxu0 0
        %1710 = vmatpush1.bf16.xpose.msra.mxu0 0
        %1711 = vmatprep.subr.bf16.mxu0 0
        %1712 = vmatpush1.bf16.xpose.msra.mxu0 0
        %1713 = vmatprep.subr.bf16.mxu0 0
        %1714 = vmatpush1.bf16.xpose.msra.mxu0 0
        %1715 = vmatprep.mubr.bf16.mxu0 0
        %1716 = vmatmul.mubr.bf16.gmra.mrb[0].mxu0 %v1678
        %v1717 = vpop.f32.mrb[0].mxu0
        %v1718 = vadd.f32 0.0, %v1717
        %v1719 = vpop.f32.mrb[0].mxu0
        %v1720 = vpop.f32.mrb[0].mxu0
        %v1721 = vpop.f32.mrb[0].mxu0
        %1722 = vdwg.mxu0
        %v1724 = vsel %vm1492, %v1481, 0
        %v1727 = vsel %vm1492, %v1489, 0
        %1729 = vmatprep.subr.bf16.mxu0 0
        %1730 = vmatpush1.bf16.xpose.msra.mxu0 %v1727
        %1731 = vmatprep.subr.bf16.mxu0 0
        %1732 = vmatpush1.bf16.xpose.msra.mxu0 0
        %1733 = vmatprep.subr.bf16.mxu0 0
        %1734 = vmatpush1.bf16.xpose.msra.mxu0 0
        %1735 = vmatprep.subr.bf16.mxu0 0
        %1736 = vmatpush1.bf16.xpose.msra.mxu0 0
        %1737 = vmatprep.subr.bf16.mxu0 0
        %1738 = vmatpush1.bf16.xpose.msra.mxu0 0
        %1739 = vmatprep.subr.bf16.mxu0 0
        %1740 = vmatpush1.bf16.xpose.msra.mxu0 0
        %1741 = vmatprep.subr.bf16.mxu0 0
        %1742 = vmatpush1.bf16.xpose.msra.mxu0 0
        %1743 = vmatprep.subr.bf16.mxu0 0
        %1744 = vmatpush1.bf16.xpose.msra.mxu0 0
        %1745 = vmatprep.subr.bf16.mxu0 0
        %1746 = vmatpush1.bf16.xpose.msra.mxu0 0
        %1747 = vmatprep.subr.bf16.mxu0 0
        %1748 = vmatpush1.bf16.xpose.msra.mxu0 0
        %1749 = vmatprep.subr.bf16.mxu0 0
        %1750 = vmatpush1.bf16.xpose.msra.mxu0 0
        %1751 = vmatprep.subr.bf16.mxu0 0
        %1752 = vmatpush1.bf16.xpose.msra.mxu0 0
        %1753 = vmatprep.subr.bf16.mxu0 0
        %1754 = vmatpush1.bf16.xpose.msra.mxu0 0
        %1755 = vmatprep.subr.bf16.mxu0 0
        %1756 = vmatpush1.bf16.xpose.msra.mxu0 0
        %1757 = vmatprep.subr.bf16.mxu0 0
        %1758 = vmatpush1.bf16.xpose.msra.mxu0 0
        %1759 = vmatprep.subr.bf16.mxu0 0
        %1760 = vmatpush1.bf16.xpose.msra.mxu0 0
        %1761 = vmatprep.mubr.bf16.mxu0 0
        %1762 = vmatmul.mubr.bf16.gmra.mrb[0].mxu0 %v1724
        %v1763 = vpop.f32.mrb[0].mxu0
        %v1764 = vadd.f32 0.0, %v1763
        %v1765 = vpop.f32.mrb[0].mxu0
        %v1766 = vpop.f32.mrb[0].mxu0
        %v1767 = vpop.f32.mrb[0].mxu0
        %1768 = vdwg.mxu0
        %v1770 = vsel %vm1492, %v1482, 0
        %v1773 = vsel %vm1492, %v1490, 0
        %1775 = vmatprep.subr.bf16.mxu0 0
        %1776 = vmatpush1.bf16.xpose.msra.mxu0 %v1773
        %1777 = vmatprep.subr.bf16.mxu0 0
        %1778 = vmatpush1.bf16.xpose.msra.mxu0 0
        %1779 = vmatprep.subr.bf16.mxu0 0
        %1780 = vmatpush1.bf16.xpose.msra.mxu0 0
        %1781 = vmatprep.subr.bf16.mxu0 0
        %1782 = vmatpush1.bf16.xpose.msra.mxu0 0
        %1783 = vmatprep.subr.bf16.mxu0 0
        %1784 = vmatpush1.bf16.xpose.msra.mxu0 0
        %1785 = vmatprep.subr.bf16.mxu0 0
        %1786 = vmatpush1.bf16.xpose.msra.mxu0 0
        %1787 = vmatprep.subr.bf16.mxu0 0
        %1788 = vmatpush1.bf16.xpose.msra.mxu0 0
        %1789 = vmatprep.subr.bf16.mxu0 0
        %1790 = vmatpush1.bf16.xpose.msra.mxu0 0
        %1791 = vmatprep.subr.bf16.mxu0 0
        %1792 = vmatpush1.bf16.xpose.msra.mxu0 0
        %1793 = vmatprep.subr.bf16.mxu0 0
        %1794 = vmatpush1.bf16.xpose.msra.mxu0 0
        %1795 = vmatprep.subr.bf16.mxu0 0
        %1796 = vmatpush1.bf16.xpose.msra.mxu0 0
        %1797 = vmatprep.subr.bf16.mxu0 0
        %1798 = vmatpush1.bf16.xpose.msra.mxu0 0
        %1799 = vmatprep.subr.bf16.mxu0 0
        %1800 = vmatpush1.bf16.xpose.msra.mxu0 0
        %1801 = vmatprep.subr.bf16.mxu0 0
        %1802 = vmatpush1.bf16.xpose.msra.mxu0 0
        %1803 = vmatprep.subr.bf16.mxu0 0
        %1804 = vmatpush1.bf16.xpose.msra.mxu0 0
        %1805 = vmatprep.subr.bf16.mxu0 0
        %1806 = vmatpush1.bf16.xpose.msra.mxu0 0
        %1807 = vmatprep.mubr.bf16.mxu0 0
        %1808 = vmatmul.mubr.bf16.gmra.mrb[0].mxu0 %v1770
        %v1809 = vpop.f32.mrb[0].mxu0
        %v1810 = vadd.f32 0.0, %v1809
        %v1811 = vpop.f32.mrb[0].mxu0
        %v1812 = vpop.f32.mrb[0].mxu0
        %v1813 = vpop.f32.mrb[0].mxu0
        %1814 = vdwg.mxu0
        %v1816 = vsel %vm1492, %v1483, 0
        %v1819 = vsel %vm1492, %v1491, 0
        %1821 = vmatprep.subr.bf16.mxu0 0
        %1822 = vmatpush1.bf16.xpose.msra.mxu0 %v1819
        %1823 = vmatprep.subr.bf16.mxu0 0
        %1824 = vmatpush1.bf16.xpose.msra.mxu0 0
        %1825 = vmatprep.subr.bf16.mxu0 0
        %1826 = vmatpush1.bf16.xpose.msra.mxu0 0
        %1827 = vmatprep.subr.bf16.mxu0 0
        %1828 = vmatpush1.bf16.xpose.msra.mxu0 0
        %1829 = vmatprep.subr.bf16.mxu0 0
        %1830 = vmatpush1.bf16.xpose.msra.mxu0 0
        %1831 = vmatprep.subr.bf16.mxu0 0
        %1832 = vmatpush1.bf16.xpose.msra.mxu0 0
        %1833 = vmatprep.subr.bf16.mxu0 0
        %1834 = vmatpush1.bf16.xpose.msra.mxu0 0
        %1835 = vmatprep.subr.bf16.mxu0 0
        %1836 = vmatpush1.bf16.xpose.msra.mxu0 0
        %1837 = vmatprep.subr.bf16.mxu0 0
        %1838 = vmatpush1.bf16.xpose.msra.mxu0 0
        %1839 = vmatprep.subr.bf16.mxu0 0
        %1840 = vmatpush1.bf16.xpose.msra.mxu0 0
        %1841 = vmatprep.subr.bf16.mxu0 0
        %1842 = vmatpush1.bf16.xpose.msra.mxu0 0
        %1843 = vmatprep.subr.bf16.mxu0 0
        %1844 = vmatpush1.bf16.xpose.msra.mxu0 0
        %1845 = vmatprep.subr.bf16.mxu0 0
        %1846 = vmatpush1.bf16.xpose.msra.mxu0 0
        %1847 = vmatprep.subr.bf16.mxu0 0
        %1848 = vmatpush1.bf16.xpose.msra.mxu0 0
        %1849 = vmatprep.subr.bf16.mxu0 0
        %1850 = vmatpush1.bf16.xpose.msra.mxu0 0
        %1851 = vmatprep.subr.bf16.mxu0 0
        %1852 = vmatpush1.bf16.xpose.msra.mxu0 0
        %1853 = vmatprep.mubr.bf16.mxu0 0
        %1854 = vmatmul.mubr.bf16.gmra.mrb[0].mxu0 %v1816
        %v1855 = vpop.f32.mrb[0].mxu0
        %v1856 = vadd.f32 0.0, %v1855
        %v1857 = vpop.f32.mrb[0].mxu0
        %v1858 = vpop.f32.mrb[0].mxu0
        %v1859 = vpop.f32.mrb[0].mxu0
        %1860 = vdwg.mxu0
        %s1861 = smul.u32 %s22, 8
        %v1862 = vlaneseq
        %v1863 = vshrl.u32 %v1862, 7
        %v1864 = vstv %s1861
        %v1865 = vadd.s32 %v1864, %v1863
        %s1866 = smul.u32 %s23, 8
        %v1867 = vlaneseq
        %v1868 = vand.u32 %v1867, 127
        %v1869 = vstv %s1866
        %v1870 = vadd.s32 %v1869, %v1868
        %vm1871 = vcmp.gt.s32.totalorder %v1870, %v1865
        %v1872 = vsel %vm1871, 1, 0
        %vm1873 = vcmp.eq.s32.totalorder %v1872, 1
        %v1874 = vsel %vm1873, -1e+30, %v1534
        %v1875 = vsel %vm1873, -1e+30, %v1580
        %v1876 = vsel %vm1873, -1e+30, %v1626
        %v1877 = vsel %vm1873, -1e+30, %v1672
        %v1878 = vsel %vm1873, -1e+30, %v1718
        %v1879 = vsel %vm1873, -1e+30, %v1764
        %v1880 = vsel %vm1873, -1e+30, %v1810
        %v1881 = vsel %vm1873, -1e+30, %v1856
        %v1882 = vld [vmem:[#allocation2] sm:$0xff]
        %v1883 = vsel %vm1492, %v1874, -inf
        %1884 = vmax.xlane.f32.xlu0 %v1883
        %v1885 = vpop.xlane.xlu0 %1884
        %v1886 = vsel %vm1492, %v1875, -inf
        %1887 = vmax.xlane.f32.xlu0 %v1886
        %v1888 = vpop.xlane.xlu0 %1887
        %v1889 = vsel %vm1492, %v1876, -inf
        %1890 = vmax.xlane.f32.xlu0 %v1889
        %v1891 = vpop.xlane.xlu0 %1890
        %v1892 = vsel %vm1492, %v1877, -inf
        %1893 = vmax.xlane.f32.xlu0 %v1892
        %v1894 = vpop.xlane.xlu0 %1893
        %v1895 = vsel %vm1492, %v1878, -inf
        %1896 = vmax.xlane.f32.xlu0 %v1895
        %v1897 = vpop.xlane.xlu0 %1896
        %v1898 = vsel %vm1492, %v1879, -inf
        %1899 = vmax.xlane.f32.xlu0 %v1898
        %v1900 = vpop.xlane.xlu0 %1899
        %v1901 = vsel %vm1492, %v1880, -inf
        %1902 = vmax.xlane.f32.xlu0 %v1901
        %v1903 = vpop.xlane.xlu0 %1902
        %v1904 = vsel %vm1492, %v1881, -inf
        %1905 = vmax.xlane.f32.xlu0 %v1904
        %v1906 = vpop.xlane.xlu0 %1905
        %v1915 = vlaneseq
        %v1916 = vshrl.u32 %v1915, 7
        %v1917 = vsub.s32 %v1868, %v1916
        %v1918 = vrot.slane %v1885, %v1917
        %v1919 = vlaneseq
        %v1920 = vshrl.u32 %v1919, 7
        %v1921 = vsub.s32 %v1868, %v1920
        %v1922 = vrot.slane %v1888, %v1921
        %v1923 = vlaneseq
        %v1924 = vshrl.u32 %v1923, 7
        %v1925 = vsub.s32 %v1868, %v1924
        %v1926 = vrot.slane %v1891, %v1925
        %v1927 = vlaneseq
        %v1928 = vshrl.u32 %v1927, 7
        %v1929 = vsub.s32 %v1868, %v1928
        %v1930 = vrot.slane %v1894, %v1929
        %v1931 = vlaneseq
        %v1932 = vshrl.u32 %v1931, 7
        %v1933 = vsub.s32 %v1868, %v1932
        %v1934 = vrot.slane %v1897, %v1933
        %v1935 = vlaneseq
        %v1936 = vshrl.u32 %v1935, 7
        %v1937 = vsub.s32 %v1868, %v1936
        %v1938 = vrot.slane %v1900, %v1937
        %v1939 = vlaneseq
        %v1940 = vshrl.u32 %v1939, 7
        %v1941 = vsub.s32 %v1868, %v1940
        %v1942 = vrot.slane %v1903, %v1941
        %v1943 = vlaneseq
        %v1944 = vshrl.u32 %v1943, 7
        %v1945 = vsub.s32 %v1868, %v1944
        %v1946 = vrot.slane %v1906, %v1945
        %vm1947 = vcmask 1041409
        %v1948 = vsel %vm1947, %v1922, %v1918
        %vm1949 = vcmask 1042434
        %v1950 = vsel %vm1949, %v1926, %v1948
        %vm1951 = vcmask 1043459
        %v1952 = vsel %vm1951, %v1930, %v1950
        %vm1953 = vcmask 1044484
        %v1954 = vsel %vm1953, %v1934, %v1952
        %vm1955 = vcmask 1045509
        %v1956 = vsel %vm1955, %v1938, %v1954
        %vm1957 = vcmask 1046534
        %v1958 = vsel %vm1957, %v1942, %v1956
        %vm1959 = vcmask 1047559
        %v1960 = vsel %vm1959, %v1946, %v1958
        %v1962 = vmax.f32 %v1882, %v1960
        %v1963 = vsub.f32 %v1882, %v1962
        %v1964 = vmul.f32 %v1963, 1.442695
        %v1965 = vpow.pop %v1964
        %v1966 = vlaneseq
        %v1967 = vshrl.u32 %v1966, 7
        %v1968 = vsub.s32 0, %v1967
        %v1969 = vrot.slane %v1962, %v1968
        %1971 = vbcast.lane.b32.xlu0 %v1969, 256
        %v1972 = vpop.permute.xlu0 %1971
        %v1973 = vlaneseq
        %v1974 = vshrl.u32 %v1973, 7
        %v1975 = vsub.s32 1, %v1974
        %v1976 = vrot.slane %v1962, %v1975
        %1978 = vbcast.lane.b32.xlu0 %v1976, 256
        %v1979 = vpop.permute.xlu0 %1978
        %v1980 = vlaneseq
        %v1981 = vshrl.u32 %v1980, 7
        %v1982 = vsub.s32 2, %v1981
        %v1983 = vrot.slane %v1962, %v1982
        %1985 = vbcast.lane.b32.xlu0 %v1983, 256
        %v1986 = vpop.permute.xlu0 %1985
        %v1987 = vlaneseq
        %v1988 = vshrl.u32 %v1987, 7
        %v1989 = vsub.s32 3, %v1988
        %v1990 = vrot.slane %v1962, %v1989
        %1992 = vbcast.lane.b32.xlu0 %v1990, 256
        %v1993 = vpop.permute.xlu0 %1992
        %v1994 = vlaneseq
        %v1995 = vshrl.u32 %v1994, 7
        %v1996 = vsub.s32 4, %v1995
        %v1997 = vrot.slane %v1962, %v1996
        %1999 = vbcast.lane.b32.xlu0 %v1997, 256
        %v2000 = vpop.permute.xlu0 %1999
        %v2001 = vlaneseq
        %v2002 = vshrl.u32 %v2001, 7
        %v2003 = vsub.s32 5, %v2002
        %v2004 = vrot.slane %v1962, %v2003
        %2006 = vbcast.lane.b32.xlu0 %v2004, 256
        %v2007 = vpop.permute.xlu0 %2006
        %v2008 = vlaneseq
        %v2009 = vshrl.u32 %v2008, 7
        %v2010 = vsub.s32 6, %v2009
        %v2011 = vrot.slane %v1962, %v2010
        %2013 = vbcast.lane.b32.xlu0 %v2011, 256
        %v2014 = vpop.permute.xlu0 %2013
        %v2015 = vlaneseq
        %v2016 = vshrl.u32 %v2015, 7
        %v2017 = vsub.s32 7, %v2016
        %v2018 = vrot.slane %v1962, %v2017
        %2020 = vbcast.lane.b32.xlu0 %v2018, 256
        %v2021 = vpop.permute.xlu0 %2020
        %v2022 = vsub.f32 %v1874, %v1972
        %v2023 = vsub.f32 %v1875, %v1979
        %v2024 = vsub.f32 %v1876, %v1986
        %v2025 = vsub.f32 %v1877, %v1993
        %v2026 = vsub.f32 %v1878, %v2000
        %v2027 = vsub.f32 %v1879, %v2007
        %v2028 = vsub.f32 %v1880, %v2014
        %v2029 = vsub.f32 %v1881, %v2021
        %v2030 = vmul.f32 %v2022, 1.442695
        %v2031 = vpow.pop %v2030
        %v2032 = vmul.f32 %v2023, 1.442695
        %v2033 = vpow.pop %v2032
        %v2034 = vmul.f32 %v2024, 1.442695
        %v2035 = vpow.pop %v2034
        %v2036 = vmul.f32 %v2025, 1.442695
        %v2037 = vpow.pop %v2036
        %v2038 = vmul.f32 %v2026, 1.442695
        %v2039 = vpow.pop %v2038
        %v2040 = vmul.f32 %v2027, 1.442695
        %v2041 = vpow.pop %v2040
        %v2042 = vmul.f32 %v2028, 1.442695
        %v2043 = vpow.pop %v2042
        %v2044 = vmul.f32 %v2029, 1.442695
        %v2045 = vpow.pop %v2044
        %v2046 = vld [vmem:[#allocation3] sm:$0xff]
        %v2047 = vmul.f32 %v1965, %v2046
        %v2048 = vsel %vm1492, %v2031, 0.0
        %2049 = vadd.xlane.f32.xlu0 %v2048
        %v2050 = vpop.xlane.xlu0 %2049
        %v2051 = vsel %vm1492, %v2033, 0.0
        %2052 = vadd.xlane.f32.xlu0 %v2051
        %v2053 = vpop.xlane.xlu0 %2052
        %v2054 = vsel %vm1492, %v2035, 0.0
        %2055 = vadd.xlane.f32.xlu0 %v2054
        %v2056 = vpop.xlane.xlu0 %2055
        %v2057 = vsel %vm1492, %v2037, 0.0
        %2058 = vadd.xlane.f32.xlu0 %v2057
        %v2059 = vpop.xlane.xlu0 %2058
        %v2060 = vsel %vm1492, %v2039, 0.0
        %2061 = vadd.xlane.f32.xlu0 %v2060
        %v2062 = vpop.xlane.xlu0 %2061
        %v2063 = vsel %vm1492, %v2041, 0.0
        %2064 = vadd.xlane.f32.xlu0 %v2063
        %v2065 = vpop.xlane.xlu0 %2064
        %v2066 = vsel %vm1492, %v2043, 0.0
        %2067 = vadd.xlane.f32.xlu0 %v2066
        %v2068 = vpop.xlane.xlu0 %2067
        %v2069 = vsel %vm1492, %v2045, 0.0
        %2070 = vadd.xlane.f32.xlu0 %v2069
        %v2071 = vpop.xlane.xlu0 %2070
        %v2080 = vlaneseq
        %v2081 = vshrl.u32 %v2080, 7
        %v2082 = vsub.s32 %v1868, %v2081
        %v2083 = vrot.slane %v2050, %v2082
        %v2084 = vlaneseq
        %v2085 = vshrl.u32 %v2084, 7
        %v2086 = vsub.s32 %v1868, %v2085
        %v2087 = vrot.slane %v2053, %v2086
        %v2088 = vlaneseq
        %v2089 = vshrl.u32 %v2088, 7
        %v2090 = vsub.s32 %v1868, %v2089
        %v2091 = vrot.slane %v2056, %v2090
        %v2092 = vlaneseq
        %v2093 = vshrl.u32 %v2092, 7
        %v2094 = vsub.s32 %v1868, %v2093
        %v2095 = vrot.slane %v2059, %v2094
        %v2096 = vlaneseq
        %v2097 = vshrl.u32 %v2096, 7
        %v2098 = vsub.s32 %v1868, %v2097
        %v2099 = vrot.slane %v2062, %v2098
        %v2100 = vlaneseq
        %v2101 = vshrl.u32 %v2100, 7
        %v2102 = vsub.s32 %v1868, %v2101
        %v2103 = vrot.slane %v2065, %v2102
        %v2104 = vlaneseq
        %v2105 = vshrl.u32 %v2104, 7
        %v2106 = vsub.s32 %v1868, %v2105
        %v2107 = vrot.slane %v2068, %v2106
        %v2108 = vlaneseq
        %v2109 = vshrl.u32 %v2108, 7
        %v2110 = vsub.s32 %v1868, %v2109
        %v2111 = vrot.slane %v2071, %v2110
        %v2112 = vsel %vm1947, %v2087, %v2083
        %v2113 = vsel %vm1949, %v2091, %v2112
        %v2114 = vsel %vm1951, %v2095, %v2113
        %v2115 = vsel %vm1953, %v2099, %v2114
        %v2116 = vsel %vm1955, %v2103, %v2115
        %v2117 = vsel %vm1957, %v2107, %v2116
        %v2118 = vsel %vm1959, %v2111, %v2117
        %v2120 = vadd.f32 %v2047, %v2118
        %2121 = vst.msk [vmem:[#allocation3] sm:$0xff] %vm1492, %v2120
        %v2122 = vlaneseq
        %v2123 = vshrl.u32 %v2122, 7
        %v2124 = vsub.s32 0, %v2123
        %v2125 = vrot.slane %v1965, %v2124
        %2127 = vbcast.lane.b32.xlu0 %v2125, 256
        %v2128 = vpop.permute.xlu0 %2127
        %v2129 = vlaneseq
        %v2130 = vshrl.u32 %v2129, 7
        %v2131 = vsub.s32 1, %v2130
        %v2132 = vrot.slane %v1965, %v2131
        %2134 = vbcast.lane.b32.xlu0 %v2132, 256
        %v2135 = vpop.permute.xlu0 %2134
        %v2136 = vlaneseq
        %v2137 = vshrl.u32 %v2136, 7
        %v2138 = vsub.s32 2, %v2137
        %v2139 = vrot.slane %v1965, %v2138
        %2141 = vbcast.lane.b32.xlu0 %v2139, 256
        %v2142 = vpop.permute.xlu0 %2141
        %v2143 = vlaneseq
        %v2144 = vshrl.u32 %v2143, 7
        %v2145 = vsub.s32 3, %v2144
        %v2146 = vrot.slane %v1965, %v2145
        %2148 = vbcast.lane.b32.xlu0 %v2146, 256
        %v2149 = vpop.permute.xlu0 %2148
        %v2150 = vlaneseq
        %v2151 = vshrl.u32 %v2150, 7
        %v2152 = vsub.s32 4, %v2151
        %v2153 = vrot.slane %v1965, %v2152
        %2155 = vbcast.lane.b32.xlu0 %v2153, 256
        %v2156 = vpop.permute.xlu0 %2155
        %v2157 = vlaneseq
        %v2158 = vshrl.u32 %v2157, 7
        %v2159 = vsub.s32 5, %v2158
        %v2160 = vrot.slane %v1965, %v2159
        %2162 = vbcast.lane.b32.xlu0 %v2160, 256
        %v2163 = vpop.permute.xlu0 %2162
        %v2164 = vlaneseq
        %v2165 = vshrl.u32 %v2164, 7
        %v2166 = vsub.s32 6, %v2165
        %v2167 = vrot.slane %v1965, %v2166
        %2169 = vbcast.lane.b32.xlu0 %v2167, 256
        %v2170 = vpop.permute.xlu0 %2169
        %v2171 = vlaneseq
        %v2172 = vshrl.u32 %v2171, 7
        %v2173 = vsub.s32 7, %v2172
        %v2174 = vrot.slane %v1965, %v2173
        %2176 = vbcast.lane.b32.xlu0 %v2174, 256
        %v2177 = vpop.permute.xlu0 %2176
        %v2178 = vld [vmem:[#allocation4] sm:$0xff]
        %v2179 = vld [vmem:[#allocation4 + $0x8] sm:$0xff]
        %v2180 = vld [vmem:[#allocation4 + $0x10] sm:$0xff]
        %v2181 = vld [vmem:[#allocation4 + $0x18] sm:$0xff]
        %v2182 = vld [vmem:[#allocation4 + $0x20] sm:$0xff]
        %v2183 = vld [vmem:[#allocation4 + $0x28] sm:$0xff]
        %v2184 = vld [vmem:[#allocation4 + $0x30] sm:$0xff]
        %v2185 = vld [vmem:[#allocation4 + $0x38] sm:$0xff]
        %v2186 = vmul.f32 %v2128, %v2178
        %v2187 = vmul.f32 %v2135, %v2179
        %v2188 = vmul.f32 %v2142, %v2180
        %v2189 = vmul.f32 %v2149, %v2181
        %v2190 = vmul.f32 %v2156, %v2182
        %v2191 = vmul.f32 %v2163, %v2183
        %v2192 = vmul.f32 %v2170, %v2184
        %v2193 = vmul.f32 %v2177, %v2185
        %v2194 = vpack.c.bf16 %v2031, %v2031
        %v2195 = vpack.c.bf16 %v2033, %v2033
        %v2196 = vpack.c.bf16 %v2035, %v2035
        %v2197 = vpack.c.bf16 %v2037, %v2037
        %v2198 = vpack.c.bf16 %v2039, %v2039
        %v2199 = vpack.c.bf16 %v2041, %v2041
        %v2200 = vpack.c.bf16 %v2043, %v2043
        %v2201 = vpack.c.bf16 %v2045, %v2045
        %v2202 = vld [vmem:[%s341] sm:$0xf]
        %v2203 = vld [vmem:[%s341 + $0x4] sm:$0xf]
        %v2204 = vld [vmem:[%s341 + $0x8] sm:$0xf]
        %v2205 = vld [vmem:[%s341 + $0xc] sm:$0xf]
        %v2206 = vld [vmem:[%s341 + $0x10] sm:$0xf]
        %v2207 = vld [vmem:[%s341 + $0x14] sm:$0xf]
        %v2208 = vld [vmem:[%s341 + $0x18] sm:$0xf]
        %v2209 = vld [vmem:[%s341 + $0x1c] sm:$0xf]
        %v2211 = vsel %vm1492, %v2194, 0
        %vm2213 = vcmask 1043456
        %v2215 = vsel %vm2213, %v2202, 0
        %2217 = vmatprep.subr.bf16.mxu0 0
        %2218 = vmatpush1.bf16.msra.mxu0 %v2215
        %2219 = vmatprep.subr.bf16.mxu0 0
        %2220 = vmatpush1.bf16.msra.mxu0 0
        %2221 = vmatprep.subr.bf16.mxu0 0
        %2222 = vmatpush1.bf16.msra.mxu0 0
        %2223 = vmatprep.subr.bf16.mxu0 0
        %2224 = vmatpush1.bf16.msra.mxu0 0
        %2225 = vmatprep.subr.bf16.mxu0 0
        %2226 = vmatpush1.bf16.msra.mxu0 0
        %2227 = vmatprep.subr.bf16.mxu0 0
        %2228 = vmatpush1.bf16.msra.mxu0 0
        %2229 = vmatprep.subr.bf16.mxu0 0
        %2230 = vmatpush1.bf16.msra.mxu0 0
        %2231 = vmatprep.subr.bf16.mxu0 0
        %2232 = vmatpush1.bf16.msra.mxu0 0
        %2233 = vmatprep.subr.bf16.mxu0 0
        %2234 = vmatpush1.bf16.msra.mxu0 0
        %2235 = vmatprep.subr.bf16.mxu0 0
        %2236 = vmatpush1.bf16.msra.mxu0 0
        %2237 = vmatprep.subr.bf16.mxu0 0
        %2238 = vmatpush1.bf16.msra.mxu0 0
        %2239 = vmatprep.subr.bf16.mxu0 0
        %2240 = vmatpush1.bf16.msra.mxu0 0
        %2241 = vmatprep.subr.bf16.mxu0 0
        %2242 = vmatpush1.bf16.msra.mxu0 0
        %2243 = vmatprep.subr.bf16.mxu0 0
        %2244 = vmatpush1.bf16.msra.mxu0 0
        %2245 = vmatprep.subr.bf16.mxu0 0
        %2246 = vmatpush1.bf16.msra.mxu0 0
        %2247 = vmatprep.subr.bf16.mxu0 0
        %2248 = vmatpush1.bf16.msra.mxu0 0
        %2249 = vmatprep.mubr.bf16.mxu0 0
        %2250 = vmatmul.mubr.bf16.gmra.mrb[0].mxu0 %v2211
        %v2251 = vpop.f32.mrb[0].mxu0
        %v2252 = vadd.f32 0.0, %v2251
        %v2253 = vpop.f32.mrb[0].mxu0
        %v2254 = vpop.f32.mrb[0].mxu0
        %v2255 = vpop.f32.mrb[0].mxu0
        %2256 = vdwg.mxu0
        %v2258 = vsel %vm1492, %v2195, 0
        %v2261 = vsel %vm2213, %v2203, 0
        %2263 = vmatprep.subr.bf16.mxu0 0
        %2264 = vmatpush1.bf16.msra.mxu0 %v2261
        %2265 = vmatprep.subr.bf16.mxu0 0
        %2266 = vmatpush1.bf16.msra.mxu0 0
        %2267 = vmatprep.subr.bf16.mxu0 0
        %2268 = vmatpush1.bf16.msra.mxu0 0
        %2269 = vmatprep.subr.bf16.mxu0 0
        %2270 = vmatpush1.bf16.msra.mxu0 0
        %2271 = vmatprep.subr.bf16.mxu0 0
        %2272 = vmatpush1.bf16.msra.mxu0 0
        %2273 = vmatprep.subr.bf16.mxu0 0
        %2274 = vmatpush1.bf16.msra.mxu0 0
        %2275 = vmatprep.subr.bf16.mxu0 0
        %2276 = vmatpush1.bf16.msra.mxu0 0
        %2277 = vmatprep.subr.bf16.mxu0 0
        %2278 = vmatpush1.bf16.msra.mxu0 0
        %2279 = vmatprep.subr.bf16.mxu0 0
        %2280 = vmatpush1.bf16.msra.mxu0 0
        %2281 = vmatprep.subr.bf16.mxu0 0
        %2282 = vmatpush1.bf16.msra.mxu0 0
        %2283 = vmatprep.subr.bf16.mxu0 0
        %2284 = vmatpush1.bf16.msra.mxu0 0
        %2285 = vmatprep.subr.bf16.mxu0 0
        %2286 = vmatpush1.bf16.msra.mxu0 0
        %2287 = vmatprep.subr.bf16.mxu0 0
        %2288 = vmatpush1.bf16.msra.mxu0 0
        %2289 = vmatprep.subr.bf16.mxu0 0
        %2290 = vmatpush1.bf16.msra.mxu0 0
        %2291 = vmatprep.subr.bf16.mxu0 0
        %2292 = vmatpush1.bf16.msra.mxu0 0
        %2293 = vmatprep.subr.bf16.mxu0 0
        %2294 = vmatpush1.bf16.msra.mxu0 0
        %2295 = vmatprep.mubr.bf16.mxu0 0
        %2296 = vmatmul.mubr.bf16.gmra.mrb[0].mxu0 %v2258
        %v2297 = vpop.f32.mrb[0].mxu0
        %v2298 = vadd.f32 0.0, %v2297
        %v2299 = vpop.f32.mrb[0].mxu0
        %v2300 = vpop.f32.mrb[0].mxu0
        %v2301 = vpop.f32.mrb[0].mxu0
        %2302 = vdwg.mxu0
        %v2304 = vsel %vm1492, %v2196, 0
        %v2307 = vsel %vm2213, %v2204, 0
        %2309 = vmatprep.subr.bf16.mxu0 0
        %2310 = vmatpush1.bf16.msra.mxu0 %v2307
        %2311 = vmatprep.subr.bf16.mxu0 0
        %2312 = vmatpush1.bf16.msra.mxu0 0
        %2313 = vmatprep.subr.bf16.mxu0 0
        %2314 = vmatpush1.bf16.msra.mxu0 0
        %2315 = vmatprep.subr.bf16.mxu0 0
        %2316 = vmatpush1.bf16.msra.mxu0 0
        %2317 = vmatprep.subr.bf16.mxu0 0
        %2318 = vmatpush1.bf16.msra.mxu0 0
        %2319 = vmatprep.subr.bf16.mxu0 0
        %2320 = vmatpush1.bf16.msra.mxu0 0
        %2321 = vmatprep.subr.bf16.mxu0 0
        %2322 = vmatpush1.bf16.msra.mxu0 0
        %2323 = vmatprep.subr.bf16.mxu0 0
        %2324 = vmatpush1.bf16.msra.mxu0 0
        %2325 = vmatprep.subr.bf16.mxu0 0
        %2326 = vmatpush1.bf16.msra.mxu0 0
        %2327 = vmatprep.subr.bf16.mxu0 0
        %2328 = vmatpush1.bf16.msra.mxu0 0
        %2329 = vmatprep.subr.bf16.mxu0 0
        %2330 = vmatpush1.bf16.msra.mxu0 0
        %2331 = vmatprep.subr.bf16.mxu0 0
        %2332 = vmatpush1.bf16.msra.mxu0 0
        %2333 = vmatprep.subr.bf16.mxu0 0
        %2334 = vmatpush1.bf16.msra.mxu0 0
        %2335 = vmatprep.subr.bf16.mxu0 0
        %2336 = vmatpush1.bf16.msra.mxu0 0
        %2337 = vmatprep.subr.bf16.mxu0 0
        %2338 = vmatpush1.bf16.msra.mxu0 0
        %2339 = vmatprep.subr.bf16.mxu0 0
        %2340 = vmatpush1.bf16.msra.mxu0 0
        %2341 = vmatprep.mubr.bf16.mxu0 0
        %2342 = vmatmul.mubr.bf16.gmra.mrb[0].mxu0 %v2304
        %v2343 = vpop.f32.mrb[0].mxu0
        %v2344 = vadd.f32 0.0, %v2343
        %v2345 = vpop.f32.mrb[0].mxu0
        %v2346 = vpop.f32.mrb[0].mxu0
        %v2347 = vpop.f32.mrb[0].mxu0
        %2348 = vdwg.mxu0
        %v2350 = vsel %vm1492, %v2197, 0
        %v2353 = vsel %vm2213, %v2205, 0
        %2355 = vmatprep.subr.bf16.mxu0 0
        %2356 = vmatpush1.bf16.msra.mxu0 %v2353
        %2357 = vmatprep.subr.bf16.mxu0 0
        %2358 = vmatpush1.bf16.msra.mxu0 0
        %2359 = vmatprep.subr.bf16.mxu0 0
        %2360 = vmatpush1.bf16.msra.mxu0 0
        %2361 = vmatprep.subr.bf16.mxu0 0
        %2362 = vmatpush1.bf16.msra.mxu0 0
        %2363 = vmatprep.subr.bf16.mxu0 0
        %2364 = vmatpush1.bf16.msra.mxu0 0
        %2365 = vmatprep.subr.bf16.mxu0 0
        %2366 = vmatpush1.bf16.msra.mxu0 0
        %2367 = vmatprep.subr.bf16.mxu0 0
        %2368 = vmatpush1.bf16.msra.mxu0 0
        %2369 = vmatprep.subr.bf16.mxu0 0
        %2370 = vmatpush1.bf16.msra.mxu0 0
        %2371 = vmatprep.subr.bf16.mxu0 0
        %2372 = vmatpush1.bf16.msra.mxu0 0
        %2373 = vmatprep.subr.bf16.mxu0 0
        %2374 = vmatpush1.bf16.msra.mxu0 0
        %2375 = vmatprep.subr.bf16.mxu0 0
        %2376 = vmatpush1.bf16.msra.mxu0 0
        %2377 = vmatprep.subr.bf16.mxu0 0
        %2378 = vmatpush1.bf16.msra.mxu0 0
        %2379 = vmatprep.subr.bf16.mxu0 0
        %2380 = vmatpush1.bf16.msra.mxu0 0
        %2381 = vmatprep.subr.bf16.mxu0 0
        %2382 = vmatpush1.bf16.msra.mxu0 0
        %2383 = vmatprep.subr.bf16.mxu0 0
        %2384 = vmatpush1.bf16.msra.mxu0 0
        %2385 = vmatprep.subr.bf16.mxu0 0
        %2386 = vmatpush1.bf16.msra.mxu0 0
        %2387 = vmatprep.mubr.bf16.mxu0 0
        %2388 = vmatmul.mubr.bf16.gmra.mrb[0].mxu0 %v2350
        %v2389 = vpop.f32.mrb[0].mxu0
        %v2390 = vadd.f32 0.0, %v2389
        %v2391 = vpop.f32.mrb[0].mxu0
        %v2392 = vpop.f32.mrb[0].mxu0
        %v2393 = vpop.f32.mrb[0].mxu0
        %2394 = vdwg.mxu0
        %v2396 = vsel %vm1492, %v2198, 0
        %v2399 = vsel %vm2213, %v2206, 0
        %2401 = vmatprep.subr.bf16.mxu0 0
        %2402 = vmatpush1.bf16.msra.mxu0 %v2399
        %2403 = vmatprep.subr.bf16.mxu0 0
        %2404 = vmatpush1.bf16.msra.mxu0 0
        %2405 = vmatprep.subr.bf16.mxu0 0
        %2406 = vmatpush1.bf16.msra.mxu0 0
        %2407 = vmatprep.subr.bf16.mxu0 0
        %2408 = vmatpush1.bf16.msra.mxu0 0
        %2409 = vmatprep.subr.bf16.mxu0 0
        %2410 = vmatpush1.bf16.msra.mxu0 0
        %2411 = vmatprep.subr.bf16.mxu0 0
        %2412 = vmatpush1.bf16.msra.mxu0 0
        %2413 = vmatprep.subr.bf16.mxu0 0
        %2414 = vmatpush1.bf16.msra.mxu0 0
        %2415 = vmatprep.subr.bf16.mxu0 0
        %2416 = vmatpush1.bf16.msra.mxu0 0
        %2417 = vmatprep.subr.bf16.mxu0 0
        %2418 = vmatpush1.bf16.msra.mxu0 0
        %2419 = vmatprep.subr.bf16.mxu0 0
        %2420 = vmatpush1.bf16.msra.mxu0 0
        %2421 = vmatprep.subr.bf16.mxu0 0
        %2422 = vmatpush1.bf16.msra.mxu0 0
        %2423 = vmatprep.subr.bf16.mxu0 0
        %2424 = vmatpush1.bf16.msra.mxu0 0
        %2425 = vmatprep.subr.bf16.mxu0 0
        %2426 = vmatpush1.bf16.msra.mxu0 0
        %2427 = vmatprep.subr.bf16.mxu0 0
        %2428 = vmatpush1.bf16.msra.mxu0 0
        %2429 = vmatprep.subr.bf16.mxu0 0
        %2430 = vmatpush1.bf16.msra.mxu0 0
        %2431 = vmatprep.subr.bf16.mxu0 0
        %2432 = vmatpush1.bf16.msra.mxu0 0
        %2433 = vmatprep.mubr.bf16.mxu0 0
        %2434 = vmatmul.mubr.bf16.gmra.mrb[0].mxu0 %v2396
        %v2435 = vpop.f32.mrb[0].mxu0
        %v2436 = vadd.f32 0.0, %v2435
        %v2437 = vpop.f32.mrb[0].mxu0
        %v2438 = vpop.f32.mrb[0].mxu0
        %v2439 = vpop.f32.mrb[0].mxu0
        %2440 = vdwg.mxu0
        %v2442 = vsel %vm1492, %v2199, 0
        %v2445 = vsel %vm2213, %v2207, 0
        %2447 = vmatprep.subr.bf16.mxu0 0
        %2448 = vmatpush1.bf16.msra.mxu0 %v2445
        %2449 = vmatprep.subr.bf16.mxu0 0
        %2450 = vmatpush1.bf16.msra.mxu0 0
        %2451 = vmatprep.subr.bf16.mxu0 0
        %2452 = vmatpush1.bf16.msra.mxu0 0
        %2453 = vmatprep.subr.bf16.mxu0 0
        %2454 = vmatpush1.bf16.msra.mxu0 0
        %2455 = vmatprep.subr.bf16.mxu0 0
        %2456 = vmatpush1.bf16.msra.mxu0 0
        %2457 = vmatprep.subr.bf16.mxu0 0
        %2458 = vmatpush1.bf16.msra.mxu0 0
        %2459 = vmatprep.subr.bf16.mxu0 0
        %2460 = vmatpush1.bf16.msra.mxu0 0
        %2461 = vmatprep.subr.bf16.mxu0 0
        %2462 = vmatpush1.bf16.msra.mxu0 0
        %2463 = vmatprep.subr.bf16.mxu0 0
        %2464 = vmatpush1.bf16.msra.mxu0 0
        %2465 = vmatprep.subr.bf16.mxu0 0
        %2466 = vmatpush1.bf16.msra.mxu0 0
        %2467 = vmatprep.subr.bf16.mxu0 0
        %2468 = vmatpush1.bf16.msra.mxu0 0
        %2469 = vmatprep.subr.bf16.mxu0 0
        %2470 = vmatpush1.bf16.msra.mxu0 0
        %2471 = vmatprep.subr.bf16.mxu0 0
        %2472 = vmatpush1.bf16.msra.mxu0 0
        %2473 = vmatprep.subr.bf16.mxu0 0
        %2474 = vmatpush1.bf16.msra.mxu0 0
        %2475 = vmatprep.subr.bf16.mxu0 0
        %2476 = vmatpush1.bf16.msra.mxu0 0
        %2477 = vmatprep.subr.bf16.mxu0 0
        %2478 = vmatpush1.bf16.msra.mxu0 0
        %2479 = vmatprep.mubr.bf16.mxu0 0
        %2480 = vmatmul.mubr.bf16.gmra.mrb[0].mxu0 %v2442
        %v2481 = vpop.f32.mrb[0].mxu0
        %v2482 = vadd.f32 0.0, %v2481
        %v2483 = vpop.f32.mrb[0].mxu0
        %v2484 = vpop.f32.mrb[0].mxu0
        %v2485 = vpop.f32.mrb[0].mxu0
        %2486 = vdwg.mxu0
        %v2488 = vsel %vm1492, %v2200, 0
        %v2491 = vsel %vm2213, %v2208, 0
        %2493 = vmatprep.subr.bf16.mxu0 0
        %2494 = vmatpush1.bf16.msra.mxu0 %v2491
        %2495 = vmatprep.subr.bf16.mxu0 0
        %2496 = vmatpush1.bf16.msra.mxu0 0
        %2497 = vmatprep.subr.bf16.mxu0 0
        %2498 = vmatpush1.bf16.msra.mxu0 0
        %2499 = vmatprep.subr.bf16.mxu0 0
        %2500 = vmatpush1.bf16.msra.mxu0 0
        %2501 = vmatprep.subr.bf16.mxu0 0
        %2502 = vmatpush1.bf16.msra.mxu0 0
        %2503 = vmatprep.subr.bf16.mxu0 0
        %2504 = vmatpush1.bf16.msra.mxu0 0
        %2505 = vmatprep.subr.bf16.mxu0 0
        %2506 = vmatpush1.bf16.msra.mxu0 0
        %2507 = vmatprep.subr.bf16.mxu0 0
        %2508 = vmatpush1.bf16.msra.mxu0 0
        %2509 = vmatprep.subr.bf16.mxu0 0
        %2510 = vmatpush1.bf16.msra.mxu0 0
        %2511 = vmatprep.subr.bf16.mxu0 0
        %2512 = vmatpush1.bf16.msra.mxu0 0
        %2513 = vmatprep.subr.bf16.mxu0 0
        %2514 = vmatpush1.bf16.msra.mxu0 0
        %2515 = vmatprep.subr.bf16.mxu0 0
        %2516 = vmatpush1.bf16.msra.mxu0 0
        %2517 = vmatprep.subr.bf16.mxu0 0
        %2518 = vmatpush1.bf16.msra.mxu0 0
        %2519 = vmatprep.subr.bf16.mxu0 0
        %2520 = vmatpush1.bf16.msra.mxu0 0
        %2521 = vmatprep.subr.bf16.mxu0 0
        %2522 = vmatpush1.bf16.msra.mxu0 0
        %2523 = vmatprep.subr.bf16.mxu0 0
        %2524 = vmatpush1.bf16.msra.mxu0 0
        %2525 = vmatprep.mubr.bf16.mxu0 0
        %2526 = vmatmul.mubr.bf16.gmra.mrb[0].mxu0 %v2488
        %v2527 = vpop.f32.mrb[0].mxu0
        %v2528 = vadd.f32 0.0, %v2527
        %v2529 = vpop.f32.mrb[0].mxu0
        %v2530 = vpop.f32.mrb[0].mxu0
        %v2531 = vpop.f32.mrb[0].mxu0
        %2532 = vdwg.mxu0
        %v2534 = vsel %vm1492, %v2201, 0
        %v2537 = vsel %vm2213, %v2209, 0
        %2539 = vmatprep.subr.bf16.mxu0 0
        %2540 = vmatpush1.bf16.msra.mxu0 %v2537
        %2541 = vmatprep.subr.bf16.mxu0 0
        %2542 = vmatpush1.bf16.msra.mxu0 0
        %2543 = vmatprep.subr.bf16.mxu0 0
        %2544 = vmatpush1.bf16.msra.mxu0 0
        %2545 = vmatprep.subr.bf16.mxu0 0
        %2546 = vmatpush1.bf16.msra.mxu0 0
        %2547 = vmatprep.subr.bf16.mxu0 0
        %2548 = vmatpush1.bf16.msra.mxu0 0
        %2549 = vmatprep.subr.bf16.mxu0 0
        %2550 = vmatpush1.bf16.msra.mxu0 0
        %2551 = vmatprep.subr.bf16.mxu0 0
        %2552 = vmatpush1.bf16.msra.mxu0 0
        %2553 = vmatprep.subr.bf16.mxu0 0
        %2554 = vmatpush1.bf16.msra.mxu0 0
        %2555 = vmatprep.subr.bf16.mxu0 0
        %2556 = vmatpush1.bf16.msra.mxu0 0
        %2557 = vmatprep.subr.bf16.mxu0 0
        %2558 = vmatpush1.bf16.msra.mxu0 0
        %2559 = vmatprep.subr.bf16.mxu0 0
        %2560 = vmatpush1.bf16.msra.mxu0 0
        %2561 = vmatprep.subr.bf16.mxu0 0
        %2562 = vmatpush1.bf16.msra.mxu0 0
        %2563 = vmatprep.subr.bf16.mxu0 0
        %2564 = vmatpush1.bf16.msra.mxu0 0
        %2565 = vmatprep.subr.bf16.mxu0 0
        %2566 = vmatpush1.bf16.msra.mxu0 0
        %2567 = vmatprep.subr.bf16.mxu0 0
        %2568 = vmatpush1.bf16.msra.mxu0 0
        %2569 = vmatprep.subr.bf16.mxu0 0
        %2570 = vmatpush1.bf16.msra.mxu0 0
        %2571 = vmatprep.mubr.bf16.mxu0 0
        %2572 = vmatmul.mubr.bf16.gmra.mrb[0].mxu0 %v2534
        %v2573 = vpop.f32.mrb[0].mxu0
        %v2574 = vadd.f32 0.0, %v2573
        %v2575 = vpop.f32.mrb[0].mxu0
        %v2576 = vpop.f32.mrb[0].mxu0
        %v2577 = vpop.f32.mrb[0].mxu0
        %2578 = vdwg.mxu0
        %v2579 = vadd.f32 %v2186, %v2252
        %v2580 = vadd.f32 %v2187, %v2298
        %v2581 = vadd.f32 %v2188, %v2344
        %v2582 = vadd.f32 %v2189, %v2390
        %v2583 = vadd.f32 %v2190, %v2436
        %v2584 = vadd.f32 %v2191, %v2482
        %v2585 = vadd.f32 %v2192, %v2528
        %v2586 = vadd.f32 %v2193, %v2574
        %2587 = vst.msk [vmem:[#allocation4] sm:$0xff] %vm1492, %v2579
        %2588 = vst.msk [vmem:[#allocation4 + $0x8] sm:$0xff] %vm1492, %v2580
        %2589 = vst.msk [vmem:[#allocation4 + $0x10] sm:$0xff] %vm1492, %v2581
        %2590 = vst.msk [vmem:[#allocation4 + $0x18] sm:$0xff] %vm1492, %v2582
        %2591 = vst.msk [vmem:[#allocation4 + $0x20] sm:$0xff] %vm1492, %v2583
        %2592 = vst.msk [vmem:[#allocation4 + $0x28] sm:$0xff] %vm1492, %v2584
        %2593 = vst.msk [vmem:[#allocation4 + $0x30] sm:$0xff] %vm1492, %v2585
        %2594 = vst.msk [vmem:[#allocation4 + $0x38] sm:$0xff] %vm1492, %v2586
        %2595 = vst.msk [vmem:[#allocation2] sm:$0xff] %vm1492, %v1962
        %v2596 = vld [vmem:[#allocation3] sm:$0xff]
        %v2597 = vrcp.pop %v2596
        %v2598 = vld [vmem:[#allocation4] sm:$0xff]
        %v2599 = vld [vmem:[#allocation4 + $0x8] sm:$0xff]
        %v2600 = vld [vmem:[#allocation4 + $0x10] sm:$0xff]
        %v2601 = vld [vmem:[#allocation4 + $0x18] sm:$0xff]
        %v2602 = vld [vmem:[#allocation4 + $0x20] sm:$0xff]
        %v2603 = vld [vmem:[#allocation4 + $0x28] sm:$0xff]
        %v2604 = vld [vmem:[#allocation4 + $0x30] sm:$0xff]
        %v2605 = vld [vmem:[#allocation4 + $0x38] sm:$0xff]
        %v2606 = vlaneseq
        %v2607 = vshrl.u32 %v2606, 7
        %v2608 = vsub.s32 0, %v2607
        %v2609 = vrot.slane %v2597, %v2608
        %2611 = vbcast.lane.b32.xlu0 %v2609, 256
        %v2612 = vpop.permute.xlu0 %2611
        %v2613 = vlaneseq
        %v2614 = vshrl.u32 %v2613, 7
        %v2615 = vsub.s32 1, %v2614
        %v2616 = vrot.slane %v2597, %v2615
        %2618 = vbcast.lane.b32.xlu0 %v2616, 256
        %v2619 = vpop.permute.xlu0 %2618
        %v2620 = vlaneseq
        %v2621 = vshrl.u32 %v2620, 7
        %v2622 = vsub.s32 2, %v2621
        %v2623 = vrot.slane %v2597, %v2622
        %2625 = vbcast.lane.b32.xlu0 %v2623, 256
        %v2626 = vpop.permute.xlu0 %2625
        %v2627 = vlaneseq
        %v2628 = vshrl.u32 %v2627, 7
        %v2629 = vsub.s32 3, %v2628
        %v2630 = vrot.slane %v2597, %v2629
        %2632 = vbcast.lane.b32.xlu0 %v2630, 256
        %v2633 = vpop.permute.xlu0 %2632
        %v2634 = vlaneseq
        %v2635 = vshrl.u32 %v2634, 7
        %v2636 = vsub.s32 4, %v2635
        %v2637 = vrot.slane %v2597, %v2636
        %2639 = vbcast.lane.b32.xlu0 %v2637, 256
        %v2640 = vpop.permute.xlu0 %2639
        %v2641 = vlaneseq
        %v2642 = vshrl.u32 %v2641, 7
        %v2643 = vsub.s32 5, %v2642
        %v2644 = vrot.slane %v2597, %v2643
        %2646 = vbcast.lane.b32.xlu0 %v2644, 256
        %v2647 = vpop.permute.xlu0 %2646
        %v2648 = vlaneseq
        %v2649 = vshrl.u32 %v2648, 7
        %v2650 = vsub.s32 6, %v2649
        %v2651 = vrot.slane %v2597, %v2650
        %2653 = vbcast.lane.b32.xlu0 %v2651, 256
        %v2654 = vpop.permute.xlu0 %2653
        %v2655 = vlaneseq
        %v2656 = vshrl.u32 %v2655, 7
        %v2657 = vsub.s32 7, %v2656
        %v2658 = vrot.slane %v2597, %v2657
        %2660 = vbcast.lane.b32.xlu0 %v2658, 256
        %v2661 = vpop.permute.xlu0 %2660
        %v2662 = vmul.f32 %v2598, %v2612
        %v2663 = vmul.f32 %v2599, %v2619
        %v2664 = vmul.f32 %v2600, %v2626
        %v2665 = vmul.f32 %v2601, %v2633
        %v2666 = vmul.f32 %v2602, %v2640
        %v2667 = vmul.f32 %v2603, %v2647
        %v2668 = vmul.f32 %v2604, %v2654
        %v2669 = vmul.f32 %v2605, %v2661
        %v2670 = vpack.c.bf16 %v2662, %v2662
        %v2671 = vpack.c.bf16 %v2663, %v2663
        %v2672 = vpack.c.bf16 %v2664, %v2664
        %v2673 = vpack.c.bf16 %v2665, %v2665
        %v2674 = vpack.c.bf16 %v2666, %v2666
        %v2675 = vpack.c.bf16 %v2667, %v2667
        %v2676 = vpack.c.bf16 %v2668, %v2668
        %v2677 = vpack.c.bf16 %v2669, %v2669
        %v2678 = vld [vmem:[%s3] sm:$0xf]
        %s2679 = scalar_lea.vmem %s3, 4
        %v2680 = vld [vmem:[%s2679] sm:$0xf]
        %v2682 = vsel %vm1492, %v2671, 0
        %v2685 = vsel %vm2213, %v2680, 0
        %2687 = vmatprep.subr.bf16.mxu0 0
        %2688 = vmatpush1.bf16.msra.mxu0 %v2685
        %2689 = vmatprep.subr.bf16.mxu0 0
        %2690 = vmatpush1.bf16.msra.mxu0 0
        %2691 = vmatprep.subr.bf16.mxu0 0
        %2692 = vmatpush1.bf16.msra.mxu0 0
        %2693 = vmatprep.subr.bf16.mxu0 0
        %2694 = vmatpush1.bf16.msra.mxu0 0
        %2695 = vmatprep.subr.bf16.mxu0 0
        %2696 = vmatpush1.bf16.msra.mxu0 0
        %2697 = vmatprep.subr.bf16.mxu0 0
        %2698 = vmatpush1.bf16.msra.mxu0 0
        %2699 = vmatprep.subr.bf16.mxu0 0
        %2700 = vmatpush1.bf16.msra.mxu0 0
        %2701 = vmatprep.subr.bf16.mxu0 0
        %2702 = vmatpush1.bf16.msra.mxu0 0
        %2703 = vmatprep.subr.bf16.mxu0 0
        %2704 = vmatpush1.bf16.msra.mxu0 0
        %2705 = vmatprep.subr.bf16.mxu0 0
        %2706 = vmatpush1.bf16.msra.mxu0 0
        %2707 = vmatprep.subr.bf16.mxu0 0
        %2708 = vmatpush1.bf16.msra.mxu0 0
        %2709 = vmatprep.subr.bf16.mxu0 0
        %2710 = vmatpush1.bf16.msra.mxu0 0
        %2711 = vmatprep.subr.bf16.mxu0 0
        %2712 = vmatpush1.bf16.msra.mxu0 0
        %2713 = vmatprep.subr.bf16.mxu0 0
        %2714 = vmatpush1.bf16.msra.mxu0 0
        %2715 = vmatprep.subr.bf16.mxu0 0
        %2716 = vmatpush1.bf16.msra.mxu0 0
        %2717 = vmatprep.subr.bf16.mxu0 0
        %2718 = vmatpush1.bf16.msra.mxu0 0
        %2719 = vmatprep.mubr.bf16.mxu0 0
        %2720 = vmatmul.mubr.bf16.gmra.mrb[0].mxu0 %v2682
        %v2721 = vpop.f32.mrb[0].mxu0
        %v2722 = vadd.f32 0.0, %v2721
        %v2723 = vpop.f32.mrb[0].mxu0
        %v2724 = vpop.f32.mrb[0].mxu0
        %v2725 = vpop.f32.mrb[0].mxu0
        %2726 = vdwg.mxu0
        %v2728 = vsel %vm1492, %v2670, 0
        %v2731 = vsel %vm2213, %v2678, 0
        %2733 = vmatprep.subr.bf16.mxu0 0
        %2734 = vmatpush1.bf16.msra.mxu0 %v2731
        %2735 = vmatprep.subr.bf16.mxu0 0
        %2736 = vmatpush1.bf16.msra.mxu0 0
        %2737 = vmatprep.subr.bf16.mxu0 0
        %2738 = vmatpush1.bf16.msra.mxu0 0
        %2739 = vmatprep.subr.bf16.mxu0 0
        %2740 = vmatpush1.bf16.msra.mxu0 0
        %2741 = vmatprep.subr.bf16.mxu0 0
        %2742 = vmatpush1.bf16.msra.mxu0 0
        %2743 = vmatprep.subr.bf16.mxu0 0
        %2744 = vmatpush1.bf16.msra.mxu0 0
        %2745 = vmatprep.subr.bf16.mxu0 0
        %2746 = vmatpush1.bf16.msra.mxu0 0
        %2747 = vmatprep.subr.bf16.mxu0 0
        %2748 = vmatpush1.bf16.msra.mxu0 0
        %2749 = vmatprep.subr.bf16.mxu0 0
        %2750 = vmatpush1.bf16.msra.mxu0 0
        %2751 = vmatprep.subr.bf16.mxu0 0
        %2752 = vmatpush1.bf16.msra.mxu0 0
        %2753 = vmatprep.subr.bf16.mxu0 0
        %2754 = vmatpush1.bf16.msra.mxu0 0
        %2755 = vmatprep.subr.bf16.mxu0 0
        %2756 = vmatpush1.bf16.msra.mxu0 0
        %2757 = vmatprep.subr.bf16.mxu0 0
        %2758 = vmatpush1.bf16.msra.mxu0 0
        %2759 = vmatprep.subr.bf16.mxu0 0
        %2760 = vmatpush1.bf16.msra.mxu0 0
        %2761 = vmatprep.subr.bf16.mxu0 0
        %2762 = vmatpush1.bf16.msra.mxu0 0
        %2763 = vmatprep.subr.bf16.mxu0 0
        %2764 = vmatpush1.bf16.msra.mxu0 0
        %2765 = vmatprep.mubr.bf16.mxu0 0
        %2766 = vmatmul.mubr.bf16.gmra.mrb[0].mxu0 %v2728
        %v2767 = vpop.f32.mrb[0].mxu0
        %v2768 = vadd.f32 %v2722, %v2767
        %v2769 = vpop.f32.mrb[0].mxu0
        %v2770 = vpop.f32.mrb[0].mxu0
        %v2771 = vpop.f32.mrb[0].mxu0
        %2772 = vdwg.mxu0
        %s2773 = scalar_lea.vmem %s3, 8
        %v2774 = vld [vmem:[%s2773] sm:$0xf]
        %v2776 = vsel %vm1492, %v2672, 0
        %v2779 = vsel %vm2213, %v2774, 0
        %2781 = vmatprep.subr.bf16.mxu0 0
        %2782 = vmatpush1.bf16.msra.mxu0 %v2779
        %2783 = vmatprep.subr.bf16.mxu0 0
        %2784 = vmatpush1.bf16.msra.mxu0 0
        %2785 = vmatprep.subr.bf16.mxu0 0
        %2786 = vmatpush1.bf16.msra.mxu0 0
        %2787 = vmatprep.subr.bf16.mxu0 0
        %2788 = vmatpush1.bf16.msra.mxu0 0
        %2789 = vmatprep.subr.bf16.mxu0 0
        %2790 = vmatpush1.bf16.msra.mxu0 0
        %2791 = vmatprep.subr.bf16.mxu0 0
        %2792 = vmatpush1.bf16.msra.mxu0 0
        %2793 = vmatprep.subr.bf16.mxu0 0
        %2794 = vmatpush1.bf16.msra.mxu0 0
        %2795 = vmatprep.subr.bf16.mxu0 0
        %2796 = vmatpush1.bf16.msra.mxu0 0
        %2797 = vmatprep.subr.bf16.mxu0 0
        %2798 = vmatpush1.bf16.msra.mxu0 0
        %2799 = vmatprep.subr.bf16.mxu0 0
        %2800 = vmatpush1.bf16.msra.mxu0 0
        %2801 = vmatprep.subr.bf16.mxu0 0
        %2802 = vmatpush1.bf16.msra.mxu0 0
        %2803 = vmatprep.subr.bf16.mxu0 0
        %2804 = vmatpush1.bf16.msra.mxu0 0
        %2805 = vmatprep.subr.bf16.mxu0 0
        %2806 = vmatpush1.bf16.msra.mxu0 0
        %2807 = vmatprep.subr.bf16.mxu0 0
        %2808 = vmatpush1.bf16.msra.mxu0 0
        %2809 = vmatprep.subr.bf16.mxu0 0
        %2810 = vmatpush1.bf16.msra.mxu0 0
        %2811 = vmatprep.subr.bf16.mxu0 0
        %2812 = vmatpush1.bf16.msra.mxu0 0
        %2813 = vmatprep.mubr.bf16.mxu0 0
        %2814 = vmatmul.mubr.bf16.gmra.mrb[0].mxu0 %v2776
        %v2815 = vpop.f32.mrb[0].mxu0
        %v2816 = vadd.f32 0.0, %v2815
        %v2817 = vpop.f32.mrb[0].mxu0
        %v2818 = vpop.f32.mrb[0].mxu0
        %v2819 = vpop.f32.mrb[0].mxu0
        %2820 = vdwg.mxu0
        %v2821 = vadd.f32 %v2768, %v2816
        %s2822 = scalar_lea.vmem %s3, 12
        %v2823 = vld [vmem:[%s2822] sm:$0xf]
        %v2825 = vsel %vm1492, %v2673, 0
        %v2828 = vsel %vm2213, %v2823, 0
        %2830 = vmatprep.subr.bf16.mxu0 0
        %2831 = vmatpush1.bf16.msra.mxu0 %v2828
        %2832 = vmatprep.subr.bf16.mxu0 0
        %2833 = vmatpush1.bf16.msra.mxu0 0
        %2834 = vmatprep.subr.bf16.mxu0 0
        %2835 = vmatpush1.bf16.msra.mxu0 0
        %2836 = vmatprep.subr.bf16.mxu0 0
        %2837 = vmatpush1.bf16.msra.mxu0 0
        %2838 = vmatprep.subr.bf16.mxu0 0
        %2839 = vmatpush1.bf16.msra.mxu0 0
        %2840 = vmatprep.subr.bf16.mxu0 0
        %2841 = vmatpush1.bf16.msra.mxu0 0
        %2842 = vmatprep.subr.bf16.mxu0 0
        %2843 = vmatpush1.bf16.msra.mxu0 0
        %2844 = vmatprep.subr.bf16.mxu0 0
        %2845 = vmatpush1.bf16.msra.mxu0 0
        %2846 = vmatprep.subr.bf16.mxu0 0
        %2847 = vmatpush1.bf16.msra.mxu0 0
        %2848 = vmatprep.subr.bf16.mxu0 0
        %2849 = vmatpush1.bf16.msra.mxu0 0
        %2850 = vmatprep.subr.bf16.mxu0 0
        %2851 = vmatpush1.bf16.msra.mxu0 0
        %2852 = vmatprep.subr.bf16.mxu0 0
        %2853 = vmatpush1.bf16.msra.mxu0 0
        %2854 = vmatprep.subr.bf16.mxu0 0
        %2855 = vmatpush1.bf16.msra.mxu0 0
        %2856 = vmatprep.subr.bf16.mxu0 0
        %2857 = vmatpush1.bf16.msra.mxu0 0
        %2858 = vmatprep.subr.bf16.mxu0 0
        %2859 = vmatpush1.bf16.msra.mxu0 0
        %2860 = vmatprep.subr.bf16.mxu0 0
        %2861 = vmatpush1.bf16.msra.mxu0 0
        %2862 = vmatprep.mubr.bf16.mxu0 0
        %2863 = vmatmul.mubr.bf16.gmra.mrb[0].mxu0 %v2825
        %v2864 = vpop.f32.mrb[0].mxu0
        %v2865 = vadd.f32 0.0, %v2864
        %v2866 = vpop.f32.mrb[0].mxu0
        %v2867 = vpop.f32.mrb[0].mxu0
        %v2868 = vpop.f32.mrb[0].mxu0
        %2869 = vdwg.mxu0
        %v2870 = vadd.f32 %v2821, %v2865
        %s2871 = scalar_lea.vmem %s3, 16
        %v2872 = vld [vmem:[%s2871] sm:$0xf]
        %v2874 = vsel %vm1492, %v2674, 0
        %v2877 = vsel %vm2213, %v2872, 0
        %2879 = vmatprep.subr.bf16.mxu0 0
        %2880 = vmatpush1.bf16.msra.mxu0 %v2877
        %2881 = vmatprep.subr.bf16.mxu0 0
        %2882 = vmatpush1.bf16.msra.mxu0 0
        %2883 = vmatprep.subr.bf16.mxu0 0
        %2884 = vmatpush1.bf16.msra.mxu0 0
        %2885 = vmatprep.subr.bf16.mxu0 0
        %2886 = vmatpush1.bf16.msra.mxu0 0
        %2887 = vmatprep.subr.bf16.mxu0 0
        %2888 = vmatpush1.bf16.msra.mxu0 0
        %2889 = vmatprep.subr.bf16.mxu0 0
        %2890 = vmatpush1.bf16.msra.mxu0 0
        %2891 = vmatprep.subr.bf16.mxu0 0
        %2892 = vmatpush1.bf16.msra.mxu0 0
        %2893 = vmatprep.subr.bf16.mxu0 0
        %2894 = vmatpush1.bf16.msra.mxu0 0
        %2895 = vmatprep.subr.bf16.mxu0 0
        %2896 = vmatpush1.bf16.msra.mxu0 0
        %2897 = vmatprep.subr.bf16.mxu0 0
        %2898 = vmatpush1.bf16.msra.mxu0 0
        %2899 = vmatprep.subr.bf16.mxu0 0
        %2900 = vmatpush1.bf16.msra.mxu0 0
        %2901 = vmatprep.subr.bf16.mxu0 0
        %2902 = vmatpush1.bf16.msra.mxu0 0
        %2903 = vmatprep.subr.bf16.mxu0 0
        %2904 = vmatpush1.bf16.msra.mxu0 0
        %2905 = vmatprep.subr.bf16.mxu0 0
        %2906 = vmatpush1.bf16.msra.mxu0 0
        %2907 = vmatprep.subr.bf16.mxu0 0
        %2908 = vmatpush1.bf16.msra.mxu0 0
        %2909 = vmatprep.subr.bf16.mxu0 0
        %2910 = vmatpush1.bf16.msra.mxu0 0
        %2911 = vmatprep.mubr.bf16.mxu0 0
        %2912 = vmatmul.mubr.bf16.gmra.mrb[0].mxu0 %v2874
        %v2913 = vpop.f32.mrb[0].mxu0
        %v2914 = vadd.f32 0.0, %v2913
        %v2915 = vpop.f32.mrb[0].mxu0
        %v2916 = vpop.f32.mrb[0].mxu0
        %v2917 = vpop.f32.mrb[0].mxu0
        %2918 = vdwg.mxu0
        %v2919 = vadd.f32 %v2870, %v2914
        %s2920 = scalar_lea.vmem %s3, 20
        %v2921 = vld [vmem:[%s2920] sm:$0xf]
        %v2923 = vsel %vm1492, %v2675, 0
        %v2926 = vsel %vm2213, %v2921, 0
        %2928 = vmatprep.subr.bf16.mxu0 0
        %2929 = vmatpush1.bf16.msra.mxu0 %v2926
        %2930 = vmatprep.subr.bf16.mxu0 0
        %2931 = vmatpush1.bf16.msra.mxu0 0
        %2932 = vmatprep.subr.bf16.mxu0 0
        %2933 = vmatpush1.bf16.msra.mxu0 0
        %2934 = vmatprep.subr.bf16.mxu0 0
        %2935 = vmatpush1.bf16.msra.mxu0 0
        %2936 = vmatprep.subr.bf16.mxu0 0
        %2937 = vmatpush1.bf16.msra.mxu0 0
        %2938 = vmatprep.subr.bf16.mxu0 0
        %2939 = vmatpush1.bf16.msra.mxu0 0
        %2940 = vmatprep.subr.bf16.mxu0 0
        %2941 = vmatpush1.bf16.msra.mxu0 0
        %2942 = vmatprep.subr.bf16.mxu0 0
        %2943 = vmatpush1.bf16.msra.mxu0 0
        %2944 = vmatprep.subr.bf16.mxu0 0
        %2945 = vmatpush1.bf16.msra.mxu0 0
        %2946 = vmatprep.subr.bf16.mxu0 0
        %2947 = vmatpush1.bf16.msra.mxu0 0
        %2948 = vmatprep.subr.bf16.mxu0 0
        %2949 = vmatpush1.bf16.msra.mxu0 0
        %2950 = vmatprep.subr.bf16.mxu0 0
        %2951 = vmatpush1.bf16.msra.mxu0 0
        %2952 = vmatprep.subr.bf16.mxu0 0
        %2953 = vmatpush1.bf16.msra.mxu0 0
        %2954 = vmatprep.subr.bf16.mxu0 0
        %2955 = vmatpush1.bf16.msra.mxu0 0
        %2956 = vmatprep.subr.bf16.mxu0 0
        %2957 = vmatpush1.bf16.msra.mxu0 0
        %2958 = vmatprep.subr.bf16.mxu0 0
        %2959 = vmatpush1.bf16.msra.mxu0 0
        %2960 = vmatprep.mubr.bf16.mxu0 0
        %2961 = vmatmul.mubr.bf16.gmra.mrb[0].mxu0 %v2923
        %v2962 = vpop.f32.mrb[0].mxu0
        %v2963 = vadd.f32 0.0, %v2962
        %v2964 = vpop.f32.mrb[0].mxu0
        %v2965 = vpop.f32.mrb[0].mxu0
        %v2966 = vpop.f32.mrb[0].mxu0
        %2967 = vdwg.mxu0
        %v2968 = vadd.f32 %v2919, %v2963
        %s2969 = scalar_lea.vmem %s3, 24
        %v2970 = vld [vmem:[%s2969] sm:$0xf]
        %v2972 = vsel %vm1492, %v2676, 0
        %v2975 = vsel %vm2213, %v2970, 0
        %2977 = vmatprep.subr.bf16.mxu0 0
        %2978 = vmatpush1.bf16.msra.mxu0 %v2975
        %2979 = vmatprep.subr.bf16.mxu0 0
        %2980 = vmatpush1.bf16.msra.mxu0 0
        %2981 = vmatprep.subr.bf16.mxu0 0
        %2982 = vmatpush1.bf16.msra.mxu0 0
        %2983 = vmatprep.subr.bf16.mxu0 0
        %2984 = vmatpush1.bf16.msra.mxu0 0
        %2985 = vmatprep.subr.bf16.mxu0 0
        %2986 = vmatpush1.bf16.msra.mxu0 0
        %2987 = vmatprep.subr.bf16.mxu0 0
        %2988 = vmatpush1.bf16.msra.mxu0 0
        %2989 = vmatprep.subr.bf16.mxu0 0
        %2990 = vmatpush1.bf16.msra.mxu0 0
        %2991 = vmatprep.subr.bf16.mxu0 0
        %2992 = vmatpush1.bf16.msra.mxu0 0
        %2993 = vmatprep.subr.bf16.mxu0 0
        %2994 = vmatpush1.bf16.msra.mxu0 0
        %2995 = vmatprep.subr.bf16.mxu0 0
        %2996 = vmatpush1.bf16.msra.mxu0 0
        %2997 = vmatprep.subr.bf16.mxu0 0
        %2998 = vmatpush1.bf16.msra.mxu0 0
        %2999 = vmatprep.subr.bf16.mxu0 0
        %3000 = vmatpush1.bf16.msra.mxu0 0
        %3001 = vmatprep.subr.bf16.mxu0 0
        %3002 = vmatpush1.bf16.msra.mxu0 0
        %3003 = vmatprep.subr.bf16.mxu0 0
        %3004 = vmatpush1.bf16.msra.mxu0 0
        %3005 = vmatprep.subr.bf16.mxu0 0
        %3006 = vmatpush1.bf16.msra.mxu0 0
        %3007 = vmatprep.subr.bf16.mxu0 0
        %3008 = vmatpush1.bf16.msra.mxu0 0
        %3009 = vmatprep.mubr.bf16.mxu0 0
        %3010 = vmatmul.mubr.bf16.gmra.mrb[0].mxu0 %v2972
        %v3011 = vpop.f32.mrb[0].mxu0
        %v3012 = vadd.f32 0.0, %v3011
        %v3013 = vpop.f32.mrb[0].mxu0
        %v3014 = vpop.f32.mrb[0].mxu0
        %v3015 = vpop.f32.mrb[0].mxu0
        %3016 = vdwg.mxu0
        %v3017 = vadd.f32 %v2968, %v3012
        %s3018 = scalar_lea.vmem %s3, 28
        %v3019 = vld [vmem:[%s3018] sm:$0xf]
        %v3021 = vsel %vm1492, %v2677, 0
        %v3024 = vsel %vm2213, %v3019, 0
        %3026 = vmatprep.subr.bf16.mxu0 0
        %3027 = vmatpush1.bf16.msra.mxu0 %v3024
        %3028 = vmatprep.subr.bf16.mxu0 0
        %3029 = vmatpush1.bf16.msra.mxu0 0
        %3030 = vmatprep.subr.bf16.mxu0 0
        %3031 = vmatpush1.bf16.msra.mxu0 0
        %3032 = vmatprep.subr.bf16.mxu0 0
        %3033 = vmatpush1.bf16.msra.mxu0 0
        %3034 = vmatprep.subr.bf16.mxu0 0
        %3035 = vmatpush1.bf16.msra.mxu0 0
        %3036 = vmatprep.subr.bf16.mxu0 0
        %3037 = vmatpush1.bf16.msra.mxu0 0
        %3038 = vmatprep.subr.bf16.mxu0 0
        %3039 = vmatpush1.bf16.msra.mxu0 0
        %3040 = vmatprep.subr.bf16.mxu0 0
        %3041 = vmatpush1.bf16.msra.mxu0 0
        %3042 = vmatprep.subr.bf16.mxu0 0
        %3043 = vmatpush1.bf16.msra.mxu0 0
        %3044 = vmatprep.subr.bf16.mxu0 0
        %3045 = vmatpush1.bf16.msra.mxu0 0
        %3046 = vmatprep.subr.bf16.mxu0 0
        %3047 = vmatpush1.bf16.msra.mxu0 0
        %3048 = vmatprep.subr.bf16.mxu0 0
        %3049 = vmatpush1.bf16.msra.mxu0 0
        %3050 = vmatprep.subr.bf16.mxu0 0
        %3051 = vmatpush1.bf16.msra.mxu0 0
        %3052 = vmatprep.subr.bf16.mxu0 0
        %3053 = vmatpush1.bf16.msra.mxu0 0
        %3054 = vmatprep.subr.bf16.mxu0 0
        %3055 = vmatpush1.bf16.msra.mxu0 0
        %3056 = vmatprep.subr.bf16.mxu0 0
        %3057 = vmatpush1.bf16.msra.mxu0 0
        %3058 = vmatprep.mubr.bf16.mxu0 0
        %3059 = vmatmul.mubr.bf16.gmra.mrb[0].mxu0 %v3021
        %v3060 = vpop.f32.mrb[0].mxu0
        %v3061 = vadd.f32 0.0, %v3060
        %v3062 = vpop.f32.mrb[0].mxu0
        %v3063 = vpop.f32.mrb[0].mxu0
        %v3064 = vpop.f32.mrb[0].mxu0
        %3065 = vdwg.mxu0
        %v3066 = vadd.f32 %v3017, %v3061
        %v3067 = vld [vmem:[%s4] sm:$0x1]
        %v3069 = vlaneseq
        %v3070 = vshrl.u32 %v3069, 7
        %v3071 = vsub.s32 0, %v3070
        %v3072 = vrot.slane %v3067, %v3071
        %v3074 = vadd.f32 %v3066, %v3072
        %v3075 = vpack.c.bf16 %v3074, %v3074
        %vm3076 = vcmask 519168
        %3077 = vst.msk [vmem:[%s350] sm:$0xf] %vm3076, %v3075
      $region52: #{gpt_forward.9} parent=39 // pred_fallthru
        _
      %p3078 = scmp.lt.s32.totalorder %s21, 1
      %s3079 = scalar_select %p3078, %s21, 1
      %p3080 = scmp.lt.s32.totalorder %s22, 0
      %s3081 = scalar_select %p3080, %s22, 0
      %s3082 = sadd.s32 %s3081, %s3079
      %s3083 = smul.addr %s3082, 4
      %s3084 = scalar_lea.vmem %s5, %s3083
      // Predicated region
      $region53: #{gpt_forward.9} parent=39 // pred_check
        %p3085 = pneg %p189
      $region54: #{gpt_forward.9} parent=39 // pred_check_branch
        %3087 = sbr.rel (%p3085) target = $region56
      $region55: #{gpt_forward.9} parent=39 // pred_region
        _
      $region56: #{gpt_forward.9} parent=39 // pred_fallthru
        _
    $region40: #{gpt_forward.9} parent=5 // pred_fallthru
      _
    %p3088 = scmp.le.s32.totalorder 2, %s11
    // Predicated region
    $region57: #{gpt_forward.9} parent=5 // pred_check
      %p3089 = pneg %p3088
    $region58: #{gpt_forward.9} parent=5 // pred_check_branch
      %3091 = sbr.rel (%p3089) target = $region60
    $region59: #{gpt_forward.9} parent=5 // pred_region
      %s3092 = ssub.s32 %s11, 2
      // Predicated region
      $region61: #{gpt_forward.9} parent=59 // pred_check
        %p3093 = pneg %p195
      $region62: #{gpt_forward.9} parent=59 // pred_check_branch
        %3095 = sbr.rel (%p3093) target = $region64
      $region63: #{gpt_forward.9} parent=59 // pred_region
        %p3096 = scmp.lt.s32.totalorder %s24, 1
        %s3097 = scalar_select %p3096, %s24, 1
        %p3098 = scmp.lt.s32.totalorder %s25, 0
        %s3099 = scalar_select %p3098, %s25, 0
        %s3100 = sadd.s32 %s3099, %s3097
        %s3101 = smul.addr %s3100, 4
        %s3102 = scalar_lea.vmem %s5, %s3101
      $region64: #{gpt_forward.9} parent=59 // pred_fallthru
        _
    $region60: #{gpt_forward.9} parent=5 // pred_fallthru
      _
  $region6: #{gpt_forward.9} parent=0 // loop_footer
    %s15 = sadd.s32 1, %s11
  $region7: #{gpt_forward.9} parent=0 // loop_footer_branch
    %10 = sbr.rel target = $region3
  $region8: #{gpt_forward.9} parent=0 // loop_exit
    _

</llo_original>
